<compile_context>
chip_gen: v7x
topology: tpu7x:2x2x1
jax: 0.10.0
libtpu: 0.0.40
codegen_flags: <defaults>
</compile_context>

<pallas_src>
import jax
import jax.numpy as jnp
import numpy as np
from jax.experimental import pallas as pl
from jax.experimental.pallas import tpu as pltpu

H = 256      # hidden size (hardcoded to 256 in the PyTorch module)
T_ENC = 4    # encoder length (hardcoded by hidden[-1].unsqueeze(0).repeat(4, 1, 1))
L = 3        # GRU layers


def _gru_cell(gi, gh, h):
    """PyTorch-convention GRU cell with both gate projections precomputed (f32)."""
    r = jax.nn.sigmoid(gi[:, 0:H] + gh[:, 0:H])
    z = jax.nn.sigmoid(gi[:, H:2 * H] + gh[:, H:2 * H])
    n = jnp.tanh(gi[:, 2 * H:3 * H] + r * gh[:, 2 * H:3 * H])
    return (1.0 - z) * n + z * h


def decoder_kernel(b_ref, tok_ref, hid_ref, enc_ref, emb_ref, vatt_ref,
                   wgru_ref, bgru_ref, wfc_ref, bfc_ref,
                   hidnew_ref, pred_ref):
    f32, bf16 = jnp.float32, jnp.bfloat16

    hid = hid_ref[...]                       # (L, Bp, H) f32
    enc = enc_ref[...]                       # (T, Bp, H) f32
    Tn, Bp, Hn = enc.shape
    Vp_emb = emb_ref.shape[0]
    s = hid[L - 1]                           # (Bp, H)  == hidden[-1]

    # --- embedding lookup (dropout = identity / eval): one-hot @ table on the MXU ---
    tok = tok_ref[...]                                                   # (Bp, 1) int32
    vocab_iota = jax.lax.broadcasted_iota(jnp.int32, (Bp, Vp_emb), 1)
    onehot = (vocab_iota == tok).astype(f32)                             # (Bp, Vp_emb)
    emb = jnp.dot(onehot, emb_ref[...], preferred_element_type=f32)      # (Bp, H)

    # --- recurrent-gate matmuls, hoisted off the serial GRU chain (depend only on inputs) ---
    hid_b = hid.astype(bf16)
    bg = bgru_ref[...]                                                   # (6, 3H) f32
    gh0 = jnp.dot(hid_b[0], wgru_ref[2], preferred_element_type=f32) + bg[1:2]
    gh1 = jnp.dot(hid_b[1], wgru_ref[4], preferred_element_type=f32) + bg[3:4]
    gh2 = jnp.dot(hid_b[2], wgru_ref[6], preferred_element_type=f32) + bg[5:6]

    # --- folded attention: logits[t,b] = s[b].v_s + enc[t,b].v_e  (constant term cancels in
    #     the batch-axis softmax).  PyTorch's softmax(combined, dim=1) on a (T,B,1) tensor is
    #     a softmax over the BATCH axis, reproduced exactly; padded batch rows are masked. ---
    vatt = vatt_ref[...]                                                 # (2, H) f32
    prod = enc * vatt[1][None, None, :] + s[None, :, :] * vatt[0][None, None, :]
    logits = jnp.sum(prod, axis=-1)                                      # (T, Bp)
    batch_idx = jax.lax.broadcasted_iota(jnp.int32, (Tn, Bp), 1)
    logits = jnp.where(batch_idx < b_ref[0], logits, -1e30)
    m = jnp.max(logits, axis=1, keepdims=True)
    e = jnp.exp(logits - m)
    w = e / jnp.sum(e, axis=1, keepdims=True)                            # exact divide (8 lanes)

    # context[b, :] = sum_t w[t, b] * enc[t, b, :]   (the bmm in the reference)
    context = jnp.sum(w[:, :, None] * enc, axis=0)                       # (Bp, H)

    # --- 3-layer GRU, single time step (layer-0 input gates split: no lane-concat) ---
    gi0 = (jnp.dot(emb.astype(bf16), wgru_ref[0], preferred_element_type=f32)
           + jnp.dot(context.astype(bf16), wgru_ref[1], preferred_element_type=f32)
           + bg[0:1])
    h0 = _gru_cell(gi0, gh0, hid[0])

    gi1 = jnp.dot(h0.astype(bf16), wgru_ref[3], preferred_element_type=f32) + bg[2:3]
    h1 = _gru_cell(gi1, gh1, hid[1])

    gi2 = jnp.dot(h1.astype(bf16), wgru_ref[5], preferred_element_type=f32) + bg[4:5]
    h2 = _gru_cell(gi2, gh2, hid[2])

    hidnew_ref[0] = h0
    hidnew_ref[1] = h1
    hidnew_ref[2] = h2                       # decoder_output == hidnew[2] (sliced in wrapper)
    pred_ref[...] = jnp.dot(h2.astype(bf16), wfc_ref[...], preferred_element_type=f32) + bfc_ref[...]


def init_params(key, input_size):
    """Logical (f32, PyTorch-equivalent) parameters; used directly by the pure-JAX reference."""
    ks = jax.random.split(key, 20)

    def u(k, shape, fan_in):
        bound = 1.0 / np.sqrt(fan_in)
        return jax.random.uniform(k, shape, jnp.float32, -bound, bound)

    p = {}
    p["embedding"] = jax.random.normal(ks[0], (input_size, H), jnp.float32) * 0.1

    # attn: Linear(2H, H)   (PyTorch weight is (out, in); pre-transposed to (in, out))
    Wa = u(ks[1], (H, 2 * H), 2 * H)
    ba = u(ks[2], (H,), 2 * H)
    p["wa_s"] = Wa[:, :H].T        # acts on s           (H, H)
    p["wa_e"] = Wa[:, H:].T        # acts on encoder out (H, H)
    p["ba"] = ba.reshape(1, H)

    # attn_combine: Linear(H, 1)
    Wc = u(ks[3], (1, H), H)
    bc = u(ks[4], (1,), H)
    p["wc"] = Wc.reshape(1, H)
    p["bc"] = bc.reshape(1, 1)

    # GRU layer 0: input size 2H (cat(embedded, context)), gate order [r, z, n]
    Wih0 = u(ks[5], (3 * H, 2 * H), 2 * H)
    Whh0 = u(ks[6], (3 * H, H), H)
    p["wih0"] = Wih0.T             # (2H, 3H)
    p["whh0"] = Whh0.T
    p["bih0"] = u(ks[7], (3 * H,), H).reshape(1, 3 * H)
    p["bhh0"] = u(ks[8], (3 * H,), H).reshape(1, 3 * H)

    # GRU layers 1, 2: input size H
    for li, kbase in ((1, 9), (2, 13)):
        Wih = u(ks[kbase], (3 * H, H), H)
        Whh = u(ks[kbase + 1], (3 * H, H), H)
        p[f"wih{li}"] = Wih.T
        p[f"whh{li}"] = Whh.T
        p[f"bih{li}"] = u(ks[kbase + 2], (3 * H,), H).reshape(1, 3 * H)
        p[f"bhh{li}"] = u(ks[kbase + 3], (3 * H,), H).reshape(1, 3 * H)

    # fc: Linear(H, input_size)
    Wfc = u(ks[17], (input_size, H), H)
    bfc = u(ks[18], (input_size,), H)
    p["wfc"] = Wfc.T
    p["bfc"] = bfc.reshape(1, input_size)
    return p


def prepare_params(params):
    """One-time kernel-ready prep: fold attn, stack weight slabs, cast to bf16, pad lanes."""
    bf16 = jnp.bfloat16
    V = params["wfc"].shape[1]
    Vp = -(-V // 128) * 128          # lane-dense fc output columns
    Vemb = -(-V // 128) * 128        # padded vocab rows for the one-hot embedding matmul

    wih0 = params["wih0"]            # (2H, 3H)
    w_gru = jnp.stack([
        wih0[:H], wih0[H:], params["whh0"],
        params["wih1"], params["whh1"],
        params["wih2"], params["whh2"],
    ]).astype(bf16)                  # (7, H, 3H) bf16 — single weight slab (~2.6 MB)

    b_gru = jnp.concatenate([
        params["bih0"], params["bhh0"],
        params["bih1"], params["bhh1"],
        params["bih2"], params["bhh2"],
    ], axis=0)                       # (6, 3H) f32

    wc = params["wc"][0]
    v_att = jnp.stack([params["wa_s"] @ wc, params["wa_e"] @ wc])   # (2, H) f32
    # NOTE: the constant (ba.wc + bc) is dropped — the batch-axis softmax is shift-invariant.

    return {
        "embedding": jnp.pad(params["embedding"].astype(jnp.float32),
                             ((0, Vemb - V), (0, 0))),              # (Vemb, H) f32
        "v_att": v_att,
        "w_gru": w_gru,
        "b_gru": b_gru,
        "wfc": jnp.pad(params["wfc"], ((0, 0), (0, Vp - V))).astype(bf16),
        "bfc": jnp.pad(params["bfc"], ((0, 0), (0, Vp - V))),
        "vocab": V,
    }


def decoder_forward(prep, decoder_input, hidden, encoder_output):
    """Pallas-backed forward matching Decoder.forward (dropout = identity / eval mode)."""
    B = hidden.shape[1]
    V = prep["vocab"]
    Vp = prep["wfc"].shape[1]
    Bp = -(-B // 8) * 8              # pad batch to the f32 sublane tile
    db = Bp - B

    tokens = decoder_input.reshape(-1).astype(jnp.int32)    # view(1,-1).transpose(0,1) -> (B,)
    tok_p = jnp.pad(tokens, (0, db)).reshape(Bp, 1)
    hid_p = jnp.pad(hidden, ((0, 0), (0, db), (0, 0)))
    enc_p = jnp.pad(encoder_output, ((0, 0), (0, db), (0, 0)))
    b_actual = jnp.array([B], jnp.int32)                     # SMEM scalar -> no recompile per B

    vspec = pl.BlockSpec(memory_space=pltpu.MemorySpace.VMEM)
    sspec = pl.BlockSpec(memory_space=pltpu.MemorySpace.SMEM)

    out_shape = (jax.ShapeDtypeStruct((L, Bp, H), jnp.float32),   # new hidden (aliased w/ input)
                 jax.ShapeDtypeStruct((Bp, Vp), jnp.float32))     # predictions (lane-padded)

    hid_new, pred = pl.pallas_call(
        decoder_kernel,
        out_shape=out_shape,
        in_specs=[sspec] + [vspec] * 9,
        out_specs=(vspec, vspec),
        input_output_aliases={2: 0},                              # hidden buffer reused in place
        cost_estimate=pl.CostEstimate(flops=28_000_000,
                                      bytes_accessed=3_200_000,
                                      transcendentals=20_000),
    )(b_actual, tok_p, hid_p, enc_p,
      prep["embedding"], prep["v_att"], prep["w_gru"], prep["b_gru"],
      prep["wfc"], prep["bfc"])

    dec_out = hid_new[L - 1, :B].reshape(1, B, H)                 # decoder_output (len-1 seq)
    return dec_out, hid_new[:, :B], pred[:B, :V]


def decoder_reference(params, decoder_input, hidden, encoder_output):
    """Pure-JAX f32 reference replicating the PyTorch forward exactly."""
    tokens = decoder_input.reshape(-1)
    emb = params["embedding"][tokens]
    s = hidden[-1]                                                          # (B, H)
    a = (jnp.einsum("bh,hk->bk", s, params["wa_s"])[None]
         + jnp.einsum("tbh,hk->tbk", encoder_output, params["wa_e"])
         + params["ba"][None])                                              # (T, B, H)
    combined = jnp.einsum("tbh,h->tb", a, params["wc"][0]) + params["bc"][0, 0]  # (T, B)
    w = jax.nn.softmax(combined, axis=1)                                    # softmax over batch dim
    context = jnp.einsum("tb,tbh->bh", w, encoder_output)                   # (B, H)
    x0 = jnp.concatenate([emb, context], axis=1)

    def cell(x, h, wih, whh, bih, bhh):
        gi = x @ wih + bih
        gh = h @ whh + bhh
        r = jax.nn.sigmoid(gi[:, :H] + gh[:, :H])
        z = jax.nn.sigmoid(gi[:, H:2 * H] + gh[:, H:2 * H])
        n = jnp.tanh(gi[:, 2 * H:] + r * gh[:, 2 * H:])
        return (1.0 - z) * n + z * h

    h0 = cell(x0, hidden[0], params["wih0"], params["whh0"], params["bih0"], params["bhh0"])
    h1 = cell(h0, hidden[1], params["wih1"], params["whh1"], params["bih1"], params["bhh1"])
    h2 = cell(h1, hidden[2], params["wih2"], params["whh2"], params["bih2"], params["bhh2"])
    pred = h2 @ params["wfc"] + params["bfc"]
    return h2.reshape(1, -1, H), jnp.stack([h0, h1, h2]), pred


if __name__ == "__main__":
    key = jax.random.PRNGKey(0)
    input_size = 16   # vocabulary size (module's `input_size` parameter)
    B = 4             # batch

    k_tok, k_hid, k_enc, k_par = jax.random.split(key, 4)
    params = init_params(k_par, input_size)
    prep = prepare_params(params)            # one-time weight prep (cast/fold/stack/pad)

    decoder_input = jax.random.randint(k_tok, (B,), 0, input_size, dtype=jnp.int32)
    hidden = jax.random.normal(k_hid, (L, B, H), jnp.float32)
    encoder_output = jax.random.normal(k_enc, (T_ENC, B, H), jnp.float32)

    dec_out, hid_new, pred = decoder_forward(prep, decoder_input, hidden, encoder_output)
    jax.block_until_ready((dec_out, hid_new, pred))

    ref_out, ref_hid, ref_pred = decoder_reference(params, decoder_input, hidden, encoder_output)
    np.testing.assert_allclose(np.asarray(dec_out), np.asarray(ref_out), rtol=2e-2, atol=2e-2)
    np.testing.assert_allclose(np.asarray(hid_new), np.asarray(ref_hid), rtol=2e-2, atol=2e-2)
    np.testing.assert_allclose(np.asarray(pred), np.asarray(ref_pred), rtol=2e-2, atol=2e-2)

    print("KERNEL_OK")
</pallas_src>

<mosaic_0001>
module attributes {stable_mosaic.version = 11 : i64} {
  func.func @decoder_kernel(%arg0: memref<1xi32, #tpu.memory_space<smem>>, %arg1: memref<8x1xi32, #tpu.memory_space<vmem>>, %arg2: memref<3x8x256xf32, #tpu.memory_space<vmem>>, %arg3: memref<4x8x256xf32, #tpu.memory_space<vmem>>, %arg4: memref<128x256xf32, #tpu.memory_space<vmem>>, %arg5: memref<2x256xf32, #tpu.memory_space<vmem>>, %arg6: memref<7x256x768xbf16, #tpu.memory_space<vmem>>, %arg7: memref<6x768xf32, #tpu.memory_space<vmem>>, %arg8: memref<256x128xbf16, #tpu.memory_space<vmem>>, %arg9: memref<1x128xf32, #tpu.memory_space<vmem>>, %arg10: memref<3x8x256xf32, #tpu.memory_space<vmem>>, %arg11: memref<8x128xf32, #tpu.memory_space<vmem>>) attributes {dimension_semantics = [], scalar_prefetch = 0 : i64, scratch_operands = 0 : i64, tpu.core_type = #tpu.core_type<tc>} {
    %c0 = arith.constant 0 : index
    %c0_0 = arith.constant 0 : index
    %c0_1 = arith.constant 0 : index
    %0 = vector.load %arg2[%c0, %c0_0, %c0_1] : memref<3x8x256xf32, #tpu.memory_space<vmem>>, vector<3x8x256xf32>
    %c0_2 = arith.constant 0 : index
    %c0_3 = arith.constant 0 : index
    %c0_4 = arith.constant 0 : index
    %1 = vector.load %arg3[%c0_2, %c0_3, %c0_4] : memref<4x8x256xf32, #tpu.memory_space<vmem>>, vector<4x8x256xf32>
    %2 = vector.extract_strided_slice %0 {offsets = [2, 0, 0], sizes = [1, 8, 256], strides = [1, 1, 1]} : vector<3x8x256xf32> to vector<1x8x256xf32>
    %3 = vector.shape_cast %2 : vector<1x8x256xf32> to vector<8x256xf32>
    %c0_5 = arith.constant 0 : index
    %c0_6 = arith.constant 0 : index
    %4 = vector.load %arg1[%c0_5, %c0_6] : memref<8x1xi32, #tpu.memory_space<vmem>>, vector<8x1xi32>
    %5 = tpu.iota {dimensions = array<i32: 1>} : vector<8x128xi32>
    %6 = vector.broadcast %4 : vector<8x1xi32> to vector<8x128xi32>
    %7 = arith.cmpi eq, %5, %6 : vector<8x128xi32>
    %8 = arith.extui %7 : vector<8x128xi1> to vector<8x128xi32>
    %9 = arith.sitofp %8 : vector<8x128xi32> to vector<8x128xf32>
    %c0_7 = arith.constant 0 : index
    %c0_8 = arith.constant 0 : index
    %10 = vector.load %arg4[%c0_7, %c0_8] : memref<128x256xf32, #tpu.memory_space<vmem>>, vector<128x256xf32>
    %cst = arith.constant dense<0.000000e+00> : vector<8x256xf32>
    %11 = tpu.matmul %9, %10, %cst {dimension_numbers = #tpu.dot_dimension_numbers<[1], [0], [0], [1], [0, 0, 1, 1], [], []>} : vector<8x128xf32>, vector<128x256xf32>, vector<8x256xf32> -> vector<8x256xf32>
    %12 = arith.truncf %0 : vector<3x8x256xf32> to vector<3x8x256xbf16>
    %c0_9 = arith.constant 0 : index
    %c0_10 = arith.constant 0 : index
    %13 = vector.load %arg7[%c0_9, %c0_10] : memref<6x768xf32, #tpu.memory_space<vmem>>, vector<6x768xf32>
    %14 = vector.extract_strided_slice %12 {offsets = [0, 0, 0], sizes = [1, 8, 256], strides = [1, 1, 1]} : vector<3x8x256xbf16> to vector<1x8x256xbf16>
    %15 = vector.shape_cast %14 : vector<1x8x256xbf16> to vector<8x256xbf16>
    %c2 = arith.constant 2 : index
    %c0_11 = arith.constant 0 : index
    %c0_12 = arith.constant 0 : index
    %16 = vector.load %arg6[%c2, %c0_11, %c0_12] : memref<7x256x768xbf16, #tpu.memory_space<vmem>>, vector<1x256x768xbf16>
    %17 = vector.shape_cast %16 : vector<1x256x768xbf16> to vector<256x768xbf16>
    %cst_13 = arith.constant dense<0.000000e+00> : vector<8x768xf32>
    %18 = tpu.matmul %15, %17, %cst_13 {dimension_numbers = #tpu.dot_dimension_numbers<[1], [0], [0], [1], [0, 0, 1, 1], [], []>} : vector<8x256xbf16>, vector<256x768xbf16>, vector<8x768xf32> -> vector<8x768xf32>
    %19 = vector.extract_strided_slice %13 {offsets = [1, 0], sizes = [1, 768], strides = [1, 1]} : vector<6x768xf32> to vector<1x768xf32>
    %20 = vector.broadcast %19 : vector<1x768xf32> to vector<8x768xf32>
    %21 = arith.addf %18, %20 : vector<8x768xf32>
    %22 = vector.extract_strided_slice %12 {offsets = [1, 0, 0], sizes = [1, 8, 256], strides = [1, 1, 1]} : vector<3x8x256xbf16> to vector<1x8x256xbf16>
    %23 = vector.shape_cast %22 : vector<1x8x256xbf16> to vector<8x256xbf16>
    %c4 = arith.constant 4 : index
    %c0_14 = arith.constant 0 : index
    %c0_15 = arith.constant 0 : index
    %24 = vector.load %arg6[%c4, %c0_14, %c0_15] : memref<7x256x768xbf16, #tpu.memory_space<vmem>>, vector<1x256x768xbf16>
    %25 = vector.shape_cast %24 : vector<1x256x768xbf16> to vector<256x768xbf16>
    %cst_16 = arith.constant dense<0.000000e+00> : vector<8x768xf32>
    %26 = tpu.matmul %23, %25, %cst_16 {dimension_numbers = #tpu.dot_dimension_numbers<[1], [0], [0], [1], [0, 0, 1, 1], [], []>} : vector<8x256xbf16>, vector<256x768xbf16>, vector<8x768xf32> -> vector<8x768xf32>
    %27 = vector.extract_strided_slice %13 {offsets = [3, 0], sizes = [1, 768], strides = [1, 1]} : vector<6x768xf32> to vector<1x768xf32>
    %28 = vector.broadcast %27 : vector<1x768xf32> to vector<8x768xf32>
    %29 = arith.addf %26, %28 : vector<8x768xf32>
    %30 = vector.extract_strided_slice %12 {offsets = [2, 0, 0], sizes = [1, 8, 256], strides = [1, 1, 1]} : vector<3x8x256xbf16> to vector<1x8x256xbf16>
    %31 = vector.shape_cast %30 : vector<1x8x256xbf16> to vector<8x256xbf16>
    %c6 = arith.constant 6 : index
    %c0_17 = arith.constant 0 : index
    %c0_18 = arith.constant 0 : index
    %32 = vector.load %arg6[%c6, %c0_17, %c0_18] : memref<7x256x768xbf16, #tpu.memory_space<vmem>>, vector<1x256x768xbf16>
    %33 = vector.shape_cast %32 : vector<1x256x768xbf16> to vector<256x768xbf16>
    %cst_19 = arith.constant dense<0.000000e+00> : vector<8x768xf32>
    %34 = tpu.matmul %31, %33, %cst_19 {dimension_numbers = #tpu.dot_dimension_numbers<[1], [0], [0], [1], [0, 0, 1, 1], [], []>} : vector<8x256xbf16>, vector<256x768xbf16>, vector<8x768xf32> -> vector<8x768xf32>
    %35 = vector.extract_strided_slice %13 {offsets = [5, 0], sizes = [1, 768], strides = [1, 1]} : vector<6x768xf32> to vector<1x768xf32>
    %36 = vector.broadcast %35 : vector<1x768xf32> to vector<8x768xf32>
    %37 = arith.addf %34, %36 : vector<8x768xf32>
    %c0_20 = arith.constant 0 : index
    %c0_21 = arith.constant 0 : index
    %38 = vector.load %arg5[%c0_20, %c0_21] : memref<2x256xf32, #tpu.memory_space<vmem>>, vector<2x256xf32>
    %39 = vector.extract_strided_slice %38 {offsets = [1, 0], sizes = [1, 256], strides = [1, 1]} : vector<2x256xf32> to vector<1x256xf32>
    %40 = vector.shape_cast %39 : vector<1x256xf32> to vector<256xf32>
    %41 = vector.shape_cast %40 : vector<256xf32> to vector<1x1x256xf32>
    %42 = vector.broadcast %41 : vector<1x1x256xf32> to vector<4x8x256xf32>
    %43 = arith.mulf %1, %42 : vector<4x8x256xf32>
    %44 = vector.shape_cast %3 : vector<8x256xf32> to vector<1x8x256xf32>
    %45 = vector.extract_strided_slice %38 {offsets = [0, 0], sizes = [1, 256], strides = [1, 1]} : vector<2x256xf32> to vector<1x256xf32>
    %46 = vector.shape_cast %45 : vector<1x256xf32> to vector<256xf32>
    %47 = vector.shape_cast %46 : vector<256xf32> to vector<1x1x256xf32>
    %48 = vector.broadcast %47 : vector<1x1x256xf32> to vector<1x8x256xf32>
    %49 = arith.mulf %44, %48 : vector<1x8x256xf32>
    %50 = vector.broadcast %49 : vector<1x8x256xf32> to vector<4x8x256xf32>
    %51 = arith.addf %43, %50 : vector<4x8x256xf32>
    %cst_22 = arith.constant dense<0.000000e+00> : vector<4x8xf32>
    %52 = vector.multi_reduction <add>, %51, %cst_22 [2] : vector<4x8x256xf32> to vector<4x8xf32>
    %53 = tpu.iota {dimensions = array<i32: 1>} : vector<4x8xi32>
    %c0_23 = arith.constant 0 : index
    %54 = memref.load %arg0[%c0_23] : memref<1xi32, #tpu.memory_space<smem>>
    %55 = vector.broadcast %54 : i32 to vector<4x8xi32>
    %56 = arith.cmpi slt, %53, %55 : vector<4x8xi32>
    %cst_24 = arith.constant -1.000000e+30 : f32
    %57 = vector.broadcast %cst_24 : f32 to vector<4x8xf32>
    %58 = arith.select %56, %52, %57 : vector<4x8xi1>, vector<4x8xf32>
    %cst_25 = arith.constant dense<0xFF800000> : vector<4xf32>
    %59 = vector.multi_reduction <maximumf>, %58, %cst_25 [1] : vector<4x8xf32> to vector<4xf32>
    %60 = vector.shape_cast %59 : vector<4xf32> to vector<4x1xf32>
    %61 = vector.broadcast %60 : vector<4x1xf32> to vector<4x8xf32>
    %62 = arith.subf %58, %61 : vector<4x8xf32>
    %63 = math.exp %62 : vector<4x8xf32>
    %cst_26 = arith.constant dense<0.000000e+00> : vector<4xf32>
    %64 = vector.multi_reduction <add>, %63, %cst_26 [1] : vector<4x8xf32> to vector<4xf32>
    %65 = vector.shape_cast %64 : vector<4xf32> to vector<4x1xf32>
    %66 = vector.broadcast %65 : vector<4x1xf32> to vector<4x8xf32>
    %67 = arith.divf %63, %66 : vector<4x8xf32>
    %68 = vector.shape_cast %67 : vector<4x8xf32> to vector<4x8x1xf32>
    %69 = vector.broadcast %68 : vector<4x8x1xf32> to vector<4x8x256xf32>
    %70 = arith.mulf %69, %1 : vector<4x8x256xf32>
    %cst_27 = arith.constant dense<0.000000e+00> : vector<8x256xf32>
    %71 = vector.multi_reduction <add>, %70, %cst_27 [0] : vector<4x8x256xf32> to vector<8x256xf32>
    %72 = arith.truncf %11 : vector<8x256xf32> to vector<8x256xbf16>
    %c0_28 = arith.constant 0 : index
    %c0_29 = arith.constant 0 : index
    %c0_30 = arith.constant 0 : index
    %73 = vector.load %arg6[%c0_28, %c0_29, %c0_30] : memref<7x256x768xbf16, #tpu.memory_space<vmem>>, vector<1x256x768xbf16>
    %74 = vector.shape_cast %73 : vector<1x256x768xbf16> to vector<256x768xbf16>
    %cst_31 = arith.constant dense<0.000000e+00> : vector<8x768xf32>
    %75 = tpu.matmul %72, %74, %cst_31 {dimension_numbers = #tpu.dot_dimension_numbers<[1], [0], [0], [1], [0, 0, 1, 1], [], []>} : vector<8x256xbf16>, vector<256x768xbf16>, vector<8x768xf32> -> vector<8x768xf32>
    %76 = arith.truncf %71 : vector<8x256xf32> to vector<8x256xbf16>
    %c1 = arith.constant 1 : index
    %c0_32 = arith.constant 0 : index
    %c0_33 = arith.constant 0 : index
    %77 = vector.load %arg6[%c1, %c0_32, %c0_33] : memref<7x256x768xbf16, #tpu.memory_space<vmem>>, vector<1x256x768xbf16>
    %78 = vector.shape_cast %77 : vector<1x256x768xbf16> to vector<256x768xbf16>
    %cst_34 = arith.constant dense<0.000000e+00> : vector<8x768xf32>
    %79 = tpu.matmul %76, %78, %cst_34 {dimension_numbers = #tpu.dot_dimension_numbers<[1], [0], [0], [1], [0, 0, 1, 1], [], []>} : vector<8x256xbf16>, vector<256x768xbf16>, vector<8x768xf32> -> vector<8x768xf32>
    %80 = arith.addf %75, %79 : vector<8x768xf32>
    %81 = vector.extract_strided_slice %13 {offsets = [0, 0], sizes = [1, 768], strides = [1, 1]} : vector<6x768xf32> to vector<1x768xf32>
    %82 = vector.broadcast %81 : vector<1x768xf32> to vector<8x768xf32>
    %83 = arith.addf %80, %82 : vector<8x768xf32>
    %84 = vector.extract_strided_slice %0 {offsets = [0, 0, 0], sizes = [1, 8, 256], strides = [1, 1, 1]} : vector<3x8x256xf32> to vector<1x8x256xf32>
    %85 = vector.shape_cast %84 : vector<1x8x256xf32> to vector<8x256xf32>
    %86 = vector.extract_strided_slice %83 {offsets = [0, 0], sizes = [8, 256], strides = [1, 1]} : vector<8x768xf32> to vector<8x256xf32>
    %87 = vector.extract_strided_slice %21 {offsets = [0, 0], sizes = [8, 256], strides = [1, 1]} : vector<8x768xf32> to vector<8x256xf32>
    %88 = arith.addf %86, %87 : vector<8x256xf32>
    %89 = arith.negf %88 : vector<8x256xf32>
    %90 = math.exp %89 : vector<8x256xf32>
    %cst_35 = arith.constant 1.000000e+00 : f32
    %91 = vector.broadcast %cst_35 : f32 to vector<8x256xf32>
    %92 = arith.addf %91, %90 : vector<8x256xf32>
    %93 = arith.divf %91, %92 : vector<8x256xf32>
    %94 = vector.extract_strided_slice %83 {offsets = [0, 256], sizes = [8, 256], strides = [1, 1]} : vector<8x768xf32> to vector<8x256xf32>
    %95 = vector.extract_strided_slice %21 {offsets = [0, 256], sizes = [8, 256], strides = [1, 1]} : vector<8x768xf32> to vector<8x256xf32>
    %96 = arith.addf %94, %95 : vector<8x256xf32>
    %97 = arith.negf %96 : vector<8x256xf32>
    %98 = math.exp %97 : vector<8x256xf32>
    %cst_36 = arith.constant 1.000000e+00 : f32
    %99 = vector.broadcast %cst_36 : f32 to vector<8x256xf32>
    %100 = arith.addf %99, %98 : vector<8x256xf32>
    %101 = arith.divf %99, %100 : vector<8x256xf32>
    %102 = vector.extract_strided_slice %83 {offsets = [0, 512], sizes = [8, 256], strides = [1, 1]} : vector<8x768xf32> to vector<8x256xf32>
    %103 = vector.extract_strided_slice %21 {offsets = [0, 512], sizes = [8, 256], strides = [1, 1]} : vector<8x768xf32> to vector<8x256xf32>
    %104 = arith.mulf %93, %103 : vector<8x256xf32>
    %105 = arith.addf %102, %104 : vector<8x256xf32>
    %106 = math.tanh %105 : vector<8x256xf32>
    %cst_37 = arith.constant 1.000000e+00 : f32
    %107 = vector.broadcast %cst_37 : f32 to vector<8x256xf32>
    %108 = arith.subf %107, %101 : vector<8x256xf32>
    %109 = arith.mulf %108, %106 : vector<8x256xf32>
    %110 = arith.mulf %101, %85 : vector<8x256xf32>
    %111 = arith.addf %109, %110 : vector<8x256xf32>
    %112 = arith.truncf %111 : vector<8x256xf32> to vector<8x256xbf16>
    %c3 = arith.constant 3 : index
    %c0_38 = arith.constant 0 : index
    %c0_39 = arith.constant 0 : index
    %113 = vector.load %arg6[%c3, %c0_38, %c0_39] : memref<7x256x768xbf16, #tpu.memory_space<vmem>>, vector<1x256x768xbf16>
    %114 = vector.shape_cast %113 : vector<1x256x768xbf16> to vector<256x768xbf16>
    %cst_40 = arith.constant dense<0.000000e+00> : vector<8x768xf32>
    %115 = tpu.matmul %112, %114, %cst_40 {dimension_numbers = #tpu.dot_dimension_numbers<[1], [0], [0], [1], [0, 0, 1, 1], [], []>} : vector<8x256xbf16>, vector<256x768xbf16>, vector<8x768xf32> -> vector<8x768xf32>
    %116 = vector.extract_strided_slice %13 {offsets = [2, 0], sizes = [1, 768], strides = [1, 1]} : vector<6x768xf32> to vector<1x768xf32>
    %117 = vector.broadcast %116 : vector<1x768xf32> to vector<8x768xf32>
    %118 = arith.addf %115, %117 : vector<8x768xf32>
    %119 = vector.extract_strided_slice %0 {offsets = [1, 0, 0], sizes = [1, 8, 256], strides = [1, 1, 1]} : vector<3x8x256xf32> to vector<1x8x256xf32>
    %120 = vector.shape_cast %119 : vector<1x8x256xf32> to vector<8x256xf32>
    %121 = vector.extract_strided_slice %118 {offsets = [0, 0], sizes = [8, 256], strides = [1, 1]} : vector<8x768xf32> to vector<8x256xf32>
    %122 = vector.extract_strided_slice %29 {offsets = [0, 0], sizes = [8, 256], strides = [1, 1]} : vector<8x768xf32> to vector<8x256xf32>
    %123 = arith.addf %121, %122 : vector<8x256xf32>
    %124 = arith.negf %123 : vector<8x256xf32>
    %125 = math.exp %124 : vector<8x256xf32>
    %cst_41 = arith.constant 1.000000e+00 : f32
    %126 = vector.broadcast %cst_41 : f32 to vector<8x256xf32>
    %127 = arith.addf %126, %125 : vector<8x256xf32>
    %128 = arith.divf %126, %127 : vector<8x256xf32>
    %129 = vector.extract_strided_slice %118 {offsets = [0, 256], sizes = [8, 256], strides = [1, 1]} : vector<8x768xf32> to vector<8x256xf32>
    %130 = vector.extract_strided_slice %29 {offsets = [0, 256], sizes = [8, 256], strides = [1, 1]} : vector<8x768xf32> to vector<8x256xf32>
    %131 = arith.addf %129, %130 : vector<8x256xf32>
    %132 = arith.negf %131 : vector<8x256xf32>
    %133 = math.exp %132 : vector<8x256xf32>
    %cst_42 = arith.constant 1.000000e+00 : f32
    %134 = vector.broadcast %cst_42 : f32 to vector<8x256xf32>
    %135 = arith.addf %134, %133 : vector<8x256xf32>
    %136 = arith.divf %134, %135 : vector<8x256xf32>
    %137 = vector.extract_strided_slice %118 {offsets = [0, 512], sizes = [8, 256], strides = [1, 1]} : vector<8x768xf32> to vector<8x256xf32>
    %138 = vector.extract_strided_slice %29 {offsets = [0, 512], sizes = [8, 256], strides = [1, 1]} : vector<8x768xf32> to vector<8x256xf32>
    %139 = arith.mulf %128, %138 : vector<8x256xf32>
    %140 = arith.addf %137, %139 : vector<8x256xf32>
    %141 = math.tanh %140 : vector<8x256xf32>
    %cst_43 = arith.constant 1.000000e+00 : f32
    %142 = vector.broadcast %cst_43 : f32 to vector<8x256xf32>
    %143 = arith.subf %142, %136 : vector<8x256xf32>
    %144 = arith.mulf %143, %141 : vector<8x256xf32>
    %145 = arith.mulf %136, %120 : vector<8x256xf32>
    %146 = arith.addf %144, %145 : vector<8x256xf32>
    %147 = arith.truncf %146 : vector<8x256xf32> to vector<8x256xbf16>
    %c5 = arith.constant 5 : index
    %c0_44 = arith.constant 0 : index
    %c0_45 = arith.constant 0 : index
    %148 = vector.load %arg6[%c5, %c0_44, %c0_45] : memref<7x256x768xbf16, #tpu.memory_space<vmem>>, vector<1x256x768xbf16>
    %149 = vector.shape_cast %148 : vector<1x256x768xbf16> to vector<256x768xbf16>
    %cst_46 = arith.constant dense<0.000000e+00> : vector<8x768xf32>
    %150 = tpu.matmul %147, %149, %cst_46 {dimension_numbers = #tpu.dot_dimension_numbers<[1], [0], [0], [1], [0, 0, 1, 1], [], []>} : vector<8x256xbf16>, vector<256x768xbf16>, vector<8x768xf32> -> vector<8x768xf32>
    %151 = vector.extract_strided_slice %13 {offsets = [4, 0], sizes = [1, 768], strides = [1, 1]} : vector<6x768xf32> to vector<1x768xf32>
    %152 = vector.broadcast %151 : vector<1x768xf32> to vector<8x768xf32>
    %153 = arith.addf %150, %152 : vector<8x768xf32>
    %154 = vector.extract_strided_slice %0 {offsets = [2, 0, 0], sizes = [1, 8, 256], strides = [1, 1, 1]} : vector<3x8x256xf32> to vector<1x8x256xf32>
    %155 = vector.shape_cast %154 : vector<1x8x256xf32> to vector<8x256xf32>
    %156 = vector.extract_strided_slice %153 {offsets = [0, 0], sizes = [8, 256], strides = [1, 1]} : vector<8x768xf32> to vector<8x256xf32>
    %157 = vector.extract_strided_slice %37 {offsets = [0, 0], sizes = [8, 256], strides = [1, 1]} : vector<8x768xf32> to vector<8x256xf32>
    %158 = arith.addf %156, %157 : vector<8x256xf32>
    %159 = arith.negf %158 : vector<8x256xf32>
    %160 = math.exp %159 : vector<8x256xf32>
    %cst_47 = arith.constant 1.000000e+00 : f32
    %161 = vector.broadcast %cst_47 : f32 to vector<8x256xf32>
    %162 = arith.addf %161, %160 : vector<8x256xf32>
    %163 = arith.divf %161, %162 : vector<8x256xf32>
    %164 = vector.extract_strided_slice %153 {offsets = [0, 256], sizes = [8, 256], strides = [1, 1]} : vector<8x768xf32> to vector<8x256xf32>
    %165 = vector.extract_strided_slice %37 {offsets = [0, 256], sizes = [8, 256], strides = [1, 1]} : vector<8x768xf32> to vector<8x256xf32>
    %166 = arith.addf %164, %165 : vector<8x256xf32>
    %167 = arith.negf %166 : vector<8x256xf32>
    %168 = math.exp %167 : vector<8x256xf32>
    %cst_48 = arith.constant 1.000000e+00 : f32
    %169 = vector.broadcast %cst_48 : f32 to vector<8x256xf32>
    %170 = arith.addf %169, %168 : vector<8x256xf32>
    %171 = arith.divf %169, %170 : vector<8x256xf32>
    %172 = vector.extract_strided_slice %153 {offsets = [0, 512], sizes = [8, 256], strides = [1, 1]} : vector<8x768xf32> to vector<8x256xf32>
    %173 = vector.extract_strided_slice %37 {offsets = [0, 512], sizes = [8, 256], strides = [1, 1]} : vector<8x768xf32> to vector<8x256xf32>
    %174 = arith.mulf %163, %173 : vector<8x256xf32>
    %175 = arith.addf %172, %174 : vector<8x256xf32>
    %176 = math.tanh %175 : vector<8x256xf32>
    %cst_49 = arith.constant 1.000000e+00 : f32
    %177 = vector.broadcast %cst_49 : f32 to vector<8x256xf32>
    %178 = arith.subf %177, %171 : vector<8x256xf32>
    %179 = arith.mulf %178, %176 : vector<8x256xf32>
    %180 = arith.mulf %171, %155 : vector<8x256xf32>
    %181 = arith.addf %179, %180 : vector<8x256xf32>
    %c0_50 = arith.constant 0 : index
    %c0_51 = arith.constant 0 : index
    %c0_52 = arith.constant 0 : index
    %182 = vector.load %arg10[%c0_50, %c0_51, %c0_52] : memref<3x8x256xf32, #tpu.memory_space<vmem>>, vector<1x8x256xf32>
    %183 = vector.shape_cast %182 : vector<1x8x256xf32> to vector<8x256xf32>
    %184 = vector.shape_cast %111 : vector<8x256xf32> to vector<1x8x256xf32>
    tpu.vector_store %arg10[%c0_50, %c0_51, %c0_52], %184 {strides = array<i32>} : memref<3x8x256xf32, #tpu.memory_space<vmem>>, vector<1x8x256xf32>,
    %c1_53 = arith.constant 1 : index
    %c0_54 = arith.constant 0 : index
    %c0_55 = arith.constant 0 : index
    %185 = vector.load %arg10[%c1_53, %c0_54, %c0_55] : memref<3x8x256xf32, #tpu.memory_space<vmem>>, vector<1x8x256xf32>
    %186 = vector.shape_cast %185 : vector<1x8x256xf32> to vector<8x256xf32>
    %187 = vector.shape_cast %146 : vector<8x256xf32> to vector<1x8x256xf32>
    tpu.vector_store %arg10[%c1_53, %c0_54, %c0_55], %187 {strides = array<i32>} : memref<3x8x256xf32, #tpu.memory_space<vmem>>, vector<1x8x256xf32>,
    %c2_56 = arith.constant 2 : index
    %c0_57 = arith.constant 0 : index
    %c0_58 = arith.constant 0 : index
    %188 = vector.load %arg10[%c2_56, %c0_57, %c0_58] : memref<3x8x256xf32, #tpu.memory_space<vmem>>, vector<1x8x256xf32>
    %189 = vector.shape_cast %188 : vector<1x8x256xf32> to vector<8x256xf32>
    %190 = vector.shape_cast %181 : vector<8x256xf32> to vector<1x8x256xf32>
    tpu.vector_store %arg10[%c2_56, %c0_57, %c0_58], %190 {strides = array<i32>} : memref<3x8x256xf32, #tpu.memory_space<vmem>>, vector<1x8x256xf32>,
    %191 = arith.truncf %181 : vector<8x256xf32> to vector<8x256xbf16>
    %c0_59 = arith.constant 0 : index
    %c0_60 = arith.constant 0 : index
    %192 = vector.load %arg8[%c0_59, %c0_60] : memref<256x128xbf16, #tpu.memory_space<vmem>>, vector<256x128xbf16>
    %cst_61 = arith.constant dense<0.000000e+00> : vector<8x128xf32>
    %193 = tpu.matmul %191, %192, %cst_61 {dimension_numbers = #tpu.dot_dimension_numbers<[1], [0], [0], [1], [0, 0, 1, 1], [], []>} : vector<8x256xbf16>, vector<256x128xbf16>, vector<8x128xf32> -> vector<8x128xf32>
    %c0_62 = arith.constant 0 : index
    %c0_63 = arith.constant 0 : index
    %194 = vector.load %arg9[%c0_62, %c0_63] : memref<1x128xf32, #tpu.memory_space<vmem>>, vector<1x128xf32>
    %195 = vector.broadcast %194 : vector<1x128xf32> to vector<8x128xf32>
    %196 = arith.addf %193, %195 : vector<8x128xf32>
    %c0_64 = arith.constant 0 : index
    %c0_65 = arith.constant 0 : index
    %197 = vector.load %arg11[%c0_64, %c0_65] : memref<8x128xf32, #tpu.memory_space<vmem>>, vector<8x128xf32>
    tpu.vector_store %arg11[%c0_64, %c0_65], %196 {strides = array<i32>} : memref<8x128xf32, #tpu.memory_space<vmem>>, vector<8x128xf32>,
    return
  }
}

</mosaic_0001>

<llo_original>
// kernel: tpu_custom_call.1
$region0: #{tpu_custom_call.1}
  #allocation0 [shape = 'u32[]', space=smem, size = 0x4, offset = 0x4, fixed_abs, tag = 'smem constant byte address 0x4 - core index']
  #allocation1 [shape = 'u32[144,128]{1,0:T(1,128)}', space=vmem, size = 0x12000, scoped, tag = 'internal scratch']
  #allocation2 [shape = 's32[1]{0:T(128)S(6)}', space=smem, size = 0x200, scoped, tag = 'scoped memory for tpu_custom_call.1']
  %s0 = inlined_call_operand.<no memory space> [shape: s32[1], index: 0, kind: input, shape index: {}]
  %s1 = inlined_call_operand.vmem [shape: s32[8,1], index: 1, kind: input, shape index: {}]
  %s2 = inlined_call_operand.hbm [shape: f32[3,8,256], index: 2, kind: input, shape index: {}, may-alias: {2,10}]
  %s3 = inlined_call_operand.hbm [shape: f32[4,8,256], index: 3, kind: input, shape index: {}]
  %s4 = inlined_call_operand.hbm [shape: f32[128,256], index: 4, kind: input, shape index: {}]
  %s5 = inlined_call_operand.hbm [shape: f32[2,256], index: 5, kind: input, shape index: {}]
  %s6 = inlined_call_operand.hbm [shape: bf16[7,256,768], index: 6, kind: input, shape index: {}]
  %s7 = inlined_call_operand.hbm [shape: f32[6,768], index: 7, kind: input, shape index: {}]
  %s8 = inlined_call_operand.hbm [shape: bf16[256,128], index: 8, kind: input, shape index: {}]
  %s9 = inlined_call_operand.hbm [shape: f32[1,128], index: 9, kind: input, shape index: {}]
  %s10 = inlined_call_operand.hbm [shape: f32[3,8,256], index: 10, kind: output, shape index: {0}, may-alias: {2,10}]
  %s11 = inlined_call_operand.hbm [shape: f32[8,128], index: 11, kind: output, shape index: {1}]
  %12 = xla_tuple %s10, %s11
  %s13 = sld [smem:[#allocation0]]
  $region90: #{tpu_custom_call.1} parent=0
    _
  %s15 = ssub.s32 1, %s13
  %s16 = scalar_select 0, %s15, %s13
  %17 = sst [smem:[#allocation2]] %s0
  $region1: #{tpu_custom_call.1} parent=0
    #allocation3 [shape = 'u8[24576]{0}', space=vmem, size = 0x6000, scoped, tag = 'input window, operand 2, single buffered']
    #allocation4 [shape = 's32[1]{0}', space=sflag, size = 0x4, scoped, tag = 'scoped memory for tpu_custom_call.1']
    #allocation5 [shape = 's32[1]{0}', space=sflag, size = 0x4, scoped, tag = 'scoped memory for tpu_custom_call.1']
    #allocation6 [shape = 'u8[32768]{0}', space=vmem, size = 0x8000, scoped, tag = 'input window, operand 3, single buffered']
    #allocation7 [shape = 's32[1]{0}', space=sflag, size = 0x4, scoped, tag = 'scoped memory for tpu_custom_call.1']
    #allocation8 [shape = 'u8[131072]{0}', space=vmem, size = 0x20000, scoped, tag = 'input window, operand 4, single buffered']
    #allocation9 [shape = 'u8[2048]{0}', space=vmem, size = 0x800, scoped, tag = 'input window, operand 5, single buffered']
    #allocation10 [shape = 's32[1]{0}', space=sflag, size = 0x4, scoped, tag = 'scoped memory for tpu_custom_call.1']
    #allocation11 [shape = 'u8[2752512]{0}', space=vmem, size = 0x2a0000, scoped, tag = 'input window, operand 6, single buffered']
    #allocation12 [shape = 'u8[24576]{0}', space=vmem, size = 0x6000, scoped, tag = 'input window, operand 7, single buffered']
    #allocation13 [shape = 's32[1]{0}', space=sflag, size = 0x4, scoped, tag = 'scoped memory for tpu_custom_call.1']
    #allocation14 [shape = 'u8[65536]{0}', space=vmem, size = 0x10000, scoped, tag = 'input window, operand 8, single buffered']
    #allocation15 [shape = 'u8[512]{0}', space=vmem, size = 0x400, scoped, tag = 'input window, operand 9, single buffered']
    #allocation16 [shape = 's32[1]{0}', space=sflag, size = 0x4, scoped, tag = 'scoped memory for tpu_custom_call.1']
    #allocation17 [shape = 'u8[24576]{0}', space=vmem, size = 0x6000, scoped, tag = 'output window, operand 0, single buffered']
    #allocation18 [shape = 'u8[4096]{0}', space=vmem, size = 0x1000, scoped, tag = 'output window, operand 1, single buffered']
    #allocation19 [shape = 's32[1]{0}', space=sflag, size = 0x4, scoped, tag = 'scoped memory for tpu_custom_call.1']
    %18 = vsyncpa [#allocation4], 0
    %19 = vsyncpa [#allocation7], 0
    %20 = vsyncpa [#allocation10], 0
    %21 = vsyncpa [#allocation13], 0
    %22 = vsyncpa [#allocation16], 0
    %23 = vsyncpa [#allocation5], 0
    %24 = vsyncpa [#allocation19], 0
    // Predicated region
    $region2: #{tpu_custom_call.1} parent=1 // pred_check
      _
    $region3: #{tpu_custom_call.1} parent=1 // pred_check_branch
      %26 = sbr.rel (0) target = $region5
    $region4: #{tpu_custom_call.1} parent=1 // pred_region
      _
    $region5: #{tpu_custom_call.1} parent=1 // pred_fallthru
      _
    // Predicated region
    $region6: #{tpu_custom_call.1} parent=1 // pred_check
      _
    $region7: #{tpu_custom_call.1} parent=1 // pred_check_branch
      %28 = sbr.rel (0) target = $region9
    $region8: #{tpu_custom_call.1} parent=1 // pred_region
      _
    $region9: #{tpu_custom_call.1} parent=1 // pred_fallthru
      _
    // Predicated region
    $region10: #{tpu_custom_call.1} parent=1 // pred_check
      _
    $region11: #{tpu_custom_call.1} parent=1 // pred_check_branch
      %30 = sbr.rel (0) target = $region13
    $region12: #{tpu_custom_call.1} parent=1 // pred_region
      %s32 = ssub.s32 768, 768
      %33 = vsyncadd [#allocation4], %s32
      %s34 = sshll.u32 [#allocation3], 4
      %s35 = int_to_ptr.vmem [resolvable:$true] %s34
      %40 = dma.hbm_to_vmem [thread:$0]  %s2, 768, %s35, [#allocation4], 256, 256, 16
    $region13: #{tpu_custom_call.1} parent=1 // pred_fallthru
      _
    // Predicated region
    $region14: #{tpu_custom_call.1} parent=1 // pred_check
      _
    $region15: #{tpu_custom_call.1} parent=1 // pred_check_branch
      %42 = sbr.rel (0) target = $region17
    $region16: #{tpu_custom_call.1} parent=1 // pred_region
      %s44 = ssub.s32 1024, 1024
      %45 = vsyncadd [#allocation7], %s44
      %s46 = sshll.u32 [#allocation6], 4
      %s47 = int_to_ptr.vmem [resolvable:$true] %s46
      %52 = dma.hbm_to_vmem [thread:$0]  %s3, 1024, %s47, [#allocation7], 256, 256, 16
    $region17: #{tpu_custom_call.1} parent=1 // pred_fallthru
      _
    // Predicated region
    $region18: #{tpu_custom_call.1} parent=1 // pred_check
      _
    $region19: #{tpu_custom_call.1} parent=1 // pred_check_branch
      %54 = sbr.rel (0) target = $region21
    $region20: #{tpu_custom_call.1} parent=1 // pred_region
      %s56 = ssub.s32 4096, 4096
      %57 = vsyncadd [#allocation7], %s56
      %s58 = sshll.u32 [#allocation8], 4
      %s59 = int_to_ptr.vmem [resolvable:$true] %s58
      %64 = dma.hbm_to_vmem [thread:$0]  %s4, 4096, %s59, [#allocation7], 256, 256, 16
    $region21: #{tpu_custom_call.1} parent=1 // pred_fallthru
      _
    // Predicated region
    $region22: #{tpu_custom_call.1} parent=1 // pred_check
      _
    $region23: #{tpu_custom_call.1} parent=1 // pred_check_branch
      %66 = sbr.rel (0) target = $region25
    $region24: #{tpu_custom_call.1} parent=1 // pred_region
      %s68 = ssub.s32 64, 64
      %69 = vsyncadd [#allocation10], %s68
      %s71 = sshll.u32 [#allocation9], 4
      %s72 = int_to_ptr.vmem [resolvable:$true] %s71
      %74 = dma.hbm_to_vmem [thread:$0]  %s5, 64, %s72, [#allocation10]
    $region25: #{tpu_custom_call.1} parent=1 // pred_fallthru
      _
    // Predicated region
    $region26: #{tpu_custom_call.1} parent=1 // pred_check
      _
    $region27: #{tpu_custom_call.1} parent=1 // pred_check_branch
      %76 = sbr.rel (0) target = $region29
    $region28: #{tpu_custom_call.1} parent=1 // pred_region
      %s78 = ssub.s32 86016, 86016
      %79 = vsyncadd [#allocation10], %s78
      %s80 = sshll.u32 [#allocation11], 4
      %s81 = int_to_ptr.vmem [resolvable:$true] %s80
      %86 = dma.hbm_to_vmem [thread:$0]  %s6, 86016, %s81, [#allocation10], 384, 384, 24
    $region29: #{tpu_custom_call.1} parent=1 // pred_fallthru
      _
    // Predicated region
    $region30: #{tpu_custom_call.1} parent=1 // pred_check
      _
    $region31: #{tpu_custom_call.1} parent=1 // pred_check_branch
      %88 = sbr.rel (0) target = $region33
    $region32: #{tpu_custom_call.1} parent=1 // pred_region
      %s90 = ssub.s32 768, 768
      %91 = vsyncadd [#allocation13], %s90
      %s93 = sshll.u32 [#allocation12], 4
      %s94 = int_to_ptr.vmem [resolvable:$true] %s93
      %96 = dma.hbm_to_vmem [thread:$0]  %s7, 768, %s94, [#allocation13]
    $region33: #{tpu_custom_call.1} parent=1 // pred_fallthru
      _
    // Predicated region
    $region34: #{tpu_custom_call.1} parent=1 // pred_check
      _
    $region35: #{tpu_custom_call.1} parent=1 // pred_check_branch
      %98 = sbr.rel (0) target = $region37
    $region36: #{tpu_custom_call.1} parent=1 // pred_region
      %s100 = ssub.s32 2048, 2048
      %101 = vsyncadd [#allocation13], %s100
      %s102 = sshll.u32 [#allocation14], 4
      %s103 = int_to_ptr.vmem [resolvable:$true] %s102
      %108 = dma.hbm_to_vmem [thread:$0]  %s8, 2048, %s103, [#allocation13], 64, 64, 4
    $region37: #{tpu_custom_call.1} parent=1 // pred_fallthru
      _
    // Predicated region
    $region38: #{tpu_custom_call.1} parent=1 // pred_check
      _
    $region39: #{tpu_custom_call.1} parent=1 // pred_check_branch
      %110 = sbr.rel (0) target = $region41
    $region40: #{tpu_custom_call.1} parent=1 // pred_region
      %s112 = ssub.s32 16, 16
      %113 = vsyncadd [#allocation16], %s112
      %s115 = sshll.u32 [#allocation15], 4
      %s116 = int_to_ptr.vmem [resolvable:$true] %s115
      %118 = dma.hbm_to_vmem [thread:$0]  %s9, 16, %s116, [#allocation16]
    $region41: #{tpu_custom_call.1} parent=1 // pred_fallthru
      _
    // Predicated region
    $region42: #{tpu_custom_call.1} parent=1 // pred_check
      _
    $region43: #{tpu_custom_call.1} parent=1 // pred_check_branch
      %120 = sbr.rel (0) target = $region45
    $region44: #{tpu_custom_call.1} parent=1 // pred_region
      %121 = dma.done [#allocation4], 768
    $region45: #{tpu_custom_call.1} parent=1 // pred_fallthru
      _
    // Predicated region
    $region46: #{tpu_custom_call.1} parent=1 // pred_check
      _
    $region47: #{tpu_custom_call.1} parent=1 // pred_check_branch
      %123 = sbr.rel (0) target = $region49
    $region48: #{tpu_custom_call.1} parent=1 // pred_region
      %124 = dma.done [#allocation7], 1024
    $region49: #{tpu_custom_call.1} parent=1 // pred_fallthru
      _
    // Predicated region
    $region50: #{tpu_custom_call.1} parent=1 // pred_check
      _
    $region51: #{tpu_custom_call.1} parent=1 // pred_check_branch
      %126 = sbr.rel (0) target = $region53
    $region52: #{tpu_custom_call.1} parent=1 // pred_region
      %127 = dma.done [#allocation7], 4096
    $region53: #{tpu_custom_call.1} parent=1 // pred_fallthru
      _
    // Predicated region
    $region54: #{tpu_custom_call.1} parent=1 // pred_check
      _
    $region55: #{tpu_custom_call.1} parent=1 // pred_check_branch
      %129 = sbr.rel (0) target = $region57
    $region56: #{tpu_custom_call.1} parent=1 // pred_region
      %130 = dma.done [#allocation10], 64
    $region57: #{tpu_custom_call.1} parent=1 // pred_fallthru
      _
    // Predicated region
    $region58: #{tpu_custom_call.1} parent=1 // pred_check
      _
    $region59: #{tpu_custom_call.1} parent=1 // pred_check_branch
      %132 = sbr.rel (0) target = $region61
    $region60: #{tpu_custom_call.1} parent=1 // pred_region
      %133 = dma.done [#allocation10], 86016
    $region61: #{tpu_custom_call.1} parent=1 // pred_fallthru
      _
    // Predicated region
    $region62: #{tpu_custom_call.1} parent=1 // pred_check
      _
    $region63: #{tpu_custom_call.1} parent=1 // pred_check_branch
      %135 = sbr.rel (0) target = $region65
    $region64: #{tpu_custom_call.1} parent=1 // pred_region
      %136 = dma.done [#allocation13], 768
    $region65: #{tpu_custom_call.1} parent=1 // pred_fallthru
      _
    // Predicated region
    $region66: #{tpu_custom_call.1} parent=1 // pred_check
      _
    $region67: #{tpu_custom_call.1} parent=1 // pred_check_branch
      %138 = sbr.rel (0) target = $region69
    $region68: #{tpu_custom_call.1} parent=1 // pred_region
      %139 = dma.done [#allocation13], 2048
    $region69: #{tpu_custom_call.1} parent=1 // pred_fallthru
      _
    // Predicated region
    $region70: #{tpu_custom_call.1} parent=1 // pred_check
      _
    $region71: #{tpu_custom_call.1} parent=1 // pred_check_branch
      %141 = sbr.rel (0) target = $region73
    $region72: #{tpu_custom_call.1} parent=1 // pred_region
      %142 = dma.done [#allocation16], 16
    $region73: #{tpu_custom_call.1} parent=1 // pred_fallthru
      _
    %v144 = vld [vmem:[#allocation3] sm:$0xff]
    %v145 = vld [vmem:[#allocation3 + $0x8] sm:$0xff]
    %v146 = vld [vmem:[#allocation3 + $0x10] sm:$0xff]
    %v147 = vld [vmem:[#allocation3 + $0x18] sm:$0xff]
    %v148 = vld [vmem:[#allocation3 + $0x20] sm:$0xff]
    %v149 = vld [vmem:[#allocation3 + $0x28] sm:$0xff]
    %v150 = vld [vmem:[#allocation6] sm:$0xff]
    %v151 = vld [vmem:[#allocation6 + $0x8] sm:$0xff]
    %v152 = vld [vmem:[#allocation6 + $0x10] sm:$0xff]
    %v153 = vld [vmem:[#allocation6 + $0x18] sm:$0xff]
    %v154 = vld [vmem:[#allocation6 + $0x20] sm:$0xff]
    %v155 = vld [vmem:[#allocation6 + $0x28] sm:$0xff]
    %v156 = vld [vmem:[#allocation6 + $0x30] sm:$0xff]
    %v157 = vld [vmem:[#allocation6 + $0x38] sm:$0xff]
    %v158 = vld [vmem:[%s1] sm:$0xff]
    %v159 = vlaneseq
    %v160 = vand.u32 %v159, 127
    %161 = vset.pattern.permute.xlu0 0
    %162 = vperm.xlu0 %161, %v158
    %v163 = vpop.permute.xlu0 %162
    %vm164 = vcmp.eq.s32.totalorder %v160, %v163
    %v165 = vsel %vm164, 1, 0
    %v166 = vcvt.s32.f32 %v165
    %v167 = vld [vmem:[#allocation8] sm:$0xff]
    %v168 = vld [vmem:[#allocation8 + $0x8] sm:$0xff]
    %v169 = vld [vmem:[#allocation8 + $0x10] sm:$0xff]
    %v170 = vld [vmem:[#allocation8 + $0x18] sm:$0xff]
    %v171 = vld [vmem:[#allocation8 + $0x20] sm:$0xff]
    %v172 = vld [vmem:[#allocation8 + $0x28] sm:$0xff]
    %v173 = vld [vmem:[#allocation8 + $0x30] sm:$0xff]
    %v174 = vld [vmem:[#allocation8 + $0x38] sm:$0xff]
    %v175 = vld [vmem:[#allocation8 + $0x40] sm:$0xff]
    %v176 = vld [vmem:[#allocation8 + $0x48] sm:$0xff]
    %v177 = vld [vmem:[#allocation8 + $0x50] sm:$0xff]
    %v178 = vld [vmem:[#allocation8 + $0x58] sm:$0xff]
    %v179 = vld [vmem:[#allocation8 + $0x60] sm:$0xff]
    %v180 = vld [vmem:[#allocation8 + $0x68] sm:$0xff]
    %v181 = vld [vmem:[#allocation8 + $0x70] sm:$0xff]
    %v182 = vld [vmem:[#allocation8 + $0x78] sm:$0xff]
    %v183 = vld [vmem:[#allocation8 + $0x80] sm:$0xff]
    %v184 = vld [vmem:[#allocation8 + $0x88] sm:$0xff]
    %v185 = vld [vmem:[#allocation8 + $0x90] sm:$0xff]
    %v186 = vld [vmem:[#allocation8 + $0x98] sm:$0xff]
    %v187 = vld [vmem:[#allocation8 + $0xa0] sm:$0xff]
    %v188 = vld [vmem:[#allocation8 + $0xa8] sm:$0xff]
    %v189 = vld [vmem:[#allocation8 + $0xb0] sm:$0xff]
    %v190 = vld [vmem:[#allocation8 + $0xb8] sm:$0xff]
    %v191 = vld [vmem:[#allocation8 + $0xc0] sm:$0xff]
    %v192 = vld [vmem:[#allocation8 + $0xc8] sm:$0xff]
    %v193 = vld [vmem:[#allocation8 + $0xd0] sm:$0xff]
    %v194 = vld [vmem:[#allocation8 + $0xd8] sm:$0xff]
    %v195 = vld [vmem:[#allocation8 + $0xe0] sm:$0xff]
    %v196 = vld [vmem:[#allocation8 + $0xe8] sm:$0xff]
    %v197 = vld [vmem:[#allocation8 + $0xf0] sm:$0xff]
    %v198 = vld [vmem:[#allocation8 + $0xf8] sm:$0xff]
    %199 = vmatprep.subr.mxu0 %v168
    %200 = vmatpush1.msra.mxu0 %v167
    %201 = vmatprep.subr.mxu0 %v170
    %202 = vmatpush1.msra.mxu0 %v169
    %203 = vmatprep.subr.mxu0 %v172
    %204 = vmatpush1.msra.mxu0 %v171
    %205 = vmatprep.subr.mxu0 %v174
    %206 = vmatpush1.msra.mxu0 %v173
    %207 = vmatprep.subr.mxu0 %v176
    %208 = vmatpush1.msra.mxu0 %v175
    %209 = vmatprep.subr.mxu0 %v178
    %210 = vmatpush1.msra.mxu0 %v177
    %211 = vmatprep.subr.mxu0 %v180
    %212 = vmatpush1.msra.mxu0 %v179
    %213 = vmatprep.subr.mxu0 %v182
    %214 = vmatpush1.msra.mxu0 %v181
    %215 = vmatprep.subr.mxu0 %v184
    %216 = vmatpush1.msra.mxu0 %v183
    %217 = vmatprep.subr.mxu0 %v186
    %218 = vmatpush1.msra.mxu0 %v185
    %219 = vmatprep.subr.mxu0 %v188
    %220 = vmatpush1.msra.mxu0 %v187
    %221 = vmatprep.subr.mxu0 %v190
    %222 = vmatpush1.msra.mxu0 %v189
    %223 = vmatprep.subr.mxu0 %v192
    %224 = vmatpush1.msra.mxu0 %v191
    %225 = vmatprep.subr.mxu0 %v194
    %226 = vmatpush1.msra.mxu0 %v193
    %227 = vmatprep.subr.mxu0 %v196
    %228 = vmatpush1.msra.mxu0 %v195
    %229 = vmatprep.subr.mxu0 %v198
    %230 = vmatpush1.msra.mxu0 %v197
    %231 = vmatprep.subr.mxu0 0.0
    %232 = vmatpush1.msra.mxu0 0.0
    %233 = vmatprep.subr.mxu0 0.0
    %234 = vmatpush1.msra.mxu0 0.0
    %235 = vmatprep.subr.mxu0 0.0
    %236 = vmatpush1.msra.mxu0 0.0
    %237 = vmatprep.subr.mxu0 0.0
    %238 = vmatpush1.msra.mxu0 0.0
    %239 = vmatprep.subr.mxu0 0.0
    %240 = vmatpush1.msra.mxu0 0.0
    %241 = vmatprep.subr.mxu0 0.0
    %242 = vmatpush1.msra.mxu0 0.0
    %243 = vmatprep.subr.mxu0 0.0
    %244 = vmatpush1.msra.mxu0 0.0
    %245 = vmatprep.subr.mxu0 0.0
    %246 = vmatpush1.msra.mxu0 0.0
    %247 = vmatprep.subr.mxu0 0.0
    %248 = vmatpush1.msra.mxu0 0.0
    %249 = vmatprep.subr.mxu0 0.0
    %250 = vmatpush1.msra.mxu0 0.0
    %251 = vmatprep.subr.mxu0 0.0
    %252 = vmatpush1.msra.mxu0 0.0
    %253 = vmatprep.subr.mxu0 0.0
    %254 = vmatpush1.msra.mxu0 0.0
    %255 = vmatprep.subr.mxu0 0.0
    %256 = vmatpush1.msra.mxu0 0.0
    %257 = vmatprep.subr.mxu0 0.0
    %258 = vmatpush1.msra.mxu0 0.0
    %259 = vmatprep.subr.mxu0 0.0
    %260 = vmatpush1.msra.mxu0 0.0
    %261 = vmatprep.subr.mxu0 0.0
    %262 = vmatpush1.msra.mxu0 0.0
    %263 = vmatprep.mubr.f32.mxu0 0.0
    %264 = vmatmul.mubr.f32.gmra.mrb[0].mxu0 %v166
    %v265 = vpop.f32.mrb[0].mxu0
    %v266 = vadd.f32 0.0, %v265
    %v267 = vpop.f32.mrb[0].mxu0
    %v268 = vadd.f32 0.0, %v267
    %269 = vdwg.mxu0
    %v270 = vpack.c.bf16 %v144, %v144
    %v271 = vpack.c.bf16 %v145, %v145
    %v272 = vpack.c.bf16 %v146, %v146
    %v273 = vpack.c.bf16 %v147, %v147
    %v274 = vpack.c.bf16 %v148, %v148
    %v275 = vpack.c.bf16 %v149, %v149
    %v276 = vld [vmem:[#allocation12] sm:$0x3f]
    %v277 = vld [vmem:[#allocation12 + $0x8] sm:$0x3f]
    %v278 = vld [vmem:[#allocation12 + $0x10] sm:$0x3f]
    %v279 = vld [vmem:[#allocation12 + $0x18] sm:$0x3f]
    %v280 = vld [vmem:[#allocation12 + $0x20] sm:$0x3f]
    %v281 = vld [vmem:[#allocation12 + $0x28] sm:$0x3f]
    %s282 = scalar_lea.vmem [#allocation11], 1536
    %v283 = vld [vmem:[%s282] sm:$0xff]
    %v284 = vld [vmem:[%s282 + $0x8] sm:$0xff]
    %v285 = vld [vmem:[%s282 + $0x10] sm:$0xff]
    %v286 = vld [vmem:[%s282 + $0x18] sm:$0xff]
    %v287 = vld [vmem:[%s282 + $0x20] sm:$0xff]
    %v288 = vld [vmem:[%s282 + $0x28] sm:$0xff]
    %v289 = vld [vmem:[%s282 + $0x30] sm:$0xff]
    %v290 = vld [vmem:[%s282 + $0x38] sm:$0xff]
    %v291 = vld [vmem:[%s282 + $0x40] sm:$0xff]
    %v292 = vld [vmem:[%s282 + $0x48] sm:$0xff]
    %v293 = vld [vmem:[%s282 + $0x50] sm:$0xff]
    %v294 = vld [vmem:[%s282 + $0x58] sm:$0xff]
    %v295 = vld [vmem:[%s282 + $0x60] sm:$0xff]
    %v296 = vld [vmem:[%s282 + $0x68] sm:$0xff]
    %v297 = vld [vmem:[%s282 + $0x70] sm:$0xff]
    %v298 = vld [vmem:[%s282 + $0x78] sm:$0xff]
    %v299 = vld [vmem:[%s282 + $0x80] sm:$0xff]
    %v300 = vld [vmem:[%s282 + $0x88] sm:$0xff]
    %v301 = vld [vmem:[%s282 + $0x90] sm:$0xff]
    %v302 = vld [vmem:[%s282 + $0x98] sm:$0xff]
    %v303 = vld [vmem:[%s282 + $0xa0] sm:$0xff]
    %v304 = vld [vmem:[%s282 + $0xa8] sm:$0xff]
    %v305 = vld [vmem:[%s282 + $0xb0] sm:$0xff]
    %v306 = vld [vmem:[%s282 + $0xb8] sm:$0xff]
    %v307 = vld [vmem:[%s282 + $0xc0] sm:$0xff]
    %v308 = vld [vmem:[%s282 + $0xc8] sm:$0xff]
    %v309 = vld [vmem:[%s282 + $0xd0] sm:$0xff]
    %v310 = vld [vmem:[%s282 + $0xd8] sm:$0xff]
    %v311 = vld [vmem:[%s282 + $0xe0] sm:$0xff]
    %v312 = vld [vmem:[%s282 + $0xe8] sm:$0xff]
    %v313 = vld [vmem:[%s282 + $0xf0] sm:$0xff]
    %v314 = vld [vmem:[%s282 + $0xf8] sm:$0xff]
    %v315 = vld [vmem:[%s282 + $0x100] sm:$0xff]
    %v316 = vld [vmem:[%s282 + $0x108] sm:$0xff]
    %v317 = vld [vmem:[%s282 + $0x110] sm:$0xff]
    %v318 = vld [vmem:[%s282 + $0x118] sm:$0xff]
    %v319 = vld [vmem:[%s282 + $0x120] sm:$0xff]
    %v320 = vld [vmem:[%s282 + $0x128] sm:$0xff]
    %v321 = vld [vmem:[%s282 + $0x130] sm:$0xff]
    %v322 = vld [vmem:[%s282 + $0x138] sm:$0xff]
    %v323 = vld [vmem:[%s282 + $0x140] sm:$0xff]
    %v324 = vld [vmem:[%s282 + $0x148] sm:$0xff]
    %v325 = vld [vmem:[%s282 + $0x150] sm:$0xff]
    %v326 = vld [vmem:[%s282 + $0x158] sm:$0xff]
    %v327 = vld [vmem:[%s282 + $0x160] sm:$0xff]
    %v328 = vld [vmem:[%s282 + $0x168] sm:$0xff]
    %v329 = vld [vmem:[%s282 + $0x170] sm:$0xff]
    %v330 = vld [vmem:[%s282 + $0x178] sm:$0xff]
    %v331 = vld [vmem:[%s282 + $0x180] sm:$0xff]
    %v332 = vld [vmem:[%s282 + $0x188] sm:$0xff]
    %v333 = vld [vmem:[%s282 + $0x190] sm:$0xff]
    %v334 = vld [vmem:[%s282 + $0x198] sm:$0xff]
    %v335 = vld [vmem:[%s282 + $0x1a0] sm:$0xff]
    %v336 = vld [vmem:[%s282 + $0x1a8] sm:$0xff]
    %v337 = vld [vmem:[%s282 + $0x1b0] sm:$0xff]
    %v338 = vld [vmem:[%s282 + $0x1b8] sm:$0xff]
    %v339 = vld [vmem:[%s282 + $0x1c0] sm:$0xff]
    %v340 = vld [vmem:[%s282 + $0x1c8] sm:$0xff]
    %v341 = vld [vmem:[%s282 + $0x1d0] sm:$0xff]
    %v342 = vld [vmem:[%s282 + $0x1d8] sm:$0xff]
    %v343 = vld [vmem:[%s282 + $0x1e0] sm:$0xff]
    %v344 = vld [vmem:[%s282 + $0x1e8] sm:$0xff]
    %v345 = vld [vmem:[%s282 + $0x1f0] sm:$0xff]
    %v346 = vld [vmem:[%s282 + $0x1f8] sm:$0xff]
    %v347 = vld [vmem:[%s282 + $0x200] sm:$0xff]
    %v348 = vld [vmem:[%s282 + $0x208] sm:$0xff]
    %v349 = vld [vmem:[%s282 + $0x210] sm:$0xff]
    %v350 = vld [vmem:[%s282 + $0x218] sm:$0xff]
    %v351 = vld [vmem:[%s282 + $0x220] sm:$0xff]
    %v352 = vld [vmem:[%s282 + $0x228] sm:$0xff]
    %v353 = vld [vmem:[%s282 + $0x230] sm:$0xff]
    %v354 = vld [vmem:[%s282 + $0x238] sm:$0xff]
    %v355 = vld [vmem:[%s282 + $0x240] sm:$0xff]
    %v356 = vld [vmem:[%s282 + $0x248] sm:$0xff]
    %v357 = vld [vmem:[%s282 + $0x250] sm:$0xff]
    %v358 = vld [vmem:[%s282 + $0x258] sm:$0xff]
    %v359 = vld [vmem:[%s282 + $0x260] sm:$0xff]
    %v360 = vld [vmem:[%s282 + $0x268] sm:$0xff]
    %v361 = vld [vmem:[%s282 + $0x270] sm:$0xff]
    %v362 = vld [vmem:[%s282 + $0x278] sm:$0xff]
    %v363 = vld [vmem:[%s282 + $0x280] sm:$0xff]
    %v364 = vld [vmem:[%s282 + $0x288] sm:$0xff]
    %v365 = vld [vmem:[%s282 + $0x290] sm:$0xff]
    %v366 = vld [vmem:[%s282 + $0x298] sm:$0xff]
    %v367 = vld [vmem:[%s282 + $0x2a0] sm:$0xff]
    %v368 = vld [vmem:[%s282 + $0x2a8] sm:$0xff]
    %v369 = vld [vmem:[%s282 + $0x2b0] sm:$0xff]
    %v370 = vld [vmem:[%s282 + $0x2b8] sm:$0xff]
    %v371 = vld [vmem:[%s282 + $0x2c0] sm:$0xff]
    %v372 = vld [vmem:[%s282 + $0x2c8] sm:$0xff]
    %v373 = vld [vmem:[%s282 + $0x2d0] sm:$0xff]
    %v374 = vld [vmem:[%s282 + $0x2d8] sm:$0xff]
    %v375 = vld [vmem:[%s282 + $0x2e0] sm:$0xff]
    %v376 = vld [vmem:[%s282 + $0x2e8] sm:$0xff]
    %v377 = vld [vmem:[%s282 + $0x2f0] sm:$0xff]
    %v378 = vld [vmem:[%s282 + $0x2f8] sm:$0xff]
    %v379 = vlaneseq
    %v380 = vshrl.u32 %v379, 7
    %v381 = vsub.s32 1, %v380
    %v382 = vrot.slane %v276, %v381
    %v383 = vlaneseq
    %v384 = vshrl.u32 %v383, 7
    %v385 = vsub.s32 1, %v384
    %v386 = vrot.slane %v277, %v385
    %v387 = vlaneseq
    %v388 = vshrl.u32 %v387, 7
    %v389 = vsub.s32 1, %v388
    %v390 = vrot.slane %v278, %v389
    %v391 = vlaneseq
    %v392 = vshrl.u32 %v391, 7
    %v393 = vsub.s32 1, %v392
    %v394 = vrot.slane %v279, %v393
    %v395 = vlaneseq
    %v396 = vshrl.u32 %v395, 7
    %v397 = vsub.s32 1, %v396
    %v398 = vrot.slane %v280, %v397
    %v399 = vlaneseq
    %v400 = vshrl.u32 %v399, 7
    %v401 = vsub.s32 1, %v400
    %v402 = vrot.slane %v281, %v401
    %v499 = vunpack.c.l.b16 %v283
    %v500 = vunpack.c.h.b16 %v283
    %v501 = vunpack.c.l.b16 %v284
    %v502 = vunpack.c.h.b16 %v284
    %v503 = vunpack.c.l.b16 %v285
    %v504 = vunpack.c.h.b16 %v285
    %v505 = vunpack.c.l.b16 %v286
    %v506 = vunpack.c.h.b16 %v286
    %v507 = vunpack.c.l.b16 %v287
    %v508 = vunpack.c.h.b16 %v287
    %v509 = vunpack.c.l.b16 %v288
    %v510 = vunpack.c.h.b16 %v288
    %v511 = vunpack.c.l.b16 %v289
    %v512 = vunpack.c.h.b16 %v289
    %v513 = vunpack.c.l.b16 %v290
    %v514 = vunpack.c.h.b16 %v290
    %v515 = vunpack.c.l.b16 %v291
    %v516 = vunpack.c.h.b16 %v291
    %v517 = vunpack.c.l.b16 %v292
    %v518 = vunpack.c.h.b16 %v292
    %v519 = vunpack.c.l.b16 %v293
    %v520 = vunpack.c.h.b16 %v293
    %v521 = vunpack.c.l.b16 %v294
    %v522 = vunpack.c.h.b16 %v294
    %v523 = vunpack.c.l.b16 %v295
    %v524 = vunpack.c.h.b16 %v295
    %v525 = vunpack.c.l.b16 %v296
    %v526 = vunpack.c.h.b16 %v296
    %v527 = vunpack.c.l.b16 %v297
    %v528 = vunpack.c.h.b16 %v297
    %v529 = vunpack.c.l.b16 %v298
    %v530 = vunpack.c.h.b16 %v298
    %v531 = vunpack.c.l.b16 %v299
    %v532 = vunpack.c.h.b16 %v299
    %v533 = vunpack.c.l.b16 %v300
    %v534 = vunpack.c.h.b16 %v300
    %v535 = vunpack.c.l.b16 %v301
    %v536 = vunpack.c.h.b16 %v301
    %v537 = vunpack.c.l.b16 %v302
    %v538 = vunpack.c.h.b16 %v302
    %v539 = vunpack.c.l.b16 %v303
    %v540 = vunpack.c.h.b16 %v303
    %v541 = vunpack.c.l.b16 %v304
    %v542 = vunpack.c.h.b16 %v304
    %v543 = vunpack.c.l.b16 %v305
    %v544 = vunpack.c.h.b16 %v305
    %v545 = vunpack.c.l.b16 %v306
    %v546 = vunpack.c.h.b16 %v306
    %v547 = vunpack.c.l.b16 %v307
    %v548 = vunpack.c.h.b16 %v307
    %v549 = vunpack.c.l.b16 %v308
    %v550 = vunpack.c.h.b16 %v308
    %v551 = vunpack.c.l.b16 %v309
    %v552 = vunpack.c.h.b16 %v309
    %v553 = vunpack.c.l.b16 %v310
    %v554 = vunpack.c.h.b16 %v310
    %v555 = vunpack.c.l.b16 %v311
    %v556 = vunpack.c.h.b16 %v311
    %v557 = vunpack.c.l.b16 %v312
    %v558 = vunpack.c.h.b16 %v312
    %v559 = vunpack.c.l.b16 %v313
    %v560 = vunpack.c.h.b16 %v313
    %v561 = vunpack.c.l.b16 %v314
    %v562 = vunpack.c.h.b16 %v314
    %v563 = vunpack.c.l.b16 %v315
    %v564 = vunpack.c.h.b16 %v315
    %v565 = vunpack.c.l.b16 %v316
    %v566 = vunpack.c.h.b16 %v316
    %v567 = vunpack.c.l.b16 %v317
    %v568 = vunpack.c.h.b16 %v317
    %v569 = vunpack.c.l.b16 %v318
    %v570 = vunpack.c.h.b16 %v318
    %v571 = vunpack.c.l.b16 %v319
    %v572 = vunpack.c.h.b16 %v319
    %v573 = vunpack.c.l.b16 %v320
    %v574 = vunpack.c.h.b16 %v320
    %v575 = vunpack.c.l.b16 %v321
    %v576 = vunpack.c.h.b16 %v321
    %v577 = vunpack.c.l.b16 %v322
    %v578 = vunpack.c.h.b16 %v322
    %v579 = vunpack.c.l.b16 %v323
    %v580 = vunpack.c.h.b16 %v323
    %v581 = vunpack.c.l.b16 %v324
    %v582 = vunpack.c.h.b16 %v324
    %v583 = vunpack.c.l.b16 %v325
    %v584 = vunpack.c.h.b16 %v325
    %v585 = vunpack.c.l.b16 %v326
    %v586 = vunpack.c.h.b16 %v326
    %v587 = vunpack.c.l.b16 %v327
    %v588 = vunpack.c.h.b16 %v327
    %v589 = vunpack.c.l.b16 %v328
    %v590 = vunpack.c.h.b16 %v328
    %v591 = vunpack.c.l.b16 %v329
    %v592 = vunpack.c.h.b16 %v329
    %v593 = vunpack.c.l.b16 %v330
    %v594 = vunpack.c.h.b16 %v330
    %v595 = vunpack.c.l.b16 %v331
    %v596 = vunpack.c.h.b16 %v331
    %v597 = vunpack.c.l.b16 %v332
    %v598 = vunpack.c.h.b16 %v332
    %v599 = vunpack.c.l.b16 %v333
    %v600 = vunpack.c.h.b16 %v333
    %v601 = vunpack.c.l.b16 %v334
    %v602 = vunpack.c.h.b16 %v334
    %v603 = vunpack.c.l.b16 %v335
    %v604 = vunpack.c.h.b16 %v335
    %v605 = vunpack.c.l.b16 %v336
    %v606 = vunpack.c.h.b16 %v336
    %v607 = vunpack.c.l.b16 %v337
    %v608 = vunpack.c.h.b16 %v337
    %v609 = vunpack.c.l.b16 %v338
    %v610 = vunpack.c.h.b16 %v338
    %v611 = vunpack.c.l.b16 %v339
    %v612 = vunpack.c.h.b16 %v339
    %v613 = vunpack.c.l.b16 %v340
    %v614 = vunpack.c.h.b16 %v340
    %v615 = vunpack.c.l.b16 %v341
    %v616 = vunpack.c.h.b16 %v341
    %v617 = vunpack.c.l.b16 %v342
    %v618 = vunpack.c.h.b16 %v342
    %v619 = vunpack.c.l.b16 %v343
    %v620 = vunpack.c.h.b16 %v343
    %v621 = vunpack.c.l.b16 %v344
    %v622 = vunpack.c.h.b16 %v344
    %v623 = vunpack.c.l.b16 %v345
    %v624 = vunpack.c.h.b16 %v345
    %v625 = vunpack.c.l.b16 %v346
    %v626 = vunpack.c.h.b16 %v346
    %v627 = vunpack.c.l.b16 %v347
    %v628 = vunpack.c.h.b16 %v347
    %v629 = vunpack.c.l.b16 %v348
    %v630 = vunpack.c.h.b16 %v348
    %v631 = vunpack.c.l.b16 %v349
    %v632 = vunpack.c.h.b16 %v349
    %v633 = vunpack.c.l.b16 %v350
    %v634 = vunpack.c.h.b16 %v350
    %v635 = vunpack.c.l.b16 %v351
    %v636 = vunpack.c.h.b16 %v351
    %v637 = vunpack.c.l.b16 %v352
    %v638 = vunpack.c.h.b16 %v352
    %v639 = vunpack.c.l.b16 %v353
    %v640 = vunpack.c.h.b16 %v353
    %v641 = vunpack.c.l.b16 %v354
    %v642 = vunpack.c.h.b16 %v354
    %v643 = vunpack.c.l.b16 %v355
    %v644 = vunpack.c.h.b16 %v355
    %v645 = vunpack.c.l.b16 %v356
    %v646 = vunpack.c.h.b16 %v356
    %v647 = vunpack.c.l.b16 %v357
    %v648 = vunpack.c.h.b16 %v357
    %v649 = vunpack.c.l.b16 %v358
    %v650 = vunpack.c.h.b16 %v358
    %v651 = vunpack.c.l.b16 %v359
    %v652 = vunpack.c.h.b16 %v359
    %v653 = vunpack.c.l.b16 %v360
    %v654 = vunpack.c.h.b16 %v360
    %v655 = vunpack.c.l.b16 %v361
    %v656 = vunpack.c.h.b16 %v361
    %v657 = vunpack.c.l.b16 %v362
    %v658 = vunpack.c.h.b16 %v362
    %v659 = vunpack.c.l.b16 %v363
    %v660 = vunpack.c.h.b16 %v363
    %v661 = vunpack.c.l.b16 %v364
    %v662 = vunpack.c.h.b16 %v364
    %v663 = vunpack.c.l.b16 %v365
    %v664 = vunpack.c.h.b16 %v365
    %v665 = vunpack.c.l.b16 %v366
    %v666 = vunpack.c.h.b16 %v366
    %v667 = vunpack.c.l.b16 %v367
    %v668 = vunpack.c.h.b16 %v367
    %v669 = vunpack.c.l.b16 %v368
    %v670 = vunpack.c.h.b16 %v368
    %v671 = vunpack.c.l.b16 %v369
    %v672 = vunpack.c.h.b16 %v369
    %v673 = vunpack.c.l.b16 %v370
    %v674 = vunpack.c.h.b16 %v370
    %v675 = vunpack.c.l.b16 %v371
    %v676 = vunpack.c.h.b16 %v371
    %v677 = vunpack.c.l.b16 %v372
    %v678 = vunpack.c.h.b16 %v372
    %v679 = vunpack.c.l.b16 %v373
    %v680 = vunpack.c.h.b16 %v373
    %v681 = vunpack.c.l.b16 %v374
    %v682 = vunpack.c.h.b16 %v374
    %v683 = vunpack.c.l.b16 %v375
    %v684 = vunpack.c.h.b16 %v375
    %v685 = vunpack.c.l.b16 %v376
    %v686 = vunpack.c.h.b16 %v376
    %v687 = vunpack.c.l.b16 %v377
    %v688 = vunpack.c.h.b16 %v377
    %v689 = vunpack.c.l.b16 %v378
    %v690 = vunpack.c.h.b16 %v378
    %v691 = vpack.c.b16 %v505, %v499
    %v692 = vpack.c.b16 %v506, %v500
    %v693 = vpack.c.b16 %v507, %v501
    %v694 = vpack.c.b16 %v508, %v502
    %v695 = vpack.c.b16 %v509, %v503
    %v696 = vpack.c.b16 %v510, %v504
    %v697 = vpack.c.b16 %v517, %v511
    %v698 = vpack.c.b16 %v518, %v512
    %v699 = vpack.c.b16 %v519, %v513
    %v700 = vpack.c.b16 %v520, %v514
    %v701 = vpack.c.b16 %v521, %v515
    %v702 = vpack.c.b16 %v522, %v516
    %v703 = vpack.c.b16 %v529, %v523
    %v704 = vpack.c.b16 %v530, %v524
    %v705 = vpack.c.b16 %v531, %v525
    %v706 = vpack.c.b16 %v532, %v526
    %v707 = vpack.c.b16 %v533, %v527
    %v708 = vpack.c.b16 %v534, %v528
    %v709 = vpack.c.b16 %v541, %v535
    %v710 = vpack.c.b16 %v542, %v536
    %v711 = vpack.c.b16 %v543, %v537
    %v712 = vpack.c.b16 %v544, %v538
    %v713 = vpack.c.b16 %v545, %v539
    %v714 = vpack.c.b16 %v546, %v540
    %v715 = vpack.c.b16 %v553, %v547
    %v716 = vpack.c.b16 %v554, %v548
    %v717 = vpack.c.b16 %v555, %v549
    %v718 = vpack.c.b16 %v556, %v550
    %v719 = vpack.c.b16 %v557, %v551
    %v720 = vpack.c.b16 %v558, %v552
    %v721 = vpack.c.b16 %v565, %v559
    %v722 = vpack.c.b16 %v566, %v560
    %v723 = vpack.c.b16 %v567, %v561
    %v724 = vpack.c.b16 %v568, %v562
    %v725 = vpack.c.b16 %v569, %v563
    %v726 = vpack.c.b16 %v570, %v564
    %v727 = vpack.c.b16 %v577, %v571
    %v728 = vpack.c.b16 %v578, %v572
    %v729 = vpack.c.b16 %v579, %v573
    %v730 = vpack.c.b16 %v580, %v574
    %v731 = vpack.c.b16 %v581, %v575
    %v732 = vpack.c.b16 %v582, %v576
    %v733 = vpack.c.b16 %v589, %v583
    %v734 = vpack.c.b16 %v590, %v584
    %v735 = vpack.c.b16 %v591, %v585
    %v736 = vpack.c.b16 %v592, %v586
    %v737 = vpack.c.b16 %v593, %v587
    %v738 = vpack.c.b16 %v594, %v588
    %v739 = vpack.c.b16 %v601, %v595
    %v740 = vpack.c.b16 %v602, %v596
    %v741 = vpack.c.b16 %v603, %v597
    %v742 = vpack.c.b16 %v604, %v598
    %v743 = vpack.c.b16 %v605, %v599
    %v744 = vpack.c.b16 %v606, %v600
    %v745 = vpack.c.b16 %v613, %v607
    %v746 = vpack.c.b16 %v614, %v608
    %v747 = vpack.c.b16 %v615, %v609
    %v748 = vpack.c.b16 %v616, %v610
    %v749 = vpack.c.b16 %v617, %v611
    %v750 = vpack.c.b16 %v618, %v612
    %v751 = vpack.c.b16 %v625, %v619
    %v752 = vpack.c.b16 %v626, %v620
    %v753 = vpack.c.b16 %v627, %v621
    %v754 = vpack.c.b16 %v628, %v622
    %v755 = vpack.c.b16 %v629, %v623
    %v756 = vpack.c.b16 %v630, %v624
    %v757 = vpack.c.b16 %v637, %v631
    %v758 = vpack.c.b16 %v638, %v632
    %v759 = vpack.c.b16 %v639, %v633
    %v760 = vpack.c.b16 %v640, %v634
    %v761 = vpack.c.b16 %v641, %v635
    %v762 = vpack.c.b16 %v642, %v636
    %v763 = vpack.c.b16 %v649, %v643
    %v764 = vpack.c.b16 %v650, %v644
    %v765 = vpack.c.b16 %v651, %v645
    %v766 = vpack.c.b16 %v652, %v646
    %v767 = vpack.c.b16 %v653, %v647
    %v768 = vpack.c.b16 %v654, %v648
    %v769 = vpack.c.b16 %v661, %v655
    %v770 = vpack.c.b16 %v662, %v656
    %v771 = vpack.c.b16 %v663, %v657
    %v772 = vpack.c.b16 %v664, %v658
    %v773 = vpack.c.b16 %v665, %v659
    %v774 = vpack.c.b16 %v666, %v660
    %v775 = vpack.c.b16 %v673, %v667
    %v776 = vpack.c.b16 %v674, %v668
    %v777 = vpack.c.b16 %v675, %v669
    %v778 = vpack.c.b16 %v676, %v670
    %v779 = vpack.c.b16 %v677, %v671
    %v780 = vpack.c.b16 %v678, %v672
    %v781 = vpack.c.b16 %v685, %v679
    %v782 = vpack.c.b16 %v686, %v680
    %v783 = vpack.c.b16 %v687, %v681
    %v784 = vpack.c.b16 %v688, %v682
    %v785 = vpack.c.b16 %v689, %v683
    %v786 = vpack.c.b16 %v690, %v684
    %883 = vmatprep.subr.bf16.mxu0 %v692
    %884 = vmatpush1.bf16.msra.mxu0 %v691
    %885 = vmatprep.subr.bf16.mxu0 %v698
    %886 = vmatpush1.bf16.msra.mxu0 %v697
    %887 = vmatprep.subr.bf16.mxu0 %v704
    %888 = vmatpush1.bf16.msra.mxu0 %v703
    %889 = vmatprep.subr.bf16.mxu0 %v710
    %890 = vmatpush1.bf16.msra.mxu0 %v709
    %891 = vmatprep.subr.bf16.mxu0 %v716
    %892 = vmatpush1.bf16.msra.mxu0 %v715
    %893 = vmatprep.subr.bf16.mxu0 %v722
    %894 = vmatpush1.bf16.msra.mxu0 %v721
    %895 = vmatprep.subr.bf16.mxu0 %v728
    %896 = vmatpush1.bf16.msra.mxu0 %v727
    %897 = vmatprep.subr.bf16.mxu0 %v734
    %898 = vmatpush1.bf16.msra.mxu0 %v733
    %899 = vmatprep.subr.bf16.mxu0 %v740
    %900 = vmatpush1.bf16.msra.mxu0 %v739
    %901 = vmatprep.subr.bf16.mxu0 %v746
    %902 = vmatpush1.bf16.msra.mxu0 %v745
    %903 = vmatprep.subr.bf16.mxu0 %v752
    %904 = vmatpush1.bf16.msra.mxu0 %v751
    %905 = vmatprep.subr.bf16.mxu0 %v758
    %906 = vmatpush1.bf16.msra.mxu0 %v757
    %907 = vmatprep.subr.bf16.mxu0 %v764
    %908 = vmatpush1.bf16.msra.mxu0 %v763
    %909 = vmatprep.subr.bf16.mxu0 %v770
    %910 = vmatpush1.bf16.msra.mxu0 %v769
    %911 = vmatprep.subr.bf16.mxu0 %v776
    %912 = vmatpush1.bf16.msra.mxu0 %v775
    %913 = vmatprep.subr.bf16.mxu0 %v782
    %914 = vmatpush1.bf16.msra.mxu0 %v781
    %915 = vmatprep.mubr.bf16.mxu0 %v271
    %916 = vmatmul.mubr.bf16.gmra.mrb[0].mxu0 %v270
    %v917 = vpop.f32.mrb[0].mxu0
    %v918 = vadd.f32 %v382, %v917
    %v919 = vpop.f32.mrb[0].mxu0
    %v920 = vadd.f32 %v386, %v919
    %v921 = vpop.f32.mrb[0].mxu0
    %v922 = vpop.f32.mrb[0].mxu0
    %923 = vdwg.mxu0
    %924 = vmatprep.subr.bf16.mxu0 %v694
    %925 = vmatpush1.bf16.msra.mxu0 %v693
    %926 = vmatprep.subr.bf16.mxu0 %v700
    %927 = vmatpush1.bf16.msra.mxu0 %v699
    %928 = vmatprep.subr.bf16.mxu0 %v706
    %929 = vmatpush1.bf16.msra.mxu0 %v705
    %930 = vmatprep.subr.bf16.mxu0 %v712
    %931 = vmatpush1.bf16.msra.mxu0 %v711
    %932 = vmatprep.subr.bf16.mxu0 %v718
    %933 = vmatpush1.bf16.msra.mxu0 %v717
    %934 = vmatprep.subr.bf16.mxu0 %v724
    %935 = vmatpush1.bf16.msra.mxu0 %v723
    %936 = vmatprep.subr.bf16.mxu0 %v730
    %937 = vmatpush1.bf16.msra.mxu0 %v729
    %938 = vmatprep.subr.bf16.mxu0 %v736
    %939 = vmatpush1.bf16.msra.mxu0 %v735
    %940 = vmatprep.subr.bf16.mxu0 %v742
    %941 = vmatpush1.bf16.msra.mxu0 %v741
    %942 = vmatprep.subr.bf16.mxu0 %v748
    %943 = vmatpush1.bf16.msra.mxu0 %v747
    %944 = vmatprep.subr.bf16.mxu0 %v754
    %945 = vmatpush1.bf16.msra.mxu0 %v753
    %946 = vmatprep.subr.bf16.mxu0 %v760
    %947 = vmatpush1.bf16.msra.mxu0 %v759
    %948 = vmatprep.subr.bf16.mxu0 %v766
    %949 = vmatpush1.bf16.msra.mxu0 %v765
    %950 = vmatprep.subr.bf16.mxu0 %v772
    %951 = vmatpush1.bf16.msra.mxu0 %v771
    %952 = vmatprep.subr.bf16.mxu0 %v778
    %953 = vmatpush1.bf16.msra.mxu0 %v777
    %954 = vmatprep.subr.bf16.mxu0 %v784
    %955 = vmatpush1.bf16.msra.mxu0 %v783
    %956 = vmatprep.mubr.bf16.mxu0 %v271
    %957 = vmatmul.mubr.bf16.gmra.mrb[0].mxu0 %v270
    %v958 = vpop.f32.mrb[0].mxu0
    %v959 = vadd.f32 %v390, %v958
    %v960 = vpop.f32.mrb[0].mxu0
    %v961 = vadd.f32 %v394, %v960
    %v962 = vpop.f32.mrb[0].mxu0
    %v963 = vpop.f32.mrb[0].mxu0
    %964 = vdwg.mxu0
    %965 = vmatprep.subr.bf16.mxu0 %v696
    %966 = vmatpush1.bf16.msra.mxu0 %v695
    %967 = vmatprep.subr.bf16.mxu0 %v702
    %968 = vmatpush1.bf16.msra.mxu0 %v701
    %969 = vmatprep.subr.bf16.mxu0 %v708
    %970 = vmatpush1.bf16.msra.mxu0 %v707
    %971 = vmatprep.subr.bf16.mxu0 %v714
    %972 = vmatpush1.bf16.msra.mxu0 %v713
    %973 = vmatprep.subr.bf16.mxu0 %v720
    %974 = vmatpush1.bf16.msra.mxu0 %v719
    %975 = vmatprep.subr.bf16.mxu0 %v726
    %976 = vmatpush1.bf16.msra.mxu0 %v725
    %977 = vmatprep.subr.bf16.mxu0 %v732
    %978 = vmatpush1.bf16.msra.mxu0 %v731
    %979 = vmatprep.subr.bf16.mxu0 %v738
    %980 = vmatpush1.bf16.msra.mxu0 %v737
    %981 = vmatprep.subr.bf16.mxu0 %v744
    %982 = vmatpush1.bf16.msra.mxu0 %v743
    %983 = vmatprep.subr.bf16.mxu0 %v750
    %984 = vmatpush1.bf16.msra.mxu0 %v749
    %985 = vmatprep.subr.bf16.mxu0 %v756
    %986 = vmatpush1.bf16.msra.mxu0 %v755
    %987 = vmatprep.subr.bf16.mxu0 %v762
    %988 = vmatpush1.bf16.msra.mxu0 %v761
    %989 = vmatprep.subr.bf16.mxu0 %v768
    %990 = vmatpush1.bf16.msra.mxu0 %v767
    %991 = vmatprep.subr.bf16.mxu0 %v774
    %992 = vmatpush1.bf16.msra.mxu0 %v773
    %993 = vmatprep.subr.bf16.mxu0 %v780
    %994 = vmatpush1.bf16.msra.mxu0 %v779
    %995 = vmatprep.subr.bf16.mxu0 %v786
    %996 = vmatpush1.bf16.msra.mxu0 %v785
    %997 = vmatprep.mubr.bf16.mxu0 %v271
    %998 = vmatmul.mubr.bf16.gmra.mrb[0].mxu0 %v270
    %v999 = vpop.f32.mrb[0].mxu0
    %v1000 = vadd.f32 %v398, %v999
    %v1001 = vpop.f32.mrb[0].mxu0
    %v1002 = vadd.f32 %v402, %v1001
    %v1003 = vpop.f32.mrb[0].mxu0
    %v1004 = vpop.f32.mrb[0].mxu0
    %1005 = vdwg.mxu0
    %s1006 = scalar_lea.vmem [#allocation11], 3072
    %v1007 = vld [vmem:[%s1006] sm:$0xff]
    %v1008 = vld [vmem:[%s1006 + $0x8] sm:$0xff]
    %v1009 = vld [vmem:[%s1006 + $0x10] sm:$0xff]
    %v1010 = vld [vmem:[%s1006 + $0x18] sm:$0xff]
    %v1011 = vld [vmem:[%s1006 + $0x20] sm:$0xff]
    %v1012 = vld [vmem:[%s1006 + $0x28] sm:$0xff]
    %v1013 = vld [vmem:[%s1006 + $0x30] sm:$0xff]
    %v1014 = vld [vmem:[%s1006 + $0x38] sm:$0xff]
    %v1015 = vld [vmem:[%s1006 + $0x40] sm:$0xff]
    %v1016 = vld [vmem:[%s1006 + $0x48] sm:$0xff]
    %v1017 = vld [vmem:[%s1006 + $0x50] sm:$0xff]
    %v1018 = vld [vmem:[%s1006 + $0x58] sm:$0xff]
    %v1019 = vld [vmem:[%s1006 + $0x60] sm:$0xff]
    %v1020 = vld [vmem:[%s1006 + $0x68] sm:$0xff]
    %v1021 = vld [vmem:[%s1006 + $0x70] sm:$0xff]
    %v1022 = vld [vmem:[%s1006 + $0x78] sm:$0xff]
    %v1023 = vld [vmem:[%s1006 + $0x80] sm:$0xff]
    %v1024 = vld [vmem:[%s1006 + $0x88] sm:$0xff]
    %v1025 = vld [vmem:[%s1006 + $0x90] sm:$0xff]
    %v1026 = vld [vmem:[%s1006 + $0x98] sm:$0xff]
    %v1027 = vld [vmem:[%s1006 + $0xa0] sm:$0xff]
    %v1028 = vld [vmem:[%s1006 + $0xa8] sm:$0xff]
    %v1029 = vld [vmem:[%s1006 + $0xb0] sm:$0xff]
    %v1030 = vld [vmem:[%s1006 + $0xb8] sm:$0xff]
    %v1031 = vld [vmem:[%s1006 + $0xc0] sm:$0xff]
    %v1032 = vld [vmem:[%s1006 + $0xc8] sm:$0xff]
    %v1033 = vld [vmem:[%s1006 + $0xd0] sm:$0xff]
    %v1034 = vld [vmem:[%s1006 + $0xd8] sm:$0xff]
    %v1035 = vld [vmem:[%s1006 + $0xe0] sm:$0xff]
    %v1036 = vld [vmem:[%s1006 + $0xe8] sm:$0xff]
    %v1037 = vld [vmem:[%s1006 + $0xf0] sm:$0xff]
    %v1038 = vld [vmem:[%s1006 + $0xf8] sm:$0xff]
    %v1039 = vld [vmem:[%s1006 + $0x100] sm:$0xff]
    %v1040 = vld [vmem:[%s1006 + $0x108] sm:$0xff]
    %v1041 = vld [vmem:[%s1006 + $0x110] sm:$0xff]
    %v1042 = vld [vmem:[%s1006 + $0x118] sm:$0xff]
    %v1043 = vld [vmem:[%s1006 + $0x120] sm:$0xff]
    %v1044 = vld [vmem:[%s1006 + $0x128] sm:$0xff]
    %v1045 = vld [vmem:[%s1006 + $0x130] sm:$0xff]
    %v1046 = vld [vmem:[%s1006 + $0x138] sm:$0xff]
    %v1047 = vld [vmem:[%s1006 + $0x140] sm:$0xff]
    %v1048 = vld [vmem:[%s1006 + $0x148] sm:$0xff]
    %v1049 = vld [vmem:[%s1006 + $0x150] sm:$0xff]
    %v1050 = vld [vmem:[%s1006 + $0x158] sm:$0xff]
    %v1051 = vld [vmem:[%s1006 + $0x160] sm:$0xff]
    %v1052 = vld [vmem:[%s1006 + $0x168] sm:$0xff]
    %v1053 = vld [vmem:[%s1006 + $0x170] sm:$0xff]
    %v1054 = vld [vmem:[%s1006 + $0x178] sm:$0xff]
    %v1055 = vld [vmem:[%s1006 + $0x180] sm:$0xff]
    %v1056 = vld [vmem:[%s1006 + $0x188] sm:$0xff]
    %v1057 = vld [vmem:[%s1006 + $0x190] sm:$0xff]
    %v1058 = vld [vmem:[%s1006 + $0x198] sm:$0xff]
    %v1059 = vld [vmem:[%s1006 + $0x1a0] sm:$0xff]
    %v1060 = vld [vmem:[%s1006 + $0x1a8] sm:$0xff]
    %v1061 = vld [vmem:[%s1006 + $0x1b0] sm:$0xff]
    %v1062 = vld [vmem:[%s1006 + $0x1b8] sm:$0xff]
    %v1063 = vld [vmem:[%s1006 + $0x1c0] sm:$0xff]
    %v1064 = vld [vmem:[%s1006 + $0x1c8] sm:$0xff]
    %v1065 = vld [vmem:[%s1006 + $0x1d0] sm:$0xff]
    %v1066 = vld [vmem:[%s1006 + $0x1d8] sm:$0xff]
    %v1067 = vld [vmem:[%s1006 + $0x1e0] sm:$0xff]
    %v1068 = vld [vmem:[%s1006 + $0x1e8] sm:$0xff]
    %v1069 = vld [vmem:[%s1006 + $0x1f0] sm:$0xff]
    %v1070 = vld [vmem:[%s1006 + $0x1f8] sm:$0xff]
    %v1071 = vld [vmem:[%s1006 + $0x200] sm:$0xff]
    %v1072 = vld [vmem:[%s1006 + $0x208] sm:$0xff]
    %v1073 = vld [vmem:[%s1006 + $0x210] sm:$0xff]
    %v1074 = vld [vmem:[%s1006 + $0x218] sm:$0xff]
    %v1075 = vld [vmem:[%s1006 + $0x220] sm:$0xff]
    %v1076 = vld [vmem:[%s1006 + $0x228] sm:$0xff]
    %v1077 = vld [vmem:[%s1006 + $0x230] sm:$0xff]
    %v1078 = vld [vmem:[%s1006 + $0x238] sm:$0xff]
    %v1079 = vld [vmem:[%s1006 + $0x240] sm:$0xff]
    %v1080 = vld [vmem:[%s1006 + $0x248] sm:$0xff]
    %v1081 = vld [vmem:[%s1006 + $0x250] sm:$0xff]
    %v1082 = vld [vmem:[%s1006 + $0x258] sm:$0xff]
    %v1083 = vld [vmem:[%s1006 + $0x260] sm:$0xff]
    %v1084 = vld [vmem:[%s1006 + $0x268] sm:$0xff]
    %v1085 = vld [vmem:[%s1006 + $0x270] sm:$0xff]
    %v1086 = vld [vmem:[%s1006 + $0x278] sm:$0xff]
    %v1087 = vld [vmem:[%s1006 + $0x280] sm:$0xff]
    %v1088 = vld [vmem:[%s1006 + $0x288] sm:$0xff]
    %v1089 = vld [vmem:[%s1006 + $0x290] sm:$0xff]
    %v1090 = vld [vmem:[%s1006 + $0x298] sm:$0xff]
    %v1091 = vld [vmem:[%s1006 + $0x2a0] sm:$0xff]
    %v1092 = vld [vmem:[%s1006 + $0x2a8] sm:$0xff]
    %v1093 = vld [vmem:[%s1006 + $0x2b0] sm:$0xff]
    %v1094 = vld [vmem:[%s1006 + $0x2b8] sm:$0xff]
    %v1095 = vld [vmem:[%s1006 + $0x2c0] sm:$0xff]
    %v1096 = vld [vmem:[%s1006 + $0x2c8] sm:$0xff]
    %v1097 = vld [vmem:[%s1006 + $0x2d0] sm:$0xff]
    %v1098 = vld [vmem:[%s1006 + $0x2d8] sm:$0xff]
    %v1099 = vld [vmem:[%s1006 + $0x2e0] sm:$0xff]
    %v1100 = vld [vmem:[%s1006 + $0x2e8] sm:$0xff]
    %v1101 = vld [vmem:[%s1006 + $0x2f0] sm:$0xff]
    %v1102 = vld [vmem:[%s1006 + $0x2f8] sm:$0xff]
    %v1103 = vlaneseq
    %v1104 = vshrl.u32 %v1103, 7
    %v1105 = vsub.s32 3, %v1104
    %v1106 = vrot.slane %v276, %v1105
    %v1107 = vlaneseq
    %v1108 = vshrl.u32 %v1107, 7
    %v1109 = vsub.s32 3, %v1108
    %v1110 = vrot.slane %v277, %v1109
    %v1111 = vlaneseq
    %v1112 = vshrl.u32 %v1111, 7
    %v1113 = vsub.s32 3, %v1112
    %v1114 = vrot.slane %v278, %v1113
    %v1115 = vlaneseq
    %v1116 = vshrl.u32 %v1115, 7
    %v1117 = vsub.s32 3, %v1116
    %v1118 = vrot.slane %v279, %v1117
    %v1119 = vlaneseq
    %v1120 = vshrl.u32 %v1119, 7
    %v1121 = vsub.s32 3, %v1120
    %v1122 = vrot.slane %v280, %v1121
    %v1123 = vlaneseq
    %v1124 = vshrl.u32 %v1123, 7
    %v1125 = vsub.s32 3, %v1124
    %v1126 = vrot.slane %v281, %v1125
    %v1223 = vunpack.c.l.b16 %v1007
    %v1224 = vunpack.c.h.b16 %v1007
    %v1225 = vunpack.c.l.b16 %v1008
    %v1226 = vunpack.c.h.b16 %v1008
    %v1227 = vunpack.c.l.b16 %v1009
    %v1228 = vunpack.c.h.b16 %v1009
    %v1229 = vunpack.c.l.b16 %v1010
    %v1230 = vunpack.c.h.b16 %v1010
    %v1231 = vunpack.c.l.b16 %v1011
    %v1232 = vunpack.c.h.b16 %v1011
    %v1233 = vunpack.c.l.b16 %v1012
    %v1234 = vunpack.c.h.b16 %v1012
    %v1235 = vunpack.c.l.b16 %v1013
    %v1236 = vunpack.c.h.b16 %v1013
    %v1237 = vunpack.c.l.b16 %v1014
    %v1238 = vunpack.c.h.b16 %v1014
    %v1239 = vunpack.c.l.b16 %v1015
    %v1240 = vunpack.c.h.b16 %v1015
    %v1241 = vunpack.c.l.b16 %v1016
    %v1242 = vunpack.c.h.b16 %v1016
    %v1243 = vunpack.c.l.b16 %v1017
    %v1244 = vunpack.c.h.b16 %v1017
    %v1245 = vunpack.c.l.b16 %v1018
    %v1246 = vunpack.c.h.b16 %v1018
    %v1247 = vunpack.c.l.b16 %v1019
    %v1248 = vunpack.c.h.b16 %v1019
    %v1249 = vunpack.c.l.b16 %v1020
    %v1250 = vunpack.c.h.b16 %v1020
    %v1251 = vunpack.c.l.b16 %v1021
    %v1252 = vunpack.c.h.b16 %v1021
    %v1253 = vunpack.c.l.b16 %v1022
    %v1254 = vunpack.c.h.b16 %v1022
    %v1255 = vunpack.c.l.b16 %v1023
    %v1256 = vunpack.c.h.b16 %v1023
    %v1257 = vunpack.c.l.b16 %v1024
    %v1258 = vunpack.c.h.b16 %v1024
    %v1259 = vunpack.c.l.b16 %v1025
    %v1260 = vunpack.c.h.b16 %v1025
    %v1261 = vunpack.c.l.b16 %v1026
    %v1262 = vunpack.c.h.b16 %v1026
    %v1263 = vunpack.c.l.b16 %v1027
    %v1264 = vunpack.c.h.b16 %v1027
    %v1265 = vunpack.c.l.b16 %v1028
    %v1266 = vunpack.c.h.b16 %v1028
    %v1267 = vunpack.c.l.b16 %v1029
    %v1268 = vunpack.c.h.b16 %v1029
    %v1269 = vunpack.c.l.b16 %v1030
    %v1270 = vunpack.c.h.b16 %v1030
    %v1271 = vunpack.c.l.b16 %v1031
    %v1272 = vunpack.c.h.b16 %v1031
    %v1273 = vunpack.c.l.b16 %v1032
    %v1274 = vunpack.c.h.b16 %v1032
    %v1275 = vunpack.c.l.b16 %v1033
    %v1276 = vunpack.c.h.b16 %v1033
    %v1277 = vunpack.c.l.b16 %v1034
    %v1278 = vunpack.c.h.b16 %v1034
    %v1279 = vunpack.c.l.b16 %v1035
    %v1280 = vunpack.c.h.b16 %v1035
    %v1281 = vunpack.c.l.b16 %v1036
    %v1282 = vunpack.c.h.b16 %v1036
    %v1283 = vunpack.c.l.b16 %v1037
    %v1284 = vunpack.c.h.b16 %v1037
    %v1285 = vunpack.c.l.b16 %v1038
    %v1286 = vunpack.c.h.b16 %v1038
    %v1287 = vunpack.c.l.b16 %v1039
    %v1288 = vunpack.c.h.b16 %v1039
    %v1289 = vunpack.c.l.b16 %v1040
    %v1290 = vunpack.c.h.b16 %v1040
    %v1291 = vunpack.c.l.b16 %v1041
    %v1292 = vunpack.c.h.b16 %v1041
    %v1293 = vunpack.c.l.b16 %v1042
    %v1294 = vunpack.c.h.b16 %v1042
    %v1295 = vunpack.c.l.b16 %v1043
    %v1296 = vunpack.c.h.b16 %v1043
    %v1297 = vunpack.c.l.b16 %v1044
    %v1298 = vunpack.c.h.b16 %v1044
    %v1299 = vunpack.c.l.b16 %v1045
    %v1300 = vunpack.c.h.b16 %v1045
    %v1301 = vunpack.c.l.b16 %v1046
    %v1302 = vunpack.c.h.b16 %v1046
    %v1303 = vunpack.c.l.b16 %v1047
    %v1304 = vunpack.c.h.b16 %v1047
    %v1305 = vunpack.c.l.b16 %v1048
    %v1306 = vunpack.c.h.b16 %v1048
    %v1307 = vunpack.c.l.b16 %v1049
    %v1308 = vunpack.c.h.b16 %v1049
    %v1309 = vunpack.c.l.b16 %v1050
    %v1310 = vunpack.c.h.b16 %v1050
    %v1311 = vunpack.c.l.b16 %v1051
    %v1312 = vunpack.c.h.b16 %v1051
    %v1313 = vunpack.c.l.b16 %v1052
    %v1314 = vunpack.c.h.b16 %v1052
    %v1315 = vunpack.c.l.b16 %v1053
    %v1316 = vunpack.c.h.b16 %v1053
    %v1317 = vunpack.c.l.b16 %v1054
    %v1318 = vunpack.c.h.b16 %v1054
    %v1319 = vunpack.c.l.b16 %v1055
    %v1320 = vunpack.c.h.b16 %v1055
    %v1321 = vunpack.c.l.b16 %v1056
    %v1322 = vunpack.c.h.b16 %v1056
    %v1323 = vunpack.c.l.b16 %v1057
    %v1324 = vunpack.c.h.b16 %v1057
    %v1325 = vunpack.c.l.b16 %v1058
    %v1326 = vunpack.c.h.b16 %v1058
    %v1327 = vunpack.c.l.b16 %v1059
    %v1328 = vunpack.c.h.b16 %v1059
    %v1329 = vunpack.c.l.b16 %v1060
    %v1330 = vunpack.c.h.b16 %v1060
    %v1331 = vunpack.c.l.b16 %v1061
    %v1332 = vunpack.c.h.b16 %v1061
    %v1333 = vunpack.c.l.b16 %v1062
    %v1334 = vunpack.c.h.b16 %v1062
    %v1335 = vunpack.c.l.b16 %v1063
    %v1336 = vunpack.c.h.b16 %v1063
    %v1337 = vunpack.c.l.b16 %v1064
    %v1338 = vunpack.c.h.b16 %v1064
    %v1339 = vunpack.c.l.b16 %v1065
    %v1340 = vunpack.c.h.b16 %v1065
    %v1341 = vunpack.c.l.b16 %v1066
    %v1342 = vunpack.c.h.b16 %v1066
    %v1343 = vunpack.c.l.b16 %v1067
    %v1344 = vunpack.c.h.b16 %v1067
    %v1345 = vunpack.c.l.b16 %v1068
    %v1346 = vunpack.c.h.b16 %v1068
    %v1347 = vunpack.c.l.b16 %v1069
    %v1348 = vunpack.c.h.b16 %v1069
    %v1349 = vunpack.c.l.b16 %v1070
    %v1350 = vunpack.c.h.b16 %v1070
    %v1351 = vunpack.c.l.b16 %v1071
    %v1352 = vunpack.c.h.b16 %v1071
    %v1353 = vunpack.c.l.b16 %v1072
    %v1354 = vunpack.c.h.b16 %v1072
    %v1355 = vunpack.c.l.b16 %v1073
    %v1356 = vunpack.c.h.b16 %v1073
    %v1357 = vunpack.c.l.b16 %v1074
    %v1358 = vunpack.c.h.b16 %v1074
    %v1359 = vunpack.c.l.b16 %v1075
    %v1360 = vunpack.c.h.b16 %v1075
    %v1361 = vunpack.c.l.b16 %v1076
    %v1362 = vunpack.c.h.b16 %v1076
    %v1363 = vunpack.c.l.b16 %v1077
    %v1364 = vunpack.c.h.b16 %v1077
    %v1365 = vunpack.c.l.b16 %v1078
    %v1366 = vunpack.c.h.b16 %v1078
    %v1367 = vunpack.c.l.b16 %v1079
    %v1368 = vunpack.c.h.b16 %v1079
    %v1369 = vunpack.c.l.b16 %v1080
    %v1370 = vunpack.c.h.b16 %v1080
    %v1371 = vunpack.c.l.b16 %v1081
    %v1372 = vunpack.c.h.b16 %v1081
    %v1373 = vunpack.c.l.b16 %v1082
    %v1374 = vunpack.c.h.b16 %v1082
    %v1375 = vunpack.c.l.b16 %v1083
    %v1376 = vunpack.c.h.b16 %v1083
    %v1377 = vunpack.c.l.b16 %v1084
    %v1378 = vunpack.c.h.b16 %v1084
    %v1379 = vunpack.c.l.b16 %v1085
    %v1380 = vunpack.c.h.b16 %v1085
    %v1381 = vunpack.c.l.b16 %v1086
    %v1382 = vunpack.c.h.b16 %v1086
    %v1383 = vunpack.c.l.b16 %v1087
    %v1384 = vunpack.c.h.b16 %v1087
    %v1385 = vunpack.c.l.b16 %v1088
    %v1386 = vunpack.c.h.b16 %v1088
    %v1387 = vunpack.c.l.b16 %v1089
    %v1388 = vunpack.c.h.b16 %v1089
    %v1389 = vunpack.c.l.b16 %v1090
    %v1390 = vunpack.c.h.b16 %v1090
    %v1391 = vunpack.c.l.b16 %v1091
    %v1392 = vunpack.c.h.b16 %v1091
    %v1393 = vunpack.c.l.b16 %v1092
    %v1394 = vunpack.c.h.b16 %v1092
    %v1395 = vunpack.c.l.b16 %v1093
    %v1396 = vunpack.c.h.b16 %v1093
    %v1397 = vunpack.c.l.b16 %v1094
    %v1398 = vunpack.c.h.b16 %v1094
    %v1399 = vunpack.c.l.b16 %v1095
    %v1400 = vunpack.c.h.b16 %v1095
    %v1401 = vunpack.c.l.b16 %v1096
    %v1402 = vunpack.c.h.b16 %v1096
    %v1403 = vunpack.c.l.b16 %v1097
    %v1404 = vunpack.c.h.b16 %v1097
    %v1405 = vunpack.c.l.b16 %v1098
    %v1406 = vunpack.c.h.b16 %v1098
    %v1407 = vunpack.c.l.b16 %v1099
    %v1408 = vunpack.c.h.b16 %v1099
    %v1409 = vunpack.c.l.b16 %v1100
    %v1410 = vunpack.c.h.b16 %v1100
    %v1411 = vunpack.c.l.b16 %v1101
    %v1412 = vunpack.c.h.b16 %v1101
    %v1413 = vunpack.c.l.b16 %v1102
    %v1414 = vunpack.c.h.b16 %v1102
    %v1415 = vpack.c.b16 %v1229, %v1223
    %v1416 = vpack.c.b16 %v1230, %v1224
    %v1417 = vpack.c.b16 %v1231, %v1225
    %v1418 = vpack.c.b16 %v1232, %v1226
    %v1419 = vpack.c.b16 %v1233, %v1227
    %v1420 = vpack.c.b16 %v1234, %v1228
    %v1421 = vpack.c.b16 %v1241, %v1235
    %v1422 = vpack.c.b16 %v1242, %v1236
    %v1423 = vpack.c.b16 %v1243, %v1237
    %v1424 = vpack.c.b16 %v1244, %v1238
    %v1425 = vpack.c.b16 %v1245, %v1239
    %v1426 = vpack.c.b16 %v1246, %v1240
    %v1427 = vpack.c.b16 %v1253, %v1247
    %v1428 = vpack.c.b16 %v1254, %v1248
    %v1429 = vpack.c.b16 %v1255, %v1249
    %v1430 = vpack.c.b16 %v1256, %v1250
    %v1431 = vpack.c.b16 %v1257, %v1251
    %v1432 = vpack.c.b16 %v1258, %v1252
    %v1433 = vpack.c.b16 %v1265, %v1259
    %v1434 = vpack.c.b16 %v1266, %v1260
    %v1435 = vpack.c.b16 %v1267, %v1261
    %v1436 = vpack.c.b16 %v1268, %v1262
    %v1437 = vpack.c.b16 %v1269, %v1263
    %v1438 = vpack.c.b16 %v1270, %v1264
    %v1439 = vpack.c.b16 %v1277, %v1271
    %v1440 = vpack.c.b16 %v1278, %v1272
    %v1441 = vpack.c.b16 %v1279, %v1273
    %v1442 = vpack.c.b16 %v1280, %v1274
    %v1443 = vpack.c.b16 %v1281, %v1275
    %v1444 = vpack.c.b16 %v1282, %v1276
    %v1445 = vpack.c.b16 %v1289, %v1283
    %v1446 = vpack.c.b16 %v1290, %v1284
    %v1447 = vpack.c.b16 %v1291, %v1285
    %v1448 = vpack.c.b16 %v1292, %v1286
    %v1449 = vpack.c.b16 %v1293, %v1287
    %v1450 = vpack.c.b16 %v1294, %v1288
    %v1451 = vpack.c.b16 %v1301, %v1295
    %v1452 = vpack.c.b16 %v1302, %v1296
    %v1453 = vpack.c.b16 %v1303, %v1297
    %v1454 = vpack.c.b16 %v1304, %v1298
    %v1455 = vpack.c.b16 %v1305, %v1299
    %v1456 = vpack.c.b16 %v1306, %v1300
    %v1457 = vpack.c.b16 %v1313, %v1307
    %v1458 = vpack.c.b16 %v1314, %v1308
    %v1459 = vpack.c.b16 %v1315, %v1309
    %v1460 = vpack.c.b16 %v1316, %v1310
    %v1461 = vpack.c.b16 %v1317, %v1311
    %v1462 = vpack.c.b16 %v1318, %v1312
    %v1463 = vpack.c.b16 %v1325, %v1319
    %v1464 = vpack.c.b16 %v1326, %v1320
    %v1465 = vpack.c.b16 %v1327, %v1321
    %v1466 = vpack.c.b16 %v1328, %v1322
    %v1467 = vpack.c.b16 %v1329, %v1323
    %v1468 = vpack.c.b16 %v1330, %v1324
    %v1469 = vpack.c.b16 %v1337, %v1331
    %v1470 = vpack.c.b16 %v1338, %v1332
    %v1471 = vpack.c.b16 %v1339, %v1333
    %v1472 = vpack.c.b16 %v1340, %v1334
    %v1473 = vpack.c.b16 %v1341, %v1335
    %v1474 = vpack.c.b16 %v1342, %v1336
    %v1475 = vpack.c.b16 %v1349, %v1343
    %v1476 = vpack.c.b16 %v1350, %v1344
    %v1477 = vpack.c.b16 %v1351, %v1345
    %v1478 = vpack.c.b16 %v1352, %v1346
    %v1479 = vpack.c.b16 %v1353, %v1347
    %v1480 = vpack.c.b16 %v1354, %v1348
    %v1481 = vpack.c.b16 %v1361, %v1355
    %v1482 = vpack.c.b16 %v1362, %v1356
    %v1483 = vpack.c.b16 %v1363, %v1357
    %v1484 = vpack.c.b16 %v1364, %v1358
    %v1485 = vpack.c.b16 %v1365, %v1359
    %v1486 = vpack.c.b16 %v1366, %v1360
    %v1487 = vpack.c.b16 %v1373, %v1367
    %v1488 = vpack.c.b16 %v1374, %v1368
    %v1489 = vpack.c.b16 %v1375, %v1369
    %v1490 = vpack.c.b16 %v1376, %v1370
    %v1491 = vpack.c.b16 %v1377, %v1371
    %v1492 = vpack.c.b16 %v1378, %v1372
    %v1493 = vpack.c.b16 %v1385, %v1379
    %v1494 = vpack.c.b16 %v1386, %v1380
    %v1495 = vpack.c.b16 %v1387, %v1381
    %v1496 = vpack.c.b16 %v1388, %v1382
    %v1497 = vpack.c.b16 %v1389, %v1383
    %v1498 = vpack.c.b16 %v1390, %v1384
    %v1499 = vpack.c.b16 %v1397, %v1391
    %v1500 = vpack.c.b16 %v1398, %v1392
    %v1501 = vpack.c.b16 %v1399, %v1393
    %v1502 = vpack.c.b16 %v1400, %v1394
    %v1503 = vpack.c.b16 %v1401, %v1395
    %v1504 = vpack.c.b16 %v1402, %v1396
    %v1505 = vpack.c.b16 %v1409, %v1403
    %v1506 = vpack.c.b16 %v1410, %v1404
    %v1507 = vpack.c.b16 %v1411, %v1405
    %v1508 = vpack.c.b16 %v1412, %v1406
    %v1509 = vpack.c.b16 %v1413, %v1407
    %v1510 = vpack.c.b16 %v1414, %v1408
    %1607 = vmatprep.subr.bf16.mxu0 %v1416
    %1608 = vmatpush1.bf16.msra.mxu0 %v1415
    %1609 = vmatprep.subr.bf16.mxu0 %v1422
    %1610 = vmatpush1.bf16.msra.mxu0 %v1421
    %1611 = vmatprep.subr.bf16.mxu0 %v1428
    %1612 = vmatpush1.bf16.msra.mxu0 %v1427
    %1613 = vmatprep.subr.bf16.mxu0 %v1434
    %1614 = vmatpush1.bf16.msra.mxu0 %v1433
    %1615 = vmatprep.subr.bf16.mxu0 %v1440
    %1616 = vmatpush1.bf16.msra.mxu0 %v1439
    %1617 = vmatprep.subr.bf16.mxu0 %v1446
    %1618 = vmatpush1.bf16.msra.mxu0 %v1445
    %1619 = vmatprep.subr.bf16.mxu0 %v1452
    %1620 = vmatpush1.bf16.msra.mxu0 %v1451
    %1621 = vmatprep.subr.bf16.mxu0 %v1458
    %1622 = vmatpush1.bf16.msra.mxu0 %v1457
    %1623 = vmatprep.subr.bf16.mxu0 %v1464
    %1624 = vmatpush1.bf16.msra.mxu0 %v1463
    %1625 = vmatprep.subr.bf16.mxu0 %v1470
    %1626 = vmatpush1.bf16.msra.mxu0 %v1469
    %1627 = vmatprep.subr.bf16.mxu0 %v1476
    %1628 = vmatpush1.bf16.msra.mxu0 %v1475
    %1629 = vmatprep.subr.bf16.mxu0 %v1482
    %1630 = vmatpush1.bf16.msra.mxu0 %v1481
    %1631 = vmatprep.subr.bf16.mxu0 %v1488
    %1632 = vmatpush1.bf16.msra.mxu0 %v1487
    %1633 = vmatprep.subr.bf16.mxu0 %v1494
    %1634 = vmatpush1.bf16.msra.mxu0 %v1493
    %1635 = vmatprep.subr.bf16.mxu0 %v1500
    %1636 = vmatpush1.bf16.msra.mxu0 %v1499
    %1637 = vmatprep.subr.bf16.mxu0 %v1506
    %1638 = vmatpush1.bf16.msra.mxu0 %v1505
    %1639 = vmatprep.mubr.bf16.mxu0 %v273
    %1640 = vmatmul.mubr.bf16.gmra.mrb[0].mxu0 %v272
    %v1641 = vpop.f32.mrb[0].mxu0
    %v1642 = vadd.f32 %v1106, %v1641
    %v1643 = vpop.f32.mrb[0].mxu0
    %v1644 = vadd.f32 %v1110, %v1643
    %v1645 = vpop.f32.mrb[0].mxu0
    %v1646 = vpop.f32.mrb[0].mxu0
    %1647 = vdwg.mxu0
    %1648 = vmatprep.subr.bf16.mxu0 %v1418
    %1649 = vmatpush1.bf16.msra.mxu0 %v1417
    %1650 = vmatprep.subr.bf16.mxu0 %v1424
    %1651 = vmatpush1.bf16.msra.mxu0 %v1423
    %1652 = vmatprep.subr.bf16.mxu0 %v1430
    %1653 = vmatpush1.bf16.msra.mxu0 %v1429
    %1654 = vmatprep.subr.bf16.mxu0 %v1436
    %1655 = vmatpush1.bf16.msra.mxu0 %v1435
    %1656 = vmatprep.subr.bf16.mxu0 %v1442
    %1657 = vmatpush1.bf16.msra.mxu0 %v1441
    %1658 = vmatprep.subr.bf16.mxu0 %v1448
    %1659 = vmatpush1.bf16.msra.mxu0 %v1447
    %1660 = vmatprep.subr.bf16.mxu0 %v1454
    %1661 = vmatpush1.bf16.msra.mxu0 %v1453
    %1662 = vmatprep.subr.bf16.mxu0 %v1460
    %1663 = vmatpush1.bf16.msra.mxu0 %v1459
    %1664 = vmatprep.subr.bf16.mxu0 %v1466
    %1665 = vmatpush1.bf16.msra.mxu0 %v1465
    %1666 = vmatprep.subr.bf16.mxu0 %v1472
    %1667 = vmatpush1.bf16.msra.mxu0 %v1471
    %1668 = vmatprep.subr.bf16.mxu0 %v1478
    %1669 = vmatpush1.bf16.msra.mxu0 %v1477
    %1670 = vmatprep.subr.bf16.mxu0 %v1484
    %1671 = vmatpush1.bf16.msra.mxu0 %v1483
    %1672 = vmatprep.subr.bf16.mxu0 %v1490
    %1673 = vmatpush1.bf16.msra.mxu0 %v1489
    %1674 = vmatprep.subr.bf16.mxu0 %v1496
    %1675 = vmatpush1.bf16.msra.mxu0 %v1495
    %1676 = vmatprep.subr.bf16.mxu0 %v1502
    %1677 = vmatpush1.bf16.msra.mxu0 %v1501
    %1678 = vmatprep.subr.bf16.mxu0 %v1508
    %1679 = vmatpush1.bf16.msra.mxu0 %v1507
    %1680 = vmatprep.mubr.bf16.mxu0 %v273
    %1681 = vmatmul.mubr.bf16.gmra.mrb[0].mxu0 %v272
    %v1682 = vpop.f32.mrb[0].mxu0
    %v1683 = vadd.f32 %v1114, %v1682
    %v1684 = vpop.f32.mrb[0].mxu0
    %v1685 = vadd.f32 %v1118, %v1684
    %v1686 = vpop.f32.mrb[0].mxu0
    %v1687 = vpop.f32.mrb[0].mxu0
    %1688 = vdwg.mxu0
    %1689 = vmatprep.subr.bf16.mxu0 %v1420
    %1690 = vmatpush1.bf16.msra.mxu0 %v1419
    %1691 = vmatprep.subr.bf16.mxu0 %v1426
    %1692 = vmatpush1.bf16.msra.mxu0 %v1425
    %1693 = vmatprep.subr.bf16.mxu0 %v1432
    %1694 = vmatpush1.bf16.msra.mxu0 %v1431
    %1695 = vmatprep.subr.bf16.mxu0 %v1438
    %1696 = vmatpush1.bf16.msra.mxu0 %v1437
    %1697 = vmatprep.subr.bf16.mxu0 %v1444
    %1698 = vmatpush1.bf16.msra.mxu0 %v1443
    %1699 = vmatprep.subr.bf16.mxu0 %v1450
    %1700 = vmatpush1.bf16.msra.mxu0 %v1449
    %1701 = vmatprep.subr.bf16.mxu0 %v1456
    %1702 = vmatpush1.bf16.msra.mxu0 %v1455
    %1703 = vmatprep.subr.bf16.mxu0 %v1462
    %1704 = vmatpush1.bf16.msra.mxu0 %v1461
    %1705 = vmatprep.subr.bf16.mxu0 %v1468
    %1706 = vmatpush1.bf16.msra.mxu0 %v1467
    %1707 = vmatprep.subr.bf16.mxu0 %v1474
    %1708 = vmatpush1.bf16.msra.mxu0 %v1473
    %1709 = vmatprep.subr.bf16.mxu0 %v1480
    %1710 = vmatpush1.bf16.msra.mxu0 %v1479
    %1711 = vmatprep.subr.bf16.mxu0 %v1486
    %1712 = vmatpush1.bf16.msra.mxu0 %v1485
    %1713 = vmatprep.subr.bf16.mxu0 %v1492
    %1714 = vmatpush1.bf16.msra.mxu0 %v1491
    %1715 = vmatprep.subr.bf16.mxu0 %v1498
    %1716 = vmatpush1.bf16.msra.mxu0 %v1497
    %1717 = vmatprep.subr.bf16.mxu0 %v1504
    %1718 = vmatpush1.bf16.msra.mxu0 %v1503
    %1719 = vmatprep.subr.bf16.mxu0 %v1510
    %1720 = vmatpush1.bf16.msra.mxu0 %v1509
    %1721 = vmatprep.mubr.bf16.mxu0 %v273
    %1722 = vmatmul.mubr.bf16.gmra.mrb[0].mxu0 %v272
    %v1723 = vpop.f32.mrb[0].mxu0
    %v1724 = vadd.f32 %v1122, %v1723
    %v1725 = vpop.f32.mrb[0].mxu0
    %v1726 = vadd.f32 %v1126, %v1725
    %v1727 = vpop.f32.mrb[0].mxu0
    %v1728 = vpop.f32.mrb[0].mxu0
    %1729 = vdwg.mxu0
    %s1730 = scalar_lea.vmem [#allocation11], 4608
    %v1731 = vld [vmem:[%s1730] sm:$0xff]
    %v1732 = vld [vmem:[%s1730 + $0x8] sm:$0xff]
    %v1733 = vld [vmem:[%s1730 + $0x10] sm:$0xff]
    %v1734 = vld [vmem:[%s1730 + $0x18] sm:$0xff]
    %v1735 = vld [vmem:[%s1730 + $0x20] sm:$0xff]
    %v1736 = vld [vmem:[%s1730 + $0x28] sm:$0xff]
    %v1737 = vld [vmem:[%s1730 + $0x30] sm:$0xff]
    %v1738 = vld [vmem:[%s1730 + $0x38] sm:$0xff]
    %v1739 = vld [vmem:[%s1730 + $0x40] sm:$0xff]
    %v1740 = vld [vmem:[%s1730 + $0x48] sm:$0xff]
    %v1741 = vld [vmem:[%s1730 + $0x50] sm:$0xff]
    %v1742 = vld [vmem:[%s1730 + $0x58] sm:$0xff]
    %v1743 = vld [vmem:[%s1730 + $0x60] sm:$0xff]
    %v1744 = vld [vmem:[%s1730 + $0x68] sm:$0xff]
    %v1745 = vld [vmem:[%s1730 + $0x70] sm:$0xff]
    %v1746 = vld [vmem:[%s1730 + $0x78] sm:$0xff]
    %v1747 = vld [vmem:[%s1730 + $0x80] sm:$0xff]
    %v1748 = vld [vmem:[%s1730 + $0x88] sm:$0xff]
    %v1749 = vld [vmem:[%s1730 + $0x90] sm:$0xff]
    %v1750 = vld [vmem:[%s1730 + $0x98] sm:$0xff]
    %v1751 = vld [vmem:[%s1730 + $0xa0] sm:$0xff]
    %v1752 = vld [vmem:[%s1730 + $0xa8] sm:$0xff]
    %v1753 = vld [vmem:[%s1730 + $0xb0] sm:$0xff]
    %v1754 = vld [vmem:[%s1730 + $0xb8] sm:$0xff]
    %v1755 = vld [vmem:[%s1730 + $0xc0] sm:$0xff]
    %v1756 = vld [vmem:[%s1730 + $0xc8] sm:$0xff]
    %v1757 = vld [vmem:[%s1730 + $0xd0] sm:$0xff]
    %v1758 = vld [vmem:[%s1730 + $0xd8] sm:$0xff]
    %v1759 = vld [vmem:[%s1730 + $0xe0] sm:$0xff]
    %v1760 = vld [vmem:[%s1730 + $0xe8] sm:$0xff]
    %v1761 = vld [vmem:[%s1730 + $0xf0] sm:$0xff]
    %v1762 = vld [vmem:[%s1730 + $0xf8] sm:$0xff]
    %v1763 = vld [vmem:[%s1730 + $0x100] sm:$0xff]
    %v1764 = vld [vmem:[%s1730 + $0x108] sm:$0xff]
    %v1765 = vld [vmem:[%s1730 + $0x110] sm:$0xff]
    %v1766 = vld [vmem:[%s1730 + $0x118] sm:$0xff]
    %v1767 = vld [vmem:[%s1730 + $0x120] sm:$0xff]
    %v1768 = vld [vmem:[%s1730 + $0x128] sm:$0xff]
    %v1769 = vld [vmem:[%s1730 + $0x130] sm:$0xff]
    %v1770 = vld [vmem:[%s1730 + $0x138] sm:$0xff]
    %v1771 = vld [vmem:[%s1730 + $0x140] sm:$0xff]
    %v1772 = vld [vmem:[%s1730 + $0x148] sm:$0xff]
    %v1773 = vld [vmem:[%s1730 + $0x150] sm:$0xff]
    %v1774 = vld [vmem:[%s1730 + $0x158] sm:$0xff]
    %v1775 = vld [vmem:[%s1730 + $0x160] sm:$0xff]
    %v1776 = vld [vmem:[%s1730 + $0x168] sm:$0xff]
    %v1777 = vld [vmem:[%s1730 + $0x170] sm:$0xff]
    %v1778 = vld [vmem:[%s1730 + $0x178] sm:$0xff]
    %v1779 = vld [vmem:[%s1730 + $0x180] sm:$0xff]
    %v1780 = vld [vmem:[%s1730 + $0x188] sm:$0xff]
    %v1781 = vld [vmem:[%s1730 + $0x190] sm:$0xff]
    %v1782 = vld [vmem:[%s1730 + $0x198] sm:$0xff]
    %v1783 = vld [vmem:[%s1730 + $0x1a0] sm:$0xff]
    %v1784 = vld [vmem:[%s1730 + $0x1a8] sm:$0xff]
    %v1785 = vld [vmem:[%s1730 + $0x1b0] sm:$0xff]
    %v1786 = vld [vmem:[%s1730 + $0x1b8] sm:$0xff]
    %v1787 = vld [vmem:[%s1730 + $0x1c0] sm:$0xff]
    %v1788 = vld [vmem:[%s1730 + $0x1c8] sm:$0xff]
    %v1789 = vld [vmem:[%s1730 + $0x1d0] sm:$0xff]
    %v1790 = vld [vmem:[%s1730 + $0x1d8] sm:$0xff]
    %v1791 = vld [vmem:[%s1730 + $0x1e0] sm:$0xff]
    %v1792 = vld [vmem:[%s1730 + $0x1e8] sm:$0xff]
    %v1793 = vld [vmem:[%s1730 + $0x1f0] sm:$0xff]
    %v1794 = vld [vmem:[%s1730 + $0x1f8] sm:$0xff]
    %v1795 = vld [vmem:[%s1730 + $0x200] sm:$0xff]
    %v1796 = vld [vmem:[%s1730 + $0x208] sm:$0xff]
    %v1797 = vld [vmem:[%s1730 + $0x210] sm:$0xff]
    %v1798 = vld [vmem:[%s1730 + $0x218] sm:$0xff]
    %v1799 = vld [vmem:[%s1730 + $0x220] sm:$0xff]
    %v1800 = vld [vmem:[%s1730 + $0x228] sm:$0xff]
    %v1801 = vld [vmem:[%s1730 + $0x230] sm:$0xff]
    %v1802 = vld [vmem:[%s1730 + $0x238] sm:$0xff]
    %v1803 = vld [vmem:[%s1730 + $0x240] sm:$0xff]
    %v1804 = vld [vmem:[%s1730 + $0x248] sm:$0xff]
    %v1805 = vld [vmem:[%s1730 + $0x250] sm:$0xff]
    %v1806 = vld [vmem:[%s1730 + $0x258] sm:$0xff]
    %v1807 = vld [vmem:[%s1730 + $0x260] sm:$0xff]
    %v1808 = vld [vmem:[%s1730 + $0x268] sm:$0xff]
    %v1809 = vld [vmem:[%s1730 + $0x270] sm:$0xff]
    %v1810 = vld [vmem:[%s1730 + $0x278] sm:$0xff]
    %v1811 = vld [vmem:[%s1730 + $0x280] sm:$0xff]
    %v1812 = vld [vmem:[%s1730 + $0x288] sm:$0xff]
    %v1813 = vld [vmem:[%s1730 + $0x290] sm:$0xff]
    %v1814 = vld [vmem:[%s1730 + $0x298] sm:$0xff]
    %v1815 = vld [vmem:[%s1730 + $0x2a0] sm:$0xff]
    %v1816 = vld [vmem:[%s1730 + $0x2a8] sm:$0xff]
    %v1817 = vld [vmem:[%s1730 + $0x2b0] sm:$0xff]
    %v1818 = vld [vmem:[%s1730 + $0x2b8] sm:$0xff]
    %v1819 = vld [vmem:[%s1730 + $0x2c0] sm:$0xff]
    %v1820 = vld [vmem:[%s1730 + $0x2c8] sm:$0xff]
    %v1821 = vld [vmem:[%s1730 + $0x2d0] sm:$0xff]
    %v1822 = vld [vmem:[%s1730 + $0x2d8] sm:$0xff]
    %v1823 = vld [vmem:[%s1730 + $0x2e0] sm:$0xff]
    %v1824 = vld [vmem:[%s1730 + $0x2e8] sm:$0xff]
    %v1825 = vld [vmem:[%s1730 + $0x2f0] sm:$0xff]
    %v1826 = vld [vmem:[%s1730 + $0x2f8] sm:$0xff]
    %v1827 = vlaneseq
    %v1828 = vshrl.u32 %v1827, 7
    %v1829 = vsub.s32 5, %v1828
    %v1830 = vrot.slane %v276, %v1829
    %v1831 = vlaneseq
    %v1832 = vshrl.u32 %v1831, 7
    %v1833 = vsub.s32 5, %v1832
    %v1834 = vrot.slane %v277, %v1833
    %v1835 = vlaneseq
    %v1836 = vshrl.u32 %v1835, 7
    %v1837 = vsub.s32 5, %v1836
    %v1838 = vrot.slane %v278, %v1837
    %v1839 = vlaneseq
    %v1840 = vshrl.u32 %v1839, 7
    %v1841 = vsub.s32 5, %v1840
    %v1842 = vrot.slane %v279, %v1841
    %v1843 = vlaneseq
    %v1844 = vshrl.u32 %v1843, 7
    %v1845 = vsub.s32 5, %v1844
    %v1846 = vrot.slane %v280, %v1845
    %v1847 = vlaneseq
    %v1848 = vshrl.u32 %v1847, 7
    %v1849 = vsub.s32 5, %v1848
    %v1850 = vrot.slane %v281, %v1849
    %v1947 = vunpack.c.l.b16 %v1731
    %v1948 = vunpack.c.h.b16 %v1731
    %v1949 = vunpack.c.l.b16 %v1732
    %v1950 = vunpack.c.h.b16 %v1732
    %v1951 = vunpack.c.l.b16 %v1733
    %v1952 = vunpack.c.h.b16 %v1733
    %v1953 = vunpack.c.l.b16 %v1734
    %v1954 = vunpack.c.h.b16 %v1734
    %v1955 = vunpack.c.l.b16 %v1735
    %v1956 = vunpack.c.h.b16 %v1735
    %v1957 = vunpack.c.l.b16 %v1736
    %v1958 = vunpack.c.h.b16 %v1736
    %v1959 = vunpack.c.l.b16 %v1737
    %v1960 = vunpack.c.h.b16 %v1737
    %v1961 = vunpack.c.l.b16 %v1738
    %v1962 = vunpack.c.h.b16 %v1738
    %v1963 = vunpack.c.l.b16 %v1739
    %v1964 = vunpack.c.h.b16 %v1739
    %v1965 = vunpack.c.l.b16 %v1740
    %v1966 = vunpack.c.h.b16 %v1740
    %v1967 = vunpack.c.l.b16 %v1741
    %v1968 = vunpack.c.h.b16 %v1741
    %v1969 = vunpack.c.l.b16 %v1742
    %v1970 = vunpack.c.h.b16 %v1742
    %v1971 = vunpack.c.l.b16 %v1743
    %v1972 = vunpack.c.h.b16 %v1743
    %v1973 = vunpack.c.l.b16 %v1744
    %v1974 = vunpack.c.h.b16 %v1744
    %v1975 = vunpack.c.l.b16 %v1745
    %v1976 = vunpack.c.h.b16 %v1745
    %v1977 = vunpack.c.l.b16 %v1746
    %v1978 = vunpack.c.h.b16 %v1746
    %v1979 = vunpack.c.l.b16 %v1747
    %v1980 = vunpack.c.h.b16 %v1747
    %v1981 = vunpack.c.l.b16 %v1748
    %v1982 = vunpack.c.h.b16 %v1748
    %v1983 = vunpack.c.l.b16 %v1749
    %v1984 = vunpack.c.h.b16 %v1749
    %v1985 = vunpack.c.l.b16 %v1750
    %v1986 = vunpack.c.h.b16 %v1750
    %v1987 = vunpack.c.l.b16 %v1751
    %v1988 = vunpack.c.h.b16 %v1751
    %v1989 = vunpack.c.l.b16 %v1752
    %v1990 = vunpack.c.h.b16 %v1752
    %v1991 = vunpack.c.l.b16 %v1753
    %v1992 = vunpack.c.h.b16 %v1753
    %v1993 = vunpack.c.l.b16 %v1754
    %v1994 = vunpack.c.h.b16 %v1754
    %v1995 = vunpack.c.l.b16 %v1755
    %v1996 = vunpack.c.h.b16 %v1755
    %v1997 = vunpack.c.l.b16 %v1756
    %v1998 = vunpack.c.h.b16 %v1756
    %v1999 = vunpack.c.l.b16 %v1757
    %v2000 = vunpack.c.h.b16 %v1757
    %v2001 = vunpack.c.l.b16 %v1758
    %v2002 = vunpack.c.h.b16 %v1758
    %v2003 = vunpack.c.l.b16 %v1759
    %v2004 = vunpack.c.h.b16 %v1759
    %v2005 = vunpack.c.l.b16 %v1760
    %v2006 = vunpack.c.h.b16 %v1760
    %v2007 = vunpack.c.l.b16 %v1761
    %v2008 = vunpack.c.h.b16 %v1761
    %v2009 = vunpack.c.l.b16 %v1762
    %v2010 = vunpack.c.h.b16 %v1762
    %v2011 = vunpack.c.l.b16 %v1763
    %v2012 = vunpack.c.h.b16 %v1763
    %v2013 = vunpack.c.l.b16 %v1764
    %v2014 = vunpack.c.h.b16 %v1764
    %v2015 = vunpack.c.l.b16 %v1765
    %v2016 = vunpack.c.h.b16 %v1765
    %v2017 = vunpack.c.l.b16 %v1766
    %v2018 = vunpack.c.h.b16 %v1766
    %v2019 = vunpack.c.l.b16 %v1767
    %v2020 = vunpack.c.h.b16 %v1767
    %v2021 = vunpack.c.l.b16 %v1768
    %v2022 = vunpack.c.h.b16 %v1768
    %v2023 = vunpack.c.l.b16 %v1769
    %v2024 = vunpack.c.h.b16 %v1769
    %v2025 = vunpack.c.l.b16 %v1770
    %v2026 = vunpack.c.h.b16 %v1770
    %v2027 = vunpack.c.l.b16 %v1771
    %v2028 = vunpack.c.h.b16 %v1771
    %v2029 = vunpack.c.l.b16 %v1772
    %v2030 = vunpack.c.h.b16 %v1772
    %v2031 = vunpack.c.l.b16 %v1773
    %v2032 = vunpack.c.h.b16 %v1773
    %v2033 = vunpack.c.l.b16 %v1774
    %v2034 = vunpack.c.h.b16 %v1774
    %v2035 = vunpack.c.l.b16 %v1775
    %v2036 = vunpack.c.h.b16 %v1775
    %v2037 = vunpack.c.l.b16 %v1776
    %v2038 = vunpack.c.h.b16 %v1776
    %v2039 = vunpack.c.l.b16 %v1777
    %v2040 = vunpack.c.h.b16 %v1777
    %v2041 = vunpack.c.l.b16 %v1778
    %v2042 = vunpack.c.h.b16 %v1778
    %v2043 = vunpack.c.l.b16 %v1779
    %v2044 = vunpack.c.h.b16 %v1779
    %v2045 = vunpack.c.l.b16 %v1780
    %v2046 = vunpack.c.h.b16 %v1780
    %v2047 = vunpack.c.l.b16 %v1781
    %v2048 = vunpack.c.h.b16 %v1781
    %v2049 = vunpack.c.l.b16 %v1782
    %v2050 = vunpack.c.h.b16 %v1782
    %v2051 = vunpack.c.l.b16 %v1783
    %v2052 = vunpack.c.h.b16 %v1783
    %v2053 = vunpack.c.l.b16 %v1784
    %v2054 = vunpack.c.h.b16 %v1784
    %v2055 = vunpack.c.l.b16 %v1785
    %v2056 = vunpack.c.h.b16 %v1785
    %v2057 = vunpack.c.l.b16 %v1786
    %v2058 = vunpack.c.h.b16 %v1786
    %v2059 = vunpack.c.l.b16 %v1787
    %v2060 = vunpack.c.h.b16 %v1787
    %v2061 = vunpack.c.l.b16 %v1788
    %v2062 = vunpack.c.h.b16 %v1788
    %v2063 = vunpack.c.l.b16 %v1789
    %v2064 = vunpack.c.h.b16 %v1789
    %v2065 = vunpack.c.l.b16 %v1790
    %v2066 = vunpack.c.h.b16 %v1790
    %v2067 = vunpack.c.l.b16 %v1791
    %v2068 = vunpack.c.h.b16 %v1791
    %v2069 = vunpack.c.l.b16 %v1792
    %v2070 = vunpack.c.h.b16 %v1792
    %v2071 = vunpack.c.l.b16 %v1793
    %v2072 = vunpack.c.h.b16 %v1793
    %v2073 = vunpack.c.l.b16 %v1794
    %v2074 = vunpack.c.h.b16 %v1794
    %v2075 = vunpack.c.l.b16 %v1795
    %v2076 = vunpack.c.h.b16 %v1795
    %v2077 = vunpack.c.l.b16 %v1796
    %v2078 = vunpack.c.h.b16 %v1796
    %v2079 = vunpack.c.l.b16 %v1797
    %v2080 = vunpack.c.h.b16 %v1797
    %v2081 = vunpack.c.l.b16 %v1798
    %v2082 = vunpack.c.h.b16 %v1798
    %v2083 = vunpack.c.l.b16 %v1799
    %v2084 = vunpack.c.h.b16 %v1799
    %v2085 = vunpack.c.l.b16 %v1800
    %v2086 = vunpack.c.h.b16 %v1800
    %v2087 = vunpack.c.l.b16 %v1801
    %v2088 = vunpack.c.h.b16 %v1801
    %v2089 = vunpack.c.l.b16 %v1802
    %v2090 = vunpack.c.h.b16 %v1802
    %v2091 = vunpack.c.l.b16 %v1803
    %v2092 = vunpack.c.h.b16 %v1803
    %v2093 = vunpack.c.l.b16 %v1804
    %v2094 = vunpack.c.h.b16 %v1804
    %v2095 = vunpack.c.l.b16 %v1805
    %v2096 = vunpack.c.h.b16 %v1805
    %v2097 = vunpack.c.l.b16 %v1806
    %v2098 = vunpack.c.h.b16 %v1806
    %v2099 = vunpack.c.l.b16 %v1807
    %v2100 = vunpack.c.h.b16 %v1807
    %v2101 = vunpack.c.l.b16 %v1808
    %v2102 = vunpack.c.h.b16 %v1808
    %v2103 = vunpack.c.l.b16 %v1809
    %v2104 = vunpack.c.h.b16 %v1809
    %v2105 = vunpack.c.l.b16 %v1810
    %v2106 = vunpack.c.h.b16 %v1810
    %v2107 = vunpack.c.l.b16 %v1811
    %v2108 = vunpack.c.h.b16 %v1811
    %v2109 = vunpack.c.l.b16 %v1812
    %v2110 = vunpack.c.h.b16 %v1812
    %v2111 = vunpack.c.l.b16 %v1813
    %v2112 = vunpack.c.h.b16 %v1813
    %v2113 = vunpack.c.l.b16 %v1814
    %v2114 = vunpack.c.h.b16 %v1814
    %v2115 = vunpack.c.l.b16 %v1815
    %v2116 = vunpack.c.h.b16 %v1815
    %v2117 = vunpack.c.l.b16 %v1816
    %v2118 = vunpack.c.h.b16 %v1816
    %v2119 = vunpack.c.l.b16 %v1817
    %v2120 = vunpack.c.h.b16 %v1817
    %v2121 = vunpack.c.l.b16 %v1818
    %v2122 = vunpack.c.h.b16 %v1818
    %v2123 = vunpack.c.l.b16 %v1819
    %v2124 = vunpack.c.h.b16 %v1819
    %v2125 = vunpack.c.l.b16 %v1820
    %v2126 = vunpack.c.h.b16 %v1820
    %v2127 = vunpack.c.l.b16 %v1821
    %v2128 = vunpack.c.h.b16 %v1821
    %v2129 = vunpack.c.l.b16 %v1822
    %v2130 = vunpack.c.h.b16 %v1822
    %v2131 = vunpack.c.l.b16 %v1823
    %v2132 = vunpack.c.h.b16 %v1823
    %v2133 = vunpack.c.l.b16 %v1824
    %v2134 = vunpack.c.h.b16 %v1824
    %v2135 = vunpack.c.l.b16 %v1825
    %v2136 = vunpack.c.h.b16 %v1825
    %v2137 = vunpack.c.l.b16 %v1826
    %v2138 = vunpack.c.h.b16 %v1826
    %v2139 = vpack.c.b16 %v1953, %v1947
    %v2140 = vpack.c.b16 %v1954, %v1948
    %v2141 = vpack.c.b16 %v1955, %v1949
    %v2142 = vpack.c.b16 %v1956, %v1950
    %v2143 = vpack.c.b16 %v1957, %v1951
    %v2144 = vpack.c.b16 %v1958, %v1952
    %v2145 = vpack.c.b16 %v1965, %v1959
    %v2146 = vpack.c.b16 %v1966, %v1960
    %v2147 = vpack.c.b16 %v1967, %v1961
    %v2148 = vpack.c.b16 %v1968, %v1962
    %v2149 = vpack.c.b16 %v1969, %v1963
    %v2150 = vpack.c.b16 %v1970, %v1964
    %v2151 = vpack.c.b16 %v1977, %v1971
    %v2152 = vpack.c.b16 %v1978, %v1972
    %v2153 = vpack.c.b16 %v1979, %v1973
    %v2154 = vpack.c.b16 %v1980, %v1974
    %v2155 = vpack.c.b16 %v1981, %v1975
    %v2156 = vpack.c.b16 %v1982, %v1976
    %v2157 = vpack.c.b16 %v1989, %v1983
    %v2158 = vpack.c.b16 %v1990, %v1984
    %v2159 = vpack.c.b16 %v1991, %v1985
    %v2160 = vpack.c.b16 %v1992, %v1986
    %v2161 = vpack.c.b16 %v1993, %v1987
    %v2162 = vpack.c.b16 %v1994, %v1988
    %v2163 = vpack.c.b16 %v2001, %v1995
    %v2164 = vpack.c.b16 %v2002, %v1996
    %v2165 = vpack.c.b16 %v2003, %v1997
    %v2166 = vpack.c.b16 %v2004, %v1998
    %v2167 = vpack.c.b16 %v2005, %v1999
    %v2168 = vpack.c.b16 %v2006, %v2000
    %v2169 = vpack.c.b16 %v2013, %v2007
    %v2170 = vpack.c.b16 %v2014, %v2008
    %v2171 = vpack.c.b16 %v2015, %v2009
    %v2172 = vpack.c.b16 %v2016, %v2010
    %v2173 = vpack.c.b16 %v2017, %v2011
    %v2174 = vpack.c.b16 %v2018, %v2012
    %v2175 = vpack.c.b16 %v2025, %v2019
    %v2176 = vpack.c.b16 %v2026, %v2020
    %v2177 = vpack.c.b16 %v2027, %v2021
    %v2178 = vpack.c.b16 %v2028, %v2022
    %v2179 = vpack.c.b16 %v2029, %v2023
    %v2180 = vpack.c.b16 %v2030, %v2024
    %v2181 = vpack.c.b16 %v2037, %v2031
    %v2182 = vpack.c.b16 %v2038, %v2032
    %v2183 = vpack.c.b16 %v2039, %v2033
    %v2184 = vpack.c.b16 %v2040, %v2034
    %v2185 = vpack.c.b16 %v2041, %v2035
    %v2186 = vpack.c.b16 %v2042, %v2036
    %v2187 = vpack.c.b16 %v2049, %v2043
    %v2188 = vpack.c.b16 %v2050, %v2044
    %v2189 = vpack.c.b16 %v2051, %v2045
    %v2190 = vpack.c.b16 %v2052, %v2046
    %v2191 = vpack.c.b16 %v2053, %v2047
    %v2192 = vpack.c.b16 %v2054, %v2048
    %v2193 = vpack.c.b16 %v2061, %v2055
    %v2194 = vpack.c.b16 %v2062, %v2056
    %v2195 = vpack.c.b16 %v2063, %v2057
    %v2196 = vpack.c.b16 %v2064, %v2058
    %v2197 = vpack.c.b16 %v2065, %v2059
    %v2198 = vpack.c.b16 %v2066, %v2060
    %v2199 = vpack.c.b16 %v2073, %v2067
    %v2200 = vpack.c.b16 %v2074, %v2068
    %v2201 = vpack.c.b16 %v2075, %v2069
    %v2202 = vpack.c.b16 %v2076, %v2070
    %v2203 = vpack.c.b16 %v2077, %v2071
    %v2204 = vpack.c.b16 %v2078, %v2072
    %v2205 = vpack.c.b16 %v2085, %v2079
    %v2206 = vpack.c.b16 %v2086, %v2080
    %v2207 = vpack.c.b16 %v2087, %v2081
    %v2208 = vpack.c.b16 %v2088, %v2082
    %v2209 = vpack.c.b16 %v2089, %v2083
    %v2210 = vpack.c.b16 %v2090, %v2084
    %v2211 = vpack.c.b16 %v2097, %v2091
    %v2212 = vpack.c.b16 %v2098, %v2092
    %v2213 = vpack.c.b16 %v2099, %v2093
    %v2214 = vpack.c.b16 %v2100, %v2094
    %v2215 = vpack.c.b16 %v2101, %v2095
    %v2216 = vpack.c.b16 %v2102, %v2096
    %v2217 = vpack.c.b16 %v2109, %v2103
    %v2218 = vpack.c.b16 %v2110, %v2104
    %v2219 = vpack.c.b16 %v2111, %v2105
    %v2220 = vpack.c.b16 %v2112, %v2106
    %v2221 = vpack.c.b16 %v2113, %v2107
    %v2222 = vpack.c.b16 %v2114, %v2108
    %v2223 = vpack.c.b16 %v2121, %v2115
    %v2224 = vpack.c.b16 %v2122, %v2116
    %v2225 = vpack.c.b16 %v2123, %v2117
    %v2226 = vpack.c.b16 %v2124, %v2118
    %v2227 = vpack.c.b16 %v2125, %v2119
    %v2228 = vpack.c.b16 %v2126, %v2120
    %v2229 = vpack.c.b16 %v2133, %v2127
    %v2230 = vpack.c.b16 %v2134, %v2128
    %v2231 = vpack.c.b16 %v2135, %v2129
    %v2232 = vpack.c.b16 %v2136, %v2130
    %v2233 = vpack.c.b16 %v2137, %v2131
    %v2234 = vpack.c.b16 %v2138, %v2132
    %2331 = vmatprep.subr.bf16.mxu0 %v2140
    %2332 = vmatpush1.bf16.msra.mxu0 %v2139
    %2333 = vmatprep.subr.bf16.mxu0 %v2146
    %2334 = vmatpush1.bf16.msra.mxu0 %v2145
    %2335 = vmatprep.subr.bf16.mxu0 %v2152
    %2336 = vmatpush1.bf16.msra.mxu0 %v2151
    %2337 = vmatprep.subr.bf16.mxu0 %v2158
    %2338 = vmatpush1.bf16.msra.mxu0 %v2157
    %2339 = vmatprep.subr.bf16.mxu0 %v2164
    %2340 = vmatpush1.bf16.msra.mxu0 %v2163
    %2341 = vmatprep.subr.bf16.mxu0 %v2170
    %2342 = vmatpush1.bf16.msra.mxu0 %v2169
    %2343 = vmatprep.subr.bf16.mxu0 %v2176
    %2344 = vmatpush1.bf16.msra.mxu0 %v2175
    %2345 = vmatprep.subr.bf16.mxu0 %v2182
    %2346 = vmatpush1.bf16.msra.mxu0 %v2181
    %2347 = vmatprep.subr.bf16.mxu0 %v2188
    %2348 = vmatpush1.bf16.msra.mxu0 %v2187
    %2349 = vmatprep.subr.bf16.mxu0 %v2194
    %2350 = vmatpush1.bf16.msra.mxu0 %v2193
    %2351 = vmatprep.subr.bf16.mxu0 %v2200
    %2352 = vmatpush1.bf16.msra.mxu0 %v2199
    %2353 = vmatprep.subr.bf16.mxu0 %v2206
    %2354 = vmatpush1.bf16.msra.mxu0 %v2205
    %2355 = vmatprep.subr.bf16.mxu0 %v2212
    %2356 = vmatpush1.bf16.msra.mxu0 %v2211
    %2357 = vmatprep.subr.bf16.mxu0 %v2218
    %2358 = vmatpush1.bf16.msra.mxu0 %v2217
    %2359 = vmatprep.subr.bf16.mxu0 %v2224
    %2360 = vmatpush1.bf16.msra.mxu0 %v2223
    %2361 = vmatprep.subr.bf16.mxu0 %v2230
    %2362 = vmatpush1.bf16.msra.mxu0 %v2229
    %2363 = vmatprep.mubr.bf16.mxu0 %v275
    %2364 = vmatmul.mubr.bf16.gmra.mrb[0].mxu0 %v274
    %v2365 = vpop.f32.mrb[0].mxu0
    %v2366 = vadd.f32 %v1830, %v2365
    %v2367 = vpop.f32.mrb[0].mxu0
    %v2368 = vadd.f32 %v1834, %v2367
    %v2369 = vpop.f32.mrb[0].mxu0
    %v2370 = vpop.f32.mrb[0].mxu0
    %2371 = vdwg.mxu0
    %2372 = vmatprep.subr.bf16.mxu0 %v2142
    %2373 = vmatpush1.bf16.msra.mxu0 %v2141
    %2374 = vmatprep.subr.bf16.mxu0 %v2148
    %2375 = vmatpush1.bf16.msra.mxu0 %v2147
    %2376 = vmatprep.subr.bf16.mxu0 %v2154
    %2377 = vmatpush1.bf16.msra.mxu0 %v2153
    %2378 = vmatprep.subr.bf16.mxu0 %v2160
    %2379 = vmatpush1.bf16.msra.mxu0 %v2159
    %2380 = vmatprep.subr.bf16.mxu0 %v2166
    %2381 = vmatpush1.bf16.msra.mxu0 %v2165
    %2382 = vmatprep.subr.bf16.mxu0 %v2172
    %2383 = vmatpush1.bf16.msra.mxu0 %v2171
    %2384 = vmatprep.subr.bf16.mxu0 %v2178
    %2385 = vmatpush1.bf16.msra.mxu0 %v2177
    %2386 = vmatprep.subr.bf16.mxu0 %v2184
    %2387 = vmatpush1.bf16.msra.mxu0 %v2183
    %2388 = vmatprep.subr.bf16.mxu0 %v2190
    %2389 = vmatpush1.bf16.msra.mxu0 %v2189
    %2390 = vmatprep.subr.bf16.mxu0 %v2196
    %2391 = vmatpush1.bf16.msra.mxu0 %v2195
    %2392 = vmatprep.subr.bf16.mxu0 %v2202
    %2393 = vmatpush1.bf16.msra.mxu0 %v2201
    %2394 = vmatprep.subr.bf16.mxu0 %v2208
    %2395 = vmatpush1.bf16.msra.mxu0 %v2207
    %2396 = vmatprep.subr.bf16.mxu0 %v2214
    %2397 = vmatpush1.bf16.msra.mxu0 %v2213
    %2398 = vmatprep.subr.bf16.mxu0 %v2220
    %2399 = vmatpush1.bf16.msra.mxu0 %v2219
    %2400 = vmatprep.subr.bf16.mxu0 %v2226
    %2401 = vmatpush1.bf16.msra.mxu0 %v2225
    %2402 = vmatprep.subr.bf16.mxu0 %v2232
    %2403 = vmatpush1.bf16.msra.mxu0 %v2231
    %2404 = vmatprep.mubr.bf16.mxu0 %v275
    %2405 = vmatmul.mubr.bf16.gmra.mrb[0].mxu0 %v274
    %v2406 = vpop.f32.mrb[0].mxu0
    %v2407 = vadd.f32 %v1838, %v2406
    %v2408 = vpop.f32.mrb[0].mxu0
    %v2409 = vadd.f32 %v1842, %v2408
    %v2410 = vpop.f32.mrb[0].mxu0
    %v2411 = vpop.f32.mrb[0].mxu0
    %2412 = vdwg.mxu0
    %2413 = vmatprep.subr.bf16.mxu0 %v2144
    %2414 = vmatpush1.bf16.msra.mxu0 %v2143
    %2415 = vmatprep.subr.bf16.mxu0 %v2150
    %2416 = vmatpush1.bf16.msra.mxu0 %v2149
    %2417 = vmatprep.subr.bf16.mxu0 %v2156
    %2418 = vmatpush1.bf16.msra.mxu0 %v2155
    %2419 = vmatprep.subr.bf16.mxu0 %v2162
    %2420 = vmatpush1.bf16.msra.mxu0 %v2161
    %2421 = vmatprep.subr.bf16.mxu0 %v2168
    %2422 = vmatpush1.bf16.msra.mxu0 %v2167
    %2423 = vmatprep.subr.bf16.mxu0 %v2174
    %2424 = vmatpush1.bf16.msra.mxu0 %v2173
    %2425 = vmatprep.subr.bf16.mxu0 %v2180
    %2426 = vmatpush1.bf16.msra.mxu0 %v2179
    %2427 = vmatprep.subr.bf16.mxu0 %v2186
    %2428 = vmatpush1.bf16.msra.mxu0 %v2185
    %2429 = vmatprep.subr.bf16.mxu0 %v2192
    %2430 = vmatpush1.bf16.msra.mxu0 %v2191
    %2431 = vmatprep.subr.bf16.mxu0 %v2198
    %2432 = vmatpush1.bf16.msra.mxu0 %v2197
    %2433 = vmatprep.subr.bf16.mxu0 %v2204
    %2434 = vmatpush1.bf16.msra.mxu0 %v2203
    %2435 = vmatprep.subr.bf16.mxu0 %v2210
    %2436 = vmatpush1.bf16.msra.mxu0 %v2209
    %2437 = vmatprep.subr.bf16.mxu0 %v2216
    %2438 = vmatpush1.bf16.msra.mxu0 %v2215
    %2439 = vmatprep.subr.bf16.mxu0 %v2222
    %2440 = vmatpush1.bf16.msra.mxu0 %v2221
    %2441 = vmatprep.subr.bf16.mxu0 %v2228
    %2442 = vmatpush1.bf16.msra.mxu0 %v2227
    %2443 = vmatprep.subr.bf16.mxu0 %v2234
    %2444 = vmatpush1.bf16.msra.mxu0 %v2233
    %2445 = vmatprep.mubr.bf16.mxu0 %v275
    %2446 = vmatmul.mubr.bf16.gmra.mrb[0].mxu0 %v274
    %v2447 = vpop.f32.mrb[0].mxu0
    %v2448 = vadd.f32 %v1846, %v2447
    %v2449 = vpop.f32.mrb[0].mxu0
    %v2450 = vadd.f32 %v1850, %v2449
    %v2451 = vpop.f32.mrb[0].mxu0
    %v2452 = vpop.f32.mrb[0].mxu0
    %2453 = vdwg.mxu0
    %v2454 = vld [vmem:[#allocation9] sm:$0xf]
    %v2456 = vlaneseq
    %v2457 = vshrl.u32 %v2456, 7
    %v2458 = vsub.s32 1, %v2457
    %v2459 = vrot.slane %v2454, %v2458
    %v2460 = vlaneseq
    %v2461 = vshrl.u32 %v2460, 7
    %v2462 = vsub.s32 3, %v2461
    %v2463 = vrot.slane %v2454, %v2462
    %v2466 = vlaneseq
    %v2467 = vshrl.u32 %v2466, 7
    %v2468 = vsub.s32 1, %v2467
    %v2469 = vrot.slane %v2459, %v2468
    %v2470 = vlaneseq
    %v2471 = vshrl.u32 %v2470, 7
    %v2472 = vsub.s32 1, %v2471
    %v2473 = vrot.slane %v2463, %v2472
    %v2474 = vmul.f32 %v150, %v2469
    %v2475 = vmul.f32 %v151, %v2473
    %v2476 = vmul.f32 %v152, %v2469
    %v2477 = vmul.f32 %v153, %v2473
    %v2478 = vmul.f32 %v154, %v2469
    %v2479 = vmul.f32 %v155, %v2473
    %v2480 = vmul.f32 %v156, %v2469
    %v2481 = vmul.f32 %v157, %v2473
    %v2482 = vlaneseq
    %v2483 = vshrl.u32 %v2482, 7
    %v2484 = vsub.s32 0, %v2483
    %v2485 = vrot.slane %v2454, %v2484
    %v2486 = vlaneseq
    %v2487 = vshrl.u32 %v2486, 7
    %v2488 = vsub.s32 2, %v2487
    %v2489 = vrot.slane %v2454, %v2488
    %v2492 = vlaneseq
    %v2493 = vshrl.u32 %v2492, 7
    %v2494 = vsub.s32 0, %v2493
    %v2495 = vrot.slane %v2485, %v2494
    %v2496 = vlaneseq
    %v2497 = vshrl.u32 %v2496, 7
    %v2498 = vsub.s32 0, %v2497
    %v2499 = vrot.slane %v2489, %v2498
    %v2500 = vmul.f32 %v148, %v2495
    %v2501 = vmul.f32 %v149, %v2499
    %v2502 = vadd.f32 %v2474, %v2500
    %v2503 = vadd.f32 %v2475, %v2501
    %v2504 = vadd.f32 %v2476, %v2500
    %v2505 = vadd.f32 %v2477, %v2501
    %v2506 = vadd.f32 %v2478, %v2500
    %v2507 = vadd.f32 %v2479, %v2501
    %v2508 = vadd.f32 %v2480, %v2500
    %v2509 = vadd.f32 %v2481, %v2501
    %v2510 = vadd.f32 %v2502, %v2503
    %2511 = vadd.xlane.f32.xlu0 %v2510
    %v2512 = vpop.xlane.xlu0 %2511
    %v2513 = vadd.f32 %v2504, %v2505
    %2514 = vadd.xlane.f32.xlu0 %v2513
    %v2515 = vpop.xlane.xlu0 %2514
    %v2516 = vadd.f32 %v2506, %v2507
    %2517 = vadd.xlane.f32.xlu0 %v2516
    %v2518 = vpop.xlane.xlu0 %2517
    %v2519 = vadd.f32 %v2508, %v2509
    %2520 = vadd.xlane.f32.xlu0 %v2519
    %v2521 = vpop.xlane.xlu0 %2520
    %s2522 = sld [smem:[#allocation2]]
    %v2523 = vstv %s2522
    %vm2524 = vcmp.lt.s32.totalorder %v160, %v2523
    %v2529 = vlaneseq
    %v2530 = vshrl.u32 %v2529, 7
    %v2531 = vsub.s32 %v160, %v2530
    %v2532 = vrot.slane %v2512, %v2531
    %v2533 = vlaneseq
    %v2534 = vshrl.u32 %v2533, 7
    %v2535 = vsub.s32 %v160, %v2534
    %v2536 = vrot.slane %v2515, %v2535
    %v2537 = vlaneseq
    %v2538 = vshrl.u32 %v2537, 7
    %v2539 = vsub.s32 %v160, %v2538
    %v2540 = vrot.slane %v2518, %v2539
    %v2541 = vlaneseq
    %v2542 = vshrl.u32 %v2541, 7
    %v2543 = vsub.s32 %v160, %v2542
    %v2544 = vrot.slane %v2521, %v2543
    %vm2545 = vcmask 1041409
    %v2546 = vsel %vm2545, %v2536, %v2532
    %vm2547 = vcmask 1042434
    %v2548 = vsel %vm2547, %v2540, %v2546
    %vm2549 = vcmask 1043459
    %v2550 = vsel %vm2549, %v2544, %v2548
    %v2552 = vsel %vm2524, %v2550, -1e+30
    %vm2553 = vcmask 60416
    %v2554 = vsel %vm2553, %v2552, -inf
    %2555 = vmax.xlane.f32.xlu0 %v2554
    %v2556 = vpop.xlane.xlu0 %2555
    %v2557 = vsub.f32 %v2552, %v2556
    %v2558 = vmul.f32 %v2557, 1.442695
    %v2559 = vpow.pop %v2558
    %v2560 = vsel %vm2553, %v2559, 0.0
    %2561 = vadd.xlane.f32.xlu0 %v2560
    %v2562 = vpop.xlane.xlu0 %2561
    %v2563 = vrcp.pop %v2562
    %v2564 = vmul.f32 %v2559, %v2563
    %v2565 = vlaneseq
    %v2566 = vshrl.u32 %v2565, 7
    %v2567 = vsub.s32 0, %v2566
    %v2568 = vrot.slane %v2564, %v2567
    %2570 = vbcast.lane.b32.xlu0 %v2568, 256
    %v2571 = vpop.permute.xlu0 %2570
    %v2572 = vlaneseq
    %v2573 = vshrl.u32 %v2572, 7
    %v2574 = vsub.s32 1, %v2573
    %v2575 = vrot.slane %v2564, %v2574
    %2577 = vbcast.lane.b32.xlu0 %v2575, 256
    %v2578 = vpop.permute.xlu0 %2577
    %v2579 = vlaneseq
    %v2580 = vshrl.u32 %v2579, 7
    %v2581 = vsub.s32 2, %v2580
    %v2582 = vrot.slane %v2564, %v2581
    %2584 = vbcast.lane.b32.xlu0 %v2582, 256
    %v2585 = vpop.permute.xlu0 %2584
    %v2586 = vlaneseq
    %v2587 = vshrl.u32 %v2586, 7
    %v2588 = vsub.s32 3, %v2587
    %v2589 = vrot.slane %v2564, %v2588
    %2591 = vbcast.lane.b32.xlu0 %v2589, 256
    %v2592 = vpop.permute.xlu0 %2591
    %v2593 = vmul.f32 %v2571, %v150
    %v2594 = vmul.f32 %v2571, %v151
    %v2595 = vmul.f32 %v2578, %v152
    %v2596 = vmul.f32 %v2578, %v153
    %v2597 = vmul.f32 %v2585, %v154
    %v2598 = vmul.f32 %v2585, %v155
    %v2599 = vmul.f32 %v2592, %v156
    %v2600 = vmul.f32 %v2592, %v157
    %v2601 = vadd.f32 %v2593, %v2595
    %v2602 = vadd.f32 %v2601, %v2597
    %v2603 = vadd.f32 %v2602, %v2599
    %v2604 = vadd.f32 %v2594, %v2596
    %v2605 = vadd.f32 %v2604, %v2598
    %v2606 = vadd.f32 %v2605, %v2600
    %v2607 = vpack.c.bf16 %v266, %v266
    %v2608 = vpack.c.bf16 %v268, %v268
    %v2609 = vld [vmem:[#allocation11] sm:$0xff]
    %v2610 = vld [vmem:[#allocation11 + $0x8] sm:$0xff]
    %v2611 = vld [vmem:[#allocation11 + $0x10] sm:$0xff]
    %v2612 = vld [vmem:[#allocation11 + $0x18] sm:$0xff]
    %v2613 = vld [vmem:[#allocation11 + $0x20] sm:$0xff]
    %v2614 = vld [vmem:[#allocation11 + $0x28] sm:$0xff]
    %v2615 = vld [vmem:[#allocation11 + $0x30] sm:$0xff]
    %v2616 = vld [vmem:[#allocation11 + $0x38] sm:$0xff]
    %v2617 = vld [vmem:[#allocation11 + $0x40] sm:$0xff]
    %v2618 = vld [vmem:[#allocation11 + $0x48] sm:$0xff]
    %v2619 = vld [vmem:[#allocation11 + $0x50] sm:$0xff]
    %v2620 = vld [vmem:[#allocation11 + $0x58] sm:$0xff]
    %v2621 = vld [vmem:[#allocation11 + $0x60] sm:$0xff]
    %v2622 = vld [vmem:[#allocation11 + $0x68] sm:$0xff]
    %v2623 = vld [vmem:[#allocation11 + $0x70] sm:$0xff]
    %v2624 = vld [vmem:[#allocation11 + $0x78] sm:$0xff]
    %v2625 = vld [vmem:[#allocation11 + $0x80] sm:$0xff]
    %v2626 = vld [vmem:[#allocation11 + $0x88] sm:$0xff]
    %v2627 = vld [vmem:[#allocation11 + $0x90] sm:$0xff]
    %v2628 = vld [vmem:[#allocation11 + $0x98] sm:$0xff]
    %v2629 = vld [vmem:[#allocation11 + $0xa0] sm:$0xff]
    %v2630 = vld [vmem:[#allocation11 + $0xa8] sm:$0xff]
    %v2631 = vld [vmem:[#allocation11 + $0xb0] sm:$0xff]
    %v2632 = vld [vmem:[#allocation11 + $0xb8] sm:$0xff]
    %v2633 = vld [vmem:[#allocation11 + $0xc0] sm:$0xff]
    %v2634 = vld [vmem:[#allocation11 + $0xc8] sm:$0xff]
    %v2635 = vld [vmem:[#allocation11 + $0xd0] sm:$0xff]
    %v2636 = vld [vmem:[#allocation11 + $0xd8] sm:$0xff]
    %v2637 = vld [vmem:[#allocation11 + $0xe0] sm:$0xff]
    %v2638 = vld [vmem:[#allocation11 + $0xe8] sm:$0xff]
    %v2639 = vld [vmem:[#allocation11 + $0xf0] sm:$0xff]
    %v2640 = vld [vmem:[#allocation11 + $0xf8] sm:$0xff]
    %v2641 = vld [vmem:[#allocation11 + $0x100] sm:$0xff]
    %v2642 = vld [vmem:[#allocation11 + $0x108] sm:$0xff]
    %v2643 = vld [vmem:[#allocation11 + $0x110] sm:$0xff]
    %v2644 = vld [vmem:[#allocation11 + $0x118] sm:$0xff]
    %v2645 = vld [vmem:[#allocation11 + $0x120] sm:$0xff]
    %v2646 = vld [vmem:[#allocation11 + $0x128] sm:$0xff]
    %v2647 = vld [vmem:[#allocation11 + $0x130] sm:$0xff]
    %v2648 = vld [vmem:[#allocation11 + $0x138] sm:$0xff]
    %v2649 = vld [vmem:[#allocation11 + $0x140] sm:$0xff]
    %v2650 = vld [vmem:[#allocation11 + $0x148] sm:$0xff]
    %v2651 = vld [vmem:[#allocation11 + $0x150] sm:$0xff]
    %v2652 = vld [vmem:[#allocation11 + $0x158] sm:$0xff]
    %v2653 = vld [vmem:[#allocation11 + $0x160] sm:$0xff]
    %v2654 = vld [vmem:[#allocation11 + $0x168] sm:$0xff]
    %v2655 = vld [vmem:[#allocation11 + $0x170] sm:$0xff]
    %v2656 = vld [vmem:[#allocation11 + $0x178] sm:$0xff]
    %v2657 = vld [vmem:[#allocation11 + $0x180] sm:$0xff]
    %v2658 = vld [vmem:[#allocation11 + $0x188] sm:$0xff]
    %v2659 = vld [vmem:[#allocation11 + $0x190] sm:$0xff]
    %v2660 = vld [vmem:[#allocation11 + $0x198] sm:$0xff]
    %v2661 = vld [vmem:[#allocation11 + $0x1a0] sm:$0xff]
    %v2662 = vld [vmem:[#allocation11 + $0x1a8] sm:$0xff]
    %v2663 = vld [vmem:[#allocation11 + $0x1b0] sm:$0xff]
    %v2664 = vld [vmem:[#allocation11 + $0x1b8] sm:$0xff]
    %v2665 = vld [vmem:[#allocation11 + $0x1c0] sm:$0xff]
    %v2666 = vld [vmem:[#allocation11 + $0x1c8] sm:$0xff]
    %v2667 = vld [vmem:[#allocation11 + $0x1d0] sm:$0xff]
    %v2668 = vld [vmem:[#allocation11 + $0x1d8] sm:$0xff]
    %v2669 = vld [vmem:[#allocation11 + $0x1e0] sm:$0xff]
    %v2670 = vld [vmem:[#allocation11 + $0x1e8] sm:$0xff]
    %v2671 = vld [vmem:[#allocation11 + $0x1f0] sm:$0xff]
    %v2672 = vld [vmem:[#allocation11 + $0x1f8] sm:$0xff]
    %v2673 = vld [vmem:[#allocation11 + $0x200] sm:$0xff]
    %v2674 = vld [vmem:[#allocation11 + $0x208] sm:$0xff]
    %v2675 = vld [vmem:[#allocation11 + $0x210] sm:$0xff]
    %v2676 = vld [vmem:[#allocation11 + $0x218] sm:$0xff]
    %v2677 = vld [vmem:[#allocation11 + $0x220] sm:$0xff]
    %v2678 = vld [vmem:[#allocation11 + $0x228] sm:$0xff]
    %v2679 = vld [vmem:[#allocation11 + $0x230] sm:$0xff]
    %v2680 = vld [vmem:[#allocation11 + $0x238] sm:$0xff]
    %v2681 = vld [vmem:[#allocation11 + $0x240] sm:$0xff]
    %v2682 = vld [vmem:[#allocation11 + $0x248] sm:$0xff]
    %v2683 = vld [vmem:[#allocation11 + $0x250] sm:$0xff]
    %v2684 = vld [vmem:[#allocation11 + $0x258] sm:$0xff]
    %v2685 = vld [vmem:[#allocation11 + $0x260] sm:$0xff]
    %v2686 = vld [vmem:[#allocation11 + $0x268] sm:$0xff]
    %v2687 = vld [vmem:[#allocation11 + $0x270] sm:$0xff]
    %v2688 = vld [vmem:[#allocation11 + $0x278] sm:$0xff]
    %v2689 = vld [vmem:[#allocation11 + $0x280] sm:$0xff]
    %v2690 = vld [vmem:[#allocation11 + $0x288] sm:$0xff]
    %v2691 = vld [vmem:[#allocation11 + $0x290] sm:$0xff]
    %v2692 = vld [vmem:[#allocation11 + $0x298] sm:$0xff]
    %v2693 = vld [vmem:[#allocation11 + $0x2a0] sm:$0xff]
    %v2694 = vld [vmem:[#allocation11 + $0x2a8] sm:$0xff]
    %v2695 = vld [vmem:[#allocation11 + $0x2b0] sm:$0xff]
    %v2696 = vld [vmem:[#allocation11 + $0x2b8] sm:$0xff]
    %v2697 = vld [vmem:[#allocation11 + $0x2c0] sm:$0xff]
    %v2698 = vld [vmem:[#allocation11 + $0x2c8] sm:$0xff]
    %v2699 = vld [vmem:[#allocation11 + $0x2d0] sm:$0xff]
    %v2700 = vld [vmem:[#allocation11 + $0x2d8] sm:$0xff]
    %v2701 = vld [vmem:[#allocation11 + $0x2e0] sm:$0xff]
    %v2702 = vld [vmem:[#allocation11 + $0x2e8] sm:$0xff]
    %v2703 = vld [vmem:[#allocation11 + $0x2f0] sm:$0xff]
    %v2704 = vld [vmem:[#allocation11 + $0x2f8] sm:$0xff]
    %v2705 = vpack.c.bf16 %v2603, %v2603
    %v2706 = vpack.c.bf16 %v2606, %v2606
    %s2707 = scalar_lea.vmem [#allocation11], 768
    %v2708 = vld [vmem:[%s2707] sm:$0xff]
    %v2709 = vld [vmem:[%s2707 + $0x8] sm:$0xff]
    %v2710 = vld [vmem:[%s2707 + $0x10] sm:$0xff]
    %v2711 = vld [vmem:[%s2707 + $0x18] sm:$0xff]
    %v2712 = vld [vmem:[%s2707 + $0x20] sm:$0xff]
    %v2713 = vld [vmem:[%s2707 + $0x28] sm:$0xff]
    %v2714 = vld [vmem:[%s2707 + $0x30] sm:$0xff]
    %v2715 = vld [vmem:[%s2707 + $0x38] sm:$0xff]
    %v2716 = vld [vmem:[%s2707 + $0x40] sm:$0xff]
    %v2717 = vld [vmem:[%s2707 + $0x48] sm:$0xff]
    %v2718 = vld [vmem:[%s2707 + $0x50] sm:$0xff]
    %v2719 = vld [vmem:[%s2707 + $0x58] sm:$0xff]
    %v2720 = vld [vmem:[%s2707 + $0x60] sm:$0xff]
    %v2721 = vld [vmem:[%s2707 + $0x68] sm:$0xff]
    %v2722 = vld [vmem:[%s2707 + $0x70] sm:$0xff]
    %v2723 = vld [vmem:[%s2707 + $0x78] sm:$0xff]
    %v2724 = vld [vmem:[%s2707 + $0x80] sm:$0xff]
    %v2725 = vld [vmem:[%s2707 + $0x88] sm:$0xff]
    %v2726 = vld [vmem:[%s2707 + $0x90] sm:$0xff]
    %v2727 = vld [vmem:[%s2707 + $0x98] sm:$0xff]
    %v2728 = vld [vmem:[%s2707 + $0xa0] sm:$0xff]
    %v2729 = vld [vmem:[%s2707 + $0xa8] sm:$0xff]
    %v2730 = vld [vmem:[%s2707 + $0xb0] sm:$0xff]
    %v2731 = vld [vmem:[%s2707 + $0xb8] sm:$0xff]
    %v2732 = vld [vmem:[%s2707 + $0xc0] sm:$0xff]
    %v2733 = vld [vmem:[%s2707 + $0xc8] sm:$0xff]
    %v2734 = vld [vmem:[%s2707 + $0xd0] sm:$0xff]
    %v2735 = vld [vmem:[%s2707 + $0xd8] sm:$0xff]
    %v2736 = vld [vmem:[%s2707 + $0xe0] sm:$0xff]
    %v2737 = vld [vmem:[%s2707 + $0xe8] sm:$0xff]
    %v2738 = vld [vmem:[%s2707 + $0xf0] sm:$0xff]
    %v2739 = vld [vmem:[%s2707 + $0xf8] sm:$0xff]
    %v2740 = vld [vmem:[%s2707 + $0x100] sm:$0xff]
    %v2741 = vld [vmem:[%s2707 + $0x108] sm:$0xff]
    %v2742 = vld [vmem:[%s2707 + $0x110] sm:$0xff]
    %v2743 = vld [vmem:[%s2707 + $0x118] sm:$0xff]
    %v2744 = vld [vmem:[%s2707 + $0x120] sm:$0xff]
    %v2745 = vld [vmem:[%s2707 + $0x128] sm:$0xff]
    %v2746 = vld [vmem:[%s2707 + $0x130] sm:$0xff]
    %v2747 = vld [vmem:[%s2707 + $0x138] sm:$0xff]
    %v2748 = vld [vmem:[%s2707 + $0x140] sm:$0xff]
    %v2749 = vld [vmem:[%s2707 + $0x148] sm:$0xff]
    %v2750 = vld [vmem:[%s2707 + $0x150] sm:$0xff]
    %v2751 = vld [vmem:[%s2707 + $0x158] sm:$0xff]
    %v2752 = vld [vmem:[%s2707 + $0x160] sm:$0xff]
    %v2753 = vld [vmem:[%s2707 + $0x168] sm:$0xff]
    %v2754 = vld [vmem:[%s2707 + $0x170] sm:$0xff]
    %v2755 = vld [vmem:[%s2707 + $0x178] sm:$0xff]
    %v2756 = vld [vmem:[%s2707 + $0x180] sm:$0xff]
    %v2757 = vld [vmem:[%s2707 + $0x188] sm:$0xff]
    %v2758 = vld [vmem:[%s2707 + $0x190] sm:$0xff]
    %v2759 = vld [vmem:[%s2707 + $0x198] sm:$0xff]
    %v2760 = vld [vmem:[%s2707 + $0x1a0] sm:$0xff]
    %v2761 = vld [vmem:[%s2707 + $0x1a8] sm:$0xff]
    %v2762 = vld [vmem:[%s2707 + $0x1b0] sm:$0xff]
    %v2763 = vld [vmem:[%s2707 + $0x1b8] sm:$0xff]
    %v2764 = vld [vmem:[%s2707 + $0x1c0] sm:$0xff]
    %v2765 = vld [vmem:[%s2707 + $0x1c8] sm:$0xff]
    %v2766 = vld [vmem:[%s2707 + $0x1d0] sm:$0xff]
    %v2767 = vld [vmem:[%s2707 + $0x1d8] sm:$0xff]
    %v2768 = vld [vmem:[%s2707 + $0x1e0] sm:$0xff]
    %v2769 = vld [vmem:[%s2707 + $0x1e8] sm:$0xff]
    %v2770 = vld [vmem:[%s2707 + $0x1f0] sm:$0xff]
    %v2771 = vld [vmem:[%s2707 + $0x1f8] sm:$0xff]
    %v2772 = vld [vmem:[%s2707 + $0x200] sm:$0xff]
    %v2773 = vld [vmem:[%s2707 + $0x208] sm:$0xff]
    %v2774 = vld [vmem:[%s2707 + $0x210] sm:$0xff]
    %v2775 = vld [vmem:[%s2707 + $0x218] sm:$0xff]
    %v2776 = vld [vmem:[%s2707 + $0x220] sm:$0xff]
    %v2777 = vld [vmem:[%s2707 + $0x228] sm:$0xff]
    %v2778 = vld [vmem:[%s2707 + $0x230] sm:$0xff]
    %v2779 = vld [vmem:[%s2707 + $0x238] sm:$0xff]
    %v2780 = vld [vmem:[%s2707 + $0x240] sm:$0xff]
    %v2781 = vld [vmem:[%s2707 + $0x248] sm:$0xff]
    %v2782 = vld [vmem:[%s2707 + $0x250] sm:$0xff]
    %v2783 = vld [vmem:[%s2707 + $0x258] sm:$0xff]
    %v2784 = vld [vmem:[%s2707 + $0x260] sm:$0xff]
    %v2785 = vld [vmem:[%s2707 + $0x268] sm:$0xff]
    %v2786 = vld [vmem:[%s2707 + $0x270] sm:$0xff]
    %v2787 = vld [vmem:[%s2707 + $0x278] sm:$0xff]
    %v2788 = vld [vmem:[%s2707 + $0x280] sm:$0xff]
    %v2789 = vld [vmem:[%s2707 + $0x288] sm:$0xff]
    %v2790 = vld [vmem:[%s2707 + $0x290] sm:$0xff]
    %v2791 = vld [vmem:[%s2707 + $0x298] sm:$0xff]
    %v2792 = vld [vmem:[%s2707 + $0x2a0] sm:$0xff]
    %v2793 = vld [vmem:[%s2707 + $0x2a8] sm:$0xff]
    %v2794 = vld [vmem:[%s2707 + $0x2b0] sm:$0xff]
    %v2795 = vld [vmem:[%s2707 + $0x2b8] sm:$0xff]
    %v2796 = vld [vmem:[%s2707 + $0x2c0] sm:$0xff]
    %v2797 = vld [vmem:[%s2707 + $0x2c8] sm:$0xff]
    %v2798 = vld [vmem:[%s2707 + $0x2d0] sm:$0xff]
    %v2799 = vld [vmem:[%s2707 + $0x2d8] sm:$0xff]
    %v2800 = vld [vmem:[%s2707 + $0x2e0] sm:$0xff]
    %v2801 = vld [vmem:[%s2707 + $0x2e8] sm:$0xff]
    %v2802 = vld [vmem:[%s2707 + $0x2f0] sm:$0xff]
    %v2803 = vld [vmem:[%s2707 + $0x2f8] sm:$0xff]
    %v2900 = vunpack.c.l.b16 %v2708
    %v2901 = vunpack.c.h.b16 %v2708
    %v2902 = vunpack.c.l.b16 %v2709
    %v2903 = vunpack.c.h.b16 %v2709
    %v2904 = vunpack.c.l.b16 %v2710
    %v2905 = vunpack.c.h.b16 %v2710
    %v2906 = vunpack.c.l.b16 %v2711
    %v2907 = vunpack.c.h.b16 %v2711
    %v2908 = vunpack.c.l.b16 %v2712
    %v2909 = vunpack.c.h.b16 %v2712
    %v2910 = vunpack.c.l.b16 %v2713
    %v2911 = vunpack.c.h.b16 %v2713
    %v2912 = vunpack.c.l.b16 %v2714
    %v2913 = vunpack.c.h.b16 %v2714
    %v2914 = vunpack.c.l.b16 %v2715
    %v2915 = vunpack.c.h.b16 %v2715
    %v2916 = vunpack.c.l.b16 %v2716
    %v2917 = vunpack.c.h.b16 %v2716
    %v2918 = vunpack.c.l.b16 %v2717
    %v2919 = vunpack.c.h.b16 %v2717
    %v2920 = vunpack.c.l.b16 %v2718
    %v2921 = vunpack.c.h.b16 %v2718
    %v2922 = vunpack.c.l.b16 %v2719
    %v2923 = vunpack.c.h.b16 %v2719
    %v2924 = vunpack.c.l.b16 %v2720
    %v2925 = vunpack.c.h.b16 %v2720
    %v2926 = vunpack.c.l.b16 %v2721
    %v2927 = vunpack.c.h.b16 %v2721
    %v2928 = vunpack.c.l.b16 %v2722
    %v2929 = vunpack.c.h.b16 %v2722
    %v2930 = vunpack.c.l.b16 %v2723
    %v2931 = vunpack.c.h.b16 %v2723
    %v2932 = vunpack.c.l.b16 %v2724
    %v2933 = vunpack.c.h.b16 %v2724
    %v2934 = vunpack.c.l.b16 %v2725
    %v2935 = vunpack.c.h.b16 %v2725
    %v2936 = vunpack.c.l.b16 %v2726
    %v2937 = vunpack.c.h.b16 %v2726
    %v2938 = vunpack.c.l.b16 %v2727
    %v2939 = vunpack.c.h.b16 %v2727
    %v2940 = vunpack.c.l.b16 %v2728
    %v2941 = vunpack.c.h.b16 %v2728
    %v2942 = vunpack.c.l.b16 %v2729
    %v2943 = vunpack.c.h.b16 %v2729
    %v2944 = vunpack.c.l.b16 %v2730
    %v2945 = vunpack.c.h.b16 %v2730
    %v2946 = vunpack.c.l.b16 %v2731
    %v2947 = vunpack.c.h.b16 %v2731
    %v2948 = vunpack.c.l.b16 %v2732
    %v2949 = vunpack.c.h.b16 %v2732
    %v2950 = vunpack.c.l.b16 %v2733
    %v2951 = vunpack.c.h.b16 %v2733
    %v2952 = vunpack.c.l.b16 %v2734
    %v2953 = vunpack.c.h.b16 %v2734
    %v2954 = vunpack.c.l.b16 %v2735
    %v2955 = vunpack.c.h.b16 %v2735
    %v2956 = vunpack.c.l.b16 %v2736
    %v2957 = vunpack.c.h.b16 %v2736
    %v2958 = vunpack.c.l.b16 %v2737
    %v2959 = vunpack.c.h.b16 %v2737
    %v2960 = vunpack.c.l.b16 %v2738
    %v2961 = vunpack.c.h.b16 %v2738
    %v2962 = vunpack.c.l.b16 %v2739
    %v2963 = vunpack.c.h.b16 %v2739
    %v2964 = vunpack.c.l.b16 %v2740
    %v2965 = vunpack.c.h.b16 %v2740
    %v2966 = vunpack.c.l.b16 %v2741
    %v2967 = vunpack.c.h.b16 %v2741
    %v2968 = vunpack.c.l.b16 %v2742
    %v2969 = vunpack.c.h.b16 %v2742
    %v2970 = vunpack.c.l.b16 %v2743
    %v2971 = vunpack.c.h.b16 %v2743
    %v2972 = vunpack.c.l.b16 %v2744
    %v2973 = vunpack.c.h.b16 %v2744
    %v2974 = vunpack.c.l.b16 %v2745
    %v2975 = vunpack.c.h.b16 %v2745
    %v2976 = vunpack.c.l.b16 %v2746
    %v2977 = vunpack.c.h.b16 %v2746
    %v2978 = vunpack.c.l.b16 %v2747
    %v2979 = vunpack.c.h.b16 %v2747
    %v2980 = vunpack.c.l.b16 %v2748
    %v2981 = vunpack.c.h.b16 %v2748
    %v2982 = vunpack.c.l.b16 %v2749
    %v2983 = vunpack.c.h.b16 %v2749
    %v2984 = vunpack.c.l.b16 %v2750
    %v2985 = vunpack.c.h.b16 %v2750
    %v2986 = vunpack.c.l.b16 %v2751
    %v2987 = vunpack.c.h.b16 %v2751
    %v2988 = vunpack.c.l.b16 %v2752
    %v2989 = vunpack.c.h.b16 %v2752
    %v2990 = vunpack.c.l.b16 %v2753
    %v2991 = vunpack.c.h.b16 %v2753
    %v2992 = vunpack.c.l.b16 %v2754
    %v2993 = vunpack.c.h.b16 %v2754
    %v2994 = vunpack.c.l.b16 %v2755
    %v2995 = vunpack.c.h.b16 %v2755
    %v2996 = vunpack.c.l.b16 %v2756
    %v2997 = vunpack.c.h.b16 %v2756
    %v2998 = vunpack.c.l.b16 %v2757
    %v2999 = vunpack.c.h.b16 %v2757
    %v3000 = vunpack.c.l.b16 %v2758
    %v3001 = vunpack.c.h.b16 %v2758
    %v3002 = vunpack.c.l.b16 %v2759
    %v3003 = vunpack.c.h.b16 %v2759
    %v3004 = vunpack.c.l.b16 %v2760
    %v3005 = vunpack.c.h.b16 %v2760
    %v3006 = vunpack.c.l.b16 %v2761
    %v3007 = vunpack.c.h.b16 %v2761
    %v3008 = vunpack.c.l.b16 %v2762
    %v3009 = vunpack.c.h.b16 %v2762
    %v3010 = vunpack.c.l.b16 %v2763
    %v3011 = vunpack.c.h.b16 %v2763
    %v3012 = vunpack.c.l.b16 %v2764
    %v3013 = vunpack.c.h.b16 %v2764
    %v3014 = vunpack.c.l.b16 %v2765
    %v3015 = vunpack.c.h.b16 %v2765
    %v3016 = vunpack.c.l.b16 %v2766
    %v3017 = vunpack.c.h.b16 %v2766
    %v3018 = vunpack.c.l.b16 %v2767
    %v3019 = vunpack.c.h.b16 %v2767
    %v3020 = vunpack.c.l.b16 %v2768
    %v3021 = vunpack.c.h.b16 %v2768
    %v3022 = vunpack.c.l.b16 %v2769
    %v3023 = vunpack.c.h.b16 %v2769
    %v3024 = vunpack.c.l.b16 %v2770
    %v3025 = vunpack.c.h.b16 %v2770
    %v3026 = vunpack.c.l.b16 %v2771
    %v3027 = vunpack.c.h.b16 %v2771
    %v3028 = vunpack.c.l.b16 %v2772
    %v3029 = vunpack.c.h.b16 %v2772
    %v3030 = vunpack.c.l.b16 %v2773
    %v3031 = vunpack.c.h.b16 %v2773
    %v3032 = vunpack.c.l.b16 %v2774
    %v3033 = vunpack.c.h.b16 %v2774
    %v3034 = vunpack.c.l.b16 %v2775
    %v3035 = vunpack.c.h.b16 %v2775
    %v3036 = vunpack.c.l.b16 %v2776
    %v3037 = vunpack.c.h.b16 %v2776
    %v3038 = vunpack.c.l.b16 %v2777
    %v3039 = vunpack.c.h.b16 %v2777
    %v3040 = vunpack.c.l.b16 %v2778
    %v3041 = vunpack.c.h.b16 %v2778
    %v3042 = vunpack.c.l.b16 %v2779
    %v3043 = vunpack.c.h.b16 %v2779
    %v3044 = vunpack.c.l.b16 %v2780
    %v3045 = vunpack.c.h.b16 %v2780
    %v3046 = vunpack.c.l.b16 %v2781
    %v3047 = vunpack.c.h.b16 %v2781
    %v3048 = vunpack.c.l.b16 %v2782
    %v3049 = vunpack.c.h.b16 %v2782
    %v3050 = vunpack.c.l.b16 %v2783
    %v3051 = vunpack.c.h.b16 %v2783
    %v3052 = vunpack.c.l.b16 %v2784
    %v3053 = vunpack.c.h.b16 %v2784
    %v3054 = vunpack.c.l.b16 %v2785
    %v3055 = vunpack.c.h.b16 %v2785
    %v3056 = vunpack.c.l.b16 %v2786
    %v3057 = vunpack.c.h.b16 %v2786
    %v3058 = vunpack.c.l.b16 %v2787
    %v3059 = vunpack.c.h.b16 %v2787
    %v3060 = vunpack.c.l.b16 %v2788
    %v3061 = vunpack.c.h.b16 %v2788
    %v3062 = vunpack.c.l.b16 %v2789
    %v3063 = vunpack.c.h.b16 %v2789
    %v3064 = vunpack.c.l.b16 %v2790
    %v3065 = vunpack.c.h.b16 %v2790
    %v3066 = vunpack.c.l.b16 %v2791
    %v3067 = vunpack.c.h.b16 %v2791
    %v3068 = vunpack.c.l.b16 %v2792
    %v3069 = vunpack.c.h.b16 %v2792
    %v3070 = vunpack.c.l.b16 %v2793
    %v3071 = vunpack.c.h.b16 %v2793
    %v3072 = vunpack.c.l.b16 %v2794
    %v3073 = vunpack.c.h.b16 %v2794
    %v3074 = vunpack.c.l.b16 %v2795
    %v3075 = vunpack.c.h.b16 %v2795
    %v3076 = vunpack.c.l.b16 %v2796
    %v3077 = vunpack.c.h.b16 %v2796
    %v3078 = vunpack.c.l.b16 %v2797
    %v3079 = vunpack.c.h.b16 %v2797
    %v3080 = vunpack.c.l.b16 %v2798
    %v3081 = vunpack.c.h.b16 %v2798
    %v3082 = vunpack.c.l.b16 %v2799
    %v3083 = vunpack.c.h.b16 %v2799
    %v3084 = vunpack.c.l.b16 %v2800
    %v3085 = vunpack.c.h.b16 %v2800
    %v3086 = vunpack.c.l.b16 %v2801
    %v3087 = vunpack.c.h.b16 %v2801
    %v3088 = vunpack.c.l.b16 %v2802
    %v3089 = vunpack.c.h.b16 %v2802
    %v3090 = vunpack.c.l.b16 %v2803
    %v3091 = vunpack.c.h.b16 %v2803
    %v3092 = vpack.c.b16 %v2906, %v2900
    %v3093 = vpack.c.b16 %v2907, %v2901
    %v3094 = vpack.c.b16 %v2908, %v2902
    %v3095 = vpack.c.b16 %v2909, %v2903
    %v3096 = vpack.c.b16 %v2910, %v2904
    %v3097 = vpack.c.b16 %v2911, %v2905
    %v3098 = vpack.c.b16 %v2918, %v2912
    %v3099 = vpack.c.b16 %v2919, %v2913
    %v3100 = vpack.c.b16 %v2920, %v2914
    %v3101 = vpack.c.b16 %v2921, %v2915
    %v3102 = vpack.c.b16 %v2922, %v2916
    %v3103 = vpack.c.b16 %v2923, %v2917
    %v3104 = vpack.c.b16 %v2930, %v2924
    %v3105 = vpack.c.b16 %v2931, %v2925
    %v3106 = vpack.c.b16 %v2932, %v2926
    %v3107 = vpack.c.b16 %v2933, %v2927
    %v3108 = vpack.c.b16 %v2934, %v2928
    %v3109 = vpack.c.b16 %v2935, %v2929
    %v3110 = vpack.c.b16 %v2942, %v2936
    %v3111 = vpack.c.b16 %v2943, %v2937
    %v3112 = vpack.c.b16 %v2944, %v2938
    %v3113 = vpack.c.b16 %v2945, %v2939
    %v3114 = vpack.c.b16 %v2946, %v2940
    %v3115 = vpack.c.b16 %v2947, %v2941
    %v3116 = vpack.c.b16 %v2954, %v2948
    %v3117 = vpack.c.b16 %v2955, %v2949
    %v3118 = vpack.c.b16 %v2956, %v2950
    %v3119 = vpack.c.b16 %v2957, %v2951
    %v3120 = vpack.c.b16 %v2958, %v2952
    %v3121 = vpack.c.b16 %v2959, %v2953
    %v3122 = vpack.c.b16 %v2966, %v2960
    %v3123 = vpack.c.b16 %v2967, %v2961
    %v3124 = vpack.c.b16 %v2968, %v2962
    %v3125 = vpack.c.b16 %v2969, %v2963
    %v3126 = vpack.c.b16 %v2970, %v2964
    %v3127 = vpack.c.b16 %v2971, %v2965
    %v3128 = vpack.c.b16 %v2978, %v2972
    %v3129 = vpack.c.b16 %v2979, %v2973
    %v3130 = vpack.c.b16 %v2980, %v2974
    %v3131 = vpack.c.b16 %v2981, %v2975
    %v3132 = vpack.c.b16 %v2982, %v2976
    %v3133 = vpack.c.b16 %v2983, %v2977
    %v3134 = vpack.c.b16 %v2990, %v2984
    %v3135 = vpack.c.b16 %v2991, %v2985
    %v3136 = vpack.c.b16 %v2992, %v2986
    %v3137 = vpack.c.b16 %v2993, %v2987
    %v3138 = vpack.c.b16 %v2994, %v2988
    %v3139 = vpack.c.b16 %v2995, %v2989
    %v3140 = vpack.c.b16 %v3002, %v2996
    %v3141 = vpack.c.b16 %v3003, %v2997
    %v3142 = vpack.c.b16 %v3004, %v2998
    %v3143 = vpack.c.b16 %v3005, %v2999
    %v3144 = vpack.c.b16 %v3006, %v3000
    %v3145 = vpack.c.b16 %v3007, %v3001
    %v3146 = vpack.c.b16 %v3014, %v3008
    %v3147 = vpack.c.b16 %v3015, %v3009
    %v3148 = vpack.c.b16 %v3016, %v3010
    %v3149 = vpack.c.b16 %v3017, %v3011
    %v3150 = vpack.c.b16 %v3018, %v3012
    %v3151 = vpack.c.b16 %v3019, %v3013
    %v3152 = vpack.c.b16 %v3026, %v3020
    %v3153 = vpack.c.b16 %v3027, %v3021
    %v3154 = vpack.c.b16 %v3028, %v3022
    %v3155 = vpack.c.b16 %v3029, %v3023
    %v3156 = vpack.c.b16 %v3030, %v3024
    %v3157 = vpack.c.b16 %v3031, %v3025
    %v3158 = vpack.c.b16 %v3038, %v3032
    %v3159 = vpack.c.b16 %v3039, %v3033
    %v3160 = vpack.c.b16 %v3040, %v3034
    %v3161 = vpack.c.b16 %v3041, %v3035
    %v3162 = vpack.c.b16 %v3042, %v3036
    %v3163 = vpack.c.b16 %v3043, %v3037
    %v3164 = vpack.c.b16 %v3050, %v3044
    %v3165 = vpack.c.b16 %v3051, %v3045
    %v3166 = vpack.c.b16 %v3052, %v3046
    %v3167 = vpack.c.b16 %v3053, %v3047
    %v3168 = vpack.c.b16 %v3054, %v3048
    %v3169 = vpack.c.b16 %v3055, %v3049
    %v3170 = vpack.c.b16 %v3062, %v3056
    %v3171 = vpack.c.b16 %v3063, %v3057
    %v3172 = vpack.c.b16 %v3064, %v3058
    %v3173 = vpack.c.b16 %v3065, %v3059
    %v3174 = vpack.c.b16 %v3066, %v3060
    %v3175 = vpack.c.b16 %v3067, %v3061
    %v3176 = vpack.c.b16 %v3074, %v3068
    %v3177 = vpack.c.b16 %v3075, %v3069
    %v3178 = vpack.c.b16 %v3076, %v3070
    %v3179 = vpack.c.b16 %v3077, %v3071
    %v3180 = vpack.c.b16 %v3078, %v3072
    %v3181 = vpack.c.b16 %v3079, %v3073
    %v3182 = vpack.c.b16 %v3086, %v3080
    %v3183 = vpack.c.b16 %v3087, %v3081
    %v3184 = vpack.c.b16 %v3088, %v3082
    %v3185 = vpack.c.b16 %v3089, %v3083
    %v3186 = vpack.c.b16 %v3090, %v3084
    %v3187 = vpack.c.b16 %v3091, %v3085
    %3284 = vmatprep.subr.bf16.mxu0 %v3093
    %3285 = vmatpush1.bf16.msra.mxu0 %v3092
    %3286 = vmatprep.subr.bf16.mxu0 %v3099
    %3287 = vmatpush1.bf16.msra.mxu0 %v3098
    %3288 = vmatprep.subr.bf16.mxu0 %v3105
    %3289 = vmatpush1.bf16.msra.mxu0 %v3104
    %3290 = vmatprep.subr.bf16.mxu0 %v3111
    %3291 = vmatpush1.bf16.msra.mxu0 %v3110
    %3292 = vmatprep.subr.bf16.mxu0 %v3117
    %3293 = vmatpush1.bf16.msra.mxu0 %v3116
    %3294 = vmatprep.subr.bf16.mxu0 %v3123
    %3295 = vmatpush1.bf16.msra.mxu0 %v3122
    %3296 = vmatprep.subr.bf16.mxu0 %v3129
    %3297 = vmatpush1.bf16.msra.mxu0 %v3128
    %3298 = vmatprep.subr.bf16.mxu0 %v3135
    %3299 = vmatpush1.bf16.msra.mxu0 %v3134
    %3300 = vmatprep.subr.bf16.mxu0 %v3141
    %3301 = vmatpush1.bf16.msra.mxu0 %v3140
    %3302 = vmatprep.subr.bf16.mxu0 %v3147
    %3303 = vmatpush1.bf16.msra.mxu0 %v3146
    %3304 = vmatprep.subr.bf16.mxu0 %v3153
    %3305 = vmatpush1.bf16.msra.mxu0 %v3152
    %3306 = vmatprep.subr.bf16.mxu0 %v3159
    %3307 = vmatpush1.bf16.msra.mxu0 %v3158
    %3308 = vmatprep.subr.bf16.mxu0 %v3165
    %3309 = vmatpush1.bf16.msra.mxu0 %v3164
    %3310 = vmatprep.subr.bf16.mxu0 %v3171
    %3311 = vmatpush1.bf16.msra.mxu0 %v3170
    %3312 = vmatprep.subr.bf16.mxu0 %v3177
    %3313 = vmatpush1.bf16.msra.mxu0 %v3176
    %3314 = vmatprep.subr.bf16.mxu0 %v3183
    %3315 = vmatpush1.bf16.msra.mxu0 %v3182
    %3316 = vmatprep.mubr.bf16.mxu0 %v2706
    %3317 = vmatmul.mubr.bf16.gmra.mrb[0].mxu0 %v2705
    %v3318 = vpop.f32.mrb[0].mxu0
    %v3319 = vadd.f32 0.0, %v3318
    %v3320 = vpop.f32.mrb[0].mxu0
    %v3321 = vadd.f32 0.0, %v3320
    %v3322 = vpop.f32.mrb[0].mxu0
    %v3323 = vpop.f32.mrb[0].mxu0
    %3324 = vdwg.mxu0
    %3325 = vmatprep.subr.bf16.mxu0 %v3095
    %3326 = vmatpush1.bf16.msra.mxu0 %v3094
    %3327 = vmatprep.subr.bf16.mxu0 %v3101
    %3328 = vmatpush1.bf16.msra.mxu0 %v3100
    %3329 = vmatprep.subr.bf16.mxu0 %v3107
    %3330 = vmatpush1.bf16.msra.mxu0 %v3106
    %3331 = vmatprep.subr.bf16.mxu0 %v3113
    %3332 = vmatpush1.bf16.msra.mxu0 %v3112
    %3333 = vmatprep.subr.bf16.mxu0 %v3119
    %3334 = vmatpush1.bf16.msra.mxu0 %v3118
    %3335 = vmatprep.subr.bf16.mxu0 %v3125
    %3336 = vmatpush1.bf16.msra.mxu0 %v3124
    %3337 = vmatprep.subr.bf16.mxu0 %v3131
    %3338 = vmatpush1.bf16.msra.mxu0 %v3130
    %3339 = vmatprep.subr.bf16.mxu0 %v3137
    %3340 = vmatpush1.bf16.msra.mxu0 %v3136
    %3341 = vmatprep.subr.bf16.mxu0 %v3143
    %3342 = vmatpush1.bf16.msra.mxu0 %v3142
    %3343 = vmatprep.subr.bf16.mxu0 %v3149
    %3344 = vmatpush1.bf16.msra.mxu0 %v3148
    %3345 = vmatprep.subr.bf16.mxu0 %v3155
    %3346 = vmatpush1.bf16.msra.mxu0 %v3154
    %3347 = vmatprep.subr.bf16.mxu0 %v3161
    %3348 = vmatpush1.bf16.msra.mxu0 %v3160
    %3349 = vmatprep.subr.bf16.mxu0 %v3167
    %3350 = vmatpush1.bf16.msra.mxu0 %v3166
    %3351 = vmatprep.subr.bf16.mxu0 %v3173
    %3352 = vmatpush1.bf16.msra.mxu0 %v3172
    %3353 = vmatprep.subr.bf16.mxu0 %v3179
    %3354 = vmatpush1.bf16.msra.mxu0 %v3178
    %3355 = vmatprep.subr.bf16.mxu0 %v3185
    %3356 = vmatpush1.bf16.msra.mxu0 %v3184
    %3357 = vmatprep.mubr.bf16.mxu0 %v2706
    %3358 = vmatmul.mubr.bf16.gmra.mrb[0].mxu0 %v2705
    %v3359 = vpop.f32.mrb[0].mxu0
    %v3360 = vadd.f32 0.0, %v3359
    %v3361 = vpop.f32.mrb[0].mxu0
    %v3362 = vadd.f32 0.0, %v3361
    %v3363 = vpop.f32.mrb[0].mxu0
    %v3364 = vpop.f32.mrb[0].mxu0
    %3365 = vdwg.mxu0
    %3366 = vmatprep.subr.bf16.mxu0 %v3097
    %3367 = vmatpush1.bf16.msra.mxu0 %v3096
    %3368 = vmatprep.subr.bf16.mxu0 %v3103
    %3369 = vmatpush1.bf16.msra.mxu0 %v3102
    %3370 = vmatprep.subr.bf16.mxu0 %v3109
    %3371 = vmatpush1.bf16.msra.mxu0 %v3108
    %3372 = vmatprep.subr.bf16.mxu0 %v3115
    %3373 = vmatpush1.bf16.msra.mxu0 %v3114
    %3374 = vmatprep.subr.bf16.mxu0 %v3121
    %3375 = vmatpush1.bf16.msra.mxu0 %v3120
    %3376 = vmatprep.subr.bf16.mxu0 %v3127
    %3377 = vmatpush1.bf16.msra.mxu0 %v3126
    %3378 = vmatprep.subr.bf16.mxu0 %v3133
    %3379 = vmatpush1.bf16.msra.mxu0 %v3132
    %3380 = vmatprep.subr.bf16.mxu0 %v3139
    %3381 = vmatpush1.bf16.msra.mxu0 %v3138
    %3382 = vmatprep.subr.bf16.mxu0 %v3145
    %3383 = vmatpush1.bf16.msra.mxu0 %v3144
    %3384 = vmatprep.subr.bf16.mxu0 %v3151
    %3385 = vmatpush1.bf16.msra.mxu0 %v3150
    %3386 = vmatprep.subr.bf16.mxu0 %v3157
    %3387 = vmatpush1.bf16.msra.mxu0 %v3156
    %3388 = vmatprep.subr.bf16.mxu0 %v3163
    %3389 = vmatpush1.bf16.msra.mxu0 %v3162
    %3390 = vmatprep.subr.bf16.mxu0 %v3169
    %3391 = vmatpush1.bf16.msra.mxu0 %v3168
    %3392 = vmatprep.subr.bf16.mxu0 %v3175
    %3393 = vmatpush1.bf16.msra.mxu0 %v3174
    %3394 = vmatprep.subr.bf16.mxu0 %v3181
    %3395 = vmatpush1.bf16.msra.mxu0 %v3180
    %3396 = vmatprep.subr.bf16.mxu0 %v3187
    %3397 = vmatpush1.bf16.msra.mxu0 %v3186
    %3398 = vmatprep.mubr.bf16.mxu0 %v2706
    %3399 = vmatmul.mubr.bf16.gmra.mrb[0].mxu0 %v2705
    %v3400 = vpop.f32.mrb[0].mxu0
    %v3401 = vadd.f32 0.0, %v3400
    %v3402 = vpop.f32.mrb[0].mxu0
    %v3403 = vadd.f32 0.0, %v3402
    %v3404 = vpop.f32.mrb[0].mxu0
    %v3405 = vpop.f32.mrb[0].mxu0
    %3406 = vdwg.mxu0
    %v3503 = vunpack.c.l.b16 %v2609
    %v3504 = vunpack.c.h.b16 %v2609
    %v3505 = vunpack.c.l.b16 %v2610
    %v3506 = vunpack.c.h.b16 %v2610
    %v3507 = vunpack.c.l.b16 %v2611
    %v3508 = vunpack.c.h.b16 %v2611
    %v3509 = vunpack.c.l.b16 %v2612
    %v3510 = vunpack.c.h.b16 %v2612
    %v3511 = vunpack.c.l.b16 %v2613
    %v3512 = vunpack.c.h.b16 %v2613
    %v3513 = vunpack.c.l.b16 %v2614
    %v3514 = vunpack.c.h.b16 %v2614
    %v3515 = vunpack.c.l.b16 %v2615
    %v3516 = vunpack.c.h.b16 %v2615
    %v3517 = vunpack.c.l.b16 %v2616
    %v3518 = vunpack.c.h.b16 %v2616
    %v3519 = vunpack.c.l.b16 %v2617
    %v3520 = vunpack.c.h.b16 %v2617
    %v3521 = vunpack.c.l.b16 %v2618
    %v3522 = vunpack.c.h.b16 %v2618
    %v3523 = vunpack.c.l.b16 %v2619
    %v3524 = vunpack.c.h.b16 %v2619
    %v3525 = vunpack.c.l.b16 %v2620
    %v3526 = vunpack.c.h.b16 %v2620
    %v3527 = vunpack.c.l.b16 %v2621
    %v3528 = vunpack.c.h.b16 %v2621
    %v3529 = vunpack.c.l.b16 %v2622
    %v3530 = vunpack.c.h.b16 %v2622
    %v3531 = vunpack.c.l.b16 %v2623
    %v3532 = vunpack.c.h.b16 %v2623
    %v3533 = vunpack.c.l.b16 %v2624
    %v3534 = vunpack.c.h.b16 %v2624
    %v3535 = vunpack.c.l.b16 %v2625
    %v3536 = vunpack.c.h.b16 %v2625
    %v3537 = vunpack.c.l.b16 %v2626
    %v3538 = vunpack.c.h.b16 %v2626
    %v3539 = vunpack.c.l.b16 %v2627
    %v3540 = vunpack.c.h.b16 %v2627
    %v3541 = vunpack.c.l.b16 %v2628
    %v3542 = vunpack.c.h.b16 %v2628
    %v3543 = vunpack.c.l.b16 %v2629
    %v3544 = vunpack.c.h.b16 %v2629
    %v3545 = vunpack.c.l.b16 %v2630
    %v3546 = vunpack.c.h.b16 %v2630
    %v3547 = vunpack.c.l.b16 %v2631
    %v3548 = vunpack.c.h.b16 %v2631
    %v3549 = vunpack.c.l.b16 %v2632
    %v3550 = vunpack.c.h.b16 %v2632
    %v3551 = vunpack.c.l.b16 %v2633
    %v3552 = vunpack.c.h.b16 %v2633
    %v3553 = vunpack.c.l.b16 %v2634
    %v3554 = vunpack.c.h.b16 %v2634
    %v3555 = vunpack.c.l.b16 %v2635
    %v3556 = vunpack.c.h.b16 %v2635
    %v3557 = vunpack.c.l.b16 %v2636
    %v3558 = vunpack.c.h.b16 %v2636
    %v3559 = vunpack.c.l.b16 %v2637
    %v3560 = vunpack.c.h.b16 %v2637
    %v3561 = vunpack.c.l.b16 %v2638
    %v3562 = vunpack.c.h.b16 %v2638
    %v3563 = vunpack.c.l.b16 %v2639
    %v3564 = vunpack.c.h.b16 %v2639
    %v3565 = vunpack.c.l.b16 %v2640
    %v3566 = vunpack.c.h.b16 %v2640
    %v3567 = vunpack.c.l.b16 %v2641
    %v3568 = vunpack.c.h.b16 %v2641
    %v3569 = vunpack.c.l.b16 %v2642
    %v3570 = vunpack.c.h.b16 %v2642
    %v3571 = vunpack.c.l.b16 %v2643
    %v3572 = vunpack.c.h.b16 %v2643
    %v3573 = vunpack.c.l.b16 %v2644
    %v3574 = vunpack.c.h.b16 %v2644
    %v3575 = vunpack.c.l.b16 %v2645
    %v3576 = vunpack.c.h.b16 %v2645
    %v3577 = vunpack.c.l.b16 %v2646
    %v3578 = vunpack.c.h.b16 %v2646
    %v3579 = vunpack.c.l.b16 %v2647
    %v3580 = vunpack.c.h.b16 %v2647
    %v3581 = vunpack.c.l.b16 %v2648
    %v3582 = vunpack.c.h.b16 %v2648
    %v3583 = vunpack.c.l.b16 %v2649
    %v3584 = vunpack.c.h.b16 %v2649
    %v3585 = vunpack.c.l.b16 %v2650
    %v3586 = vunpack.c.h.b16 %v2650
    %v3587 = vunpack.c.l.b16 %v2651
    %v3588 = vunpack.c.h.b16 %v2651
    %v3589 = vunpack.c.l.b16 %v2652
    %v3590 = vunpack.c.h.b16 %v2652
    %v3591 = vunpack.c.l.b16 %v2653
    %v3592 = vunpack.c.h.b16 %v2653
    %v3593 = vunpack.c.l.b16 %v2654
    %v3594 = vunpack.c.h.b16 %v2654
    %v3595 = vunpack.c.l.b16 %v2655
    %v3596 = vunpack.c.h.b16 %v2655
    %v3597 = vunpack.c.l.b16 %v2656
    %v3598 = vunpack.c.h.b16 %v2656
    %v3599 = vunpack.c.l.b16 %v2657
    %v3600 = vunpack.c.h.b16 %v2657
    %v3601 = vunpack.c.l.b16 %v2658
    %v3602 = vunpack.c.h.b16 %v2658
    %v3603 = vunpack.c.l.b16 %v2659
    %v3604 = vunpack.c.h.b16 %v2659
    %v3605 = vunpack.c.l.b16 %v2660
    %v3606 = vunpack.c.h.b16 %v2660
    %v3607 = vunpack.c.l.b16 %v2661
    %v3608 = vunpack.c.h.b16 %v2661
    %v3609 = vunpack.c.l.b16 %v2662
    %v3610 = vunpack.c.h.b16 %v2662
    %v3611 = vunpack.c.l.b16 %v2663
    %v3612 = vunpack.c.h.b16 %v2663
    %v3613 = vunpack.c.l.b16 %v2664
    %v3614 = vunpack.c.h.b16 %v2664
    %v3615 = vunpack.c.l.b16 %v2665
    %v3616 = vunpack.c.h.b16 %v2665
    %v3617 = vunpack.c.l.b16 %v2666
    %v3618 = vunpack.c.h.b16 %v2666
    %v3619 = vunpack.c.l.b16 %v2667
    %v3620 = vunpack.c.h.b16 %v2667
    %v3621 = vunpack.c.l.b16 %v2668
    %v3622 = vunpack.c.h.b16 %v2668
    %v3623 = vunpack.c.l.b16 %v2669
    %v3624 = vunpack.c.h.b16 %v2669
    %v3625 = vunpack.c.l.b16 %v2670
    %v3626 = vunpack.c.h.b16 %v2670
    %v3627 = vunpack.c.l.b16 %v2671
    %v3628 = vunpack.c.h.b16 %v2671
    %v3629 = vunpack.c.l.b16 %v2672
    %v3630 = vunpack.c.h.b16 %v2672
    %v3631 = vunpack.c.l.b16 %v2673
    %v3632 = vunpack.c.h.b16 %v2673
    %v3633 = vunpack.c.l.b16 %v2674
    %v3634 = vunpack.c.h.b16 %v2674
    %v3635 = vunpack.c.l.b16 %v2675
    %v3636 = vunpack.c.h.b16 %v2675
    %v3637 = vunpack.c.l.b16 %v2676
    %v3638 = vunpack.c.h.b16 %v2676
    %v3639 = vunpack.c.l.b16 %v2677
    %v3640 = vunpack.c.h.b16 %v2677
    %v3641 = vunpack.c.l.b16 %v2678
    %v3642 = vunpack.c.h.b16 %v2678
    %v3643 = vunpack.c.l.b16 %v2679
    %v3644 = vunpack.c.h.b16 %v2679
    %v3645 = vunpack.c.l.b16 %v2680
    %v3646 = vunpack.c.h.b16 %v2680
    %v3647 = vunpack.c.l.b16 %v2681
    %v3648 = vunpack.c.h.b16 %v2681
    %v3649 = vunpack.c.l.b16 %v2682
    %v3650 = vunpack.c.h.b16 %v2682
    %v3651 = vunpack.c.l.b16 %v2683
    %v3652 = vunpack.c.h.b16 %v2683
    %v3653 = vunpack.c.l.b16 %v2684
    %v3654 = vunpack.c.h.b16 %v2684
    %v3655 = vunpack.c.l.b16 %v2685
    %v3656 = vunpack.c.h.b16 %v2685
    %v3657 = vunpack.c.l.b16 %v2686
    %v3658 = vunpack.c.h.b16 %v2686
    %v3659 = vunpack.c.l.b16 %v2687
    %v3660 = vunpack.c.h.b16 %v2687
    %v3661 = vunpack.c.l.b16 %v2688
    %v3662 = vunpack.c.h.b16 %v2688
    %v3663 = vunpack.c.l.b16 %v2689
    %v3664 = vunpack.c.h.b16 %v2689
    %v3665 = vunpack.c.l.b16 %v2690
    %v3666 = vunpack.c.h.b16 %v2690
    %v3667 = vunpack.c.l.b16 %v2691
    %v3668 = vunpack.c.h.b16 %v2691
    %v3669 = vunpack.c.l.b16 %v2692
    %v3670 = vunpack.c.h.b16 %v2692
    %v3671 = vunpack.c.l.b16 %v2693
    %v3672 = vunpack.c.h.b16 %v2693
    %v3673 = vunpack.c.l.b16 %v2694
    %v3674 = vunpack.c.h.b16 %v2694
    %v3675 = vunpack.c.l.b16 %v2695
    %v3676 = vunpack.c.h.b16 %v2695
    %v3677 = vunpack.c.l.b16 %v2696
    %v3678 = vunpack.c.h.b16 %v2696
    %v3679 = vunpack.c.l.b16 %v2697
    %v3680 = vunpack.c.h.b16 %v2697
    %v3681 = vunpack.c.l.b16 %v2698
    %v3682 = vunpack.c.h.b16 %v2698
    %v3683 = vunpack.c.l.b16 %v2699
    %v3684 = vunpack.c.h.b16 %v2699
    %v3685 = vunpack.c.l.b16 %v2700
    %v3686 = vunpack.c.h.b16 %v2700
    %v3687 = vunpack.c.l.b16 %v2701
    %v3688 = vunpack.c.h.b16 %v2701
    %v3689 = vunpack.c.l.b16 %v2702
    %v3690 = vunpack.c.h.b16 %v2702
    %v3691 = vunpack.c.l.b16 %v2703
    %v3692 = vunpack.c.h.b16 %v2703
    %v3693 = vunpack.c.l.b16 %v2704
    %v3694 = vunpack.c.h.b16 %v2704
    %v3695 = vpack.c.b16 %v3509, %v3503
    %v3696 = vpack.c.b16 %v3510, %v3504
    %v3697 = vpack.c.b16 %v3511, %v3505
    %v3698 = vpack.c.b16 %v3512, %v3506
    %v3699 = vpack.c.b16 %v3513, %v3507
    %v3700 = vpack.c.b16 %v3514, %v3508
    %v3701 = vpack.c.b16 %v3521, %v3515
    %v3702 = vpack.c.b16 %v3522, %v3516
    %v3703 = vpack.c.b16 %v3523, %v3517
    %v3704 = vpack.c.b16 %v3524, %v3518
    %v3705 = vpack.c.b16 %v3525, %v3519
    %v3706 = vpack.c.b16 %v3526, %v3520
    %v3707 = vpack.c.b16 %v3533, %v3527
    %v3708 = vpack.c.b16 %v3534, %v3528
    %v3709 = vpack.c.b16 %v3535, %v3529
    %v3710 = vpack.c.b16 %v3536, %v3530
    %v3711 = vpack.c.b16 %v3537, %v3531
    %v3712 = vpack.c.b16 %v3538, %v3532
    %v3713 = vpack.c.b16 %v3545, %v3539
    %v3714 = vpack.c.b16 %v3546, %v3540
    %v3715 = vpack.c.b16 %v3547, %v3541
    %v3716 = vpack.c.b16 %v3548, %v3542
    %v3717 = vpack.c.b16 %v3549, %v3543
    %v3718 = vpack.c.b16 %v3550, %v3544
    %v3719 = vpack.c.b16 %v3557, %v3551
    %v3720 = vpack.c.b16 %v3558, %v3552
    %v3721 = vpack.c.b16 %v3559, %v3553
    %v3722 = vpack.c.b16 %v3560, %v3554
    %v3723 = vpack.c.b16 %v3561, %v3555
    %v3724 = vpack.c.b16 %v3562, %v3556
    %v3725 = vpack.c.b16 %v3569, %v3563
    %v3726 = vpack.c.b16 %v3570, %v3564
    %v3727 = vpack.c.b16 %v3571, %v3565
    %v3728 = vpack.c.b16 %v3572, %v3566
    %v3729 = vpack.c.b16 %v3573, %v3567
    %v3730 = vpack.c.b16 %v3574, %v3568
    %v3731 = vpack.c.b16 %v3581, %v3575
    %v3732 = vpack.c.b16 %v3582, %v3576
    %v3733 = vpack.c.b16 %v3583, %v3577
    %v3734 = vpack.c.b16 %v3584, %v3578
    %v3735 = vpack.c.b16 %v3585, %v3579
    %v3736 = vpack.c.b16 %v3586, %v3580
    %v3737 = vpack.c.b16 %v3593, %v3587
    %v3738 = vpack.c.b16 %v3594, %v3588
    %v3739 = vpack.c.b16 %v3595, %v3589
    %v3740 = vpack.c.b16 %v3596, %v3590
    %v3741 = vpack.c.b16 %v3597, %v3591
    %v3742 = vpack.c.b16 %v3598, %v3592
    %v3743 = vpack.c.b16 %v3605, %v3599
    %v3744 = vpack.c.b16 %v3606, %v3600
    %v3745 = vpack.c.b16 %v3607, %v3601
    %v3746 = vpack.c.b16 %v3608, %v3602
    %v3747 = vpack.c.b16 %v3609, %v3603
    %v3748 = vpack.c.b16 %v3610, %v3604
    %v3749 = vpack.c.b16 %v3617, %v3611
    %v3750 = vpack.c.b16 %v3618, %v3612
    %v3751 = vpack.c.b16 %v3619, %v3613
    %v3752 = vpack.c.b16 %v3620, %v3614
    %v3753 = vpack.c.b16 %v3621, %v3615
    %v3754 = vpack.c.b16 %v3622, %v3616
    %v3755 = vpack.c.b16 %v3629, %v3623
    %v3756 = vpack.c.b16 %v3630, %v3624
    %v3757 = vpack.c.b16 %v3631, %v3625
    %v3758 = vpack.c.b16 %v3632, %v3626
    %v3759 = vpack.c.b16 %v3633, %v3627
    %v3760 = vpack.c.b16 %v3634, %v3628
    %v3761 = vpack.c.b16 %v3641, %v3635
    %v3762 = vpack.c.b16 %v3642, %v3636
    %v3763 = vpack.c.b16 %v3643, %v3637
    %v3764 = vpack.c.b16 %v3644, %v3638
    %v3765 = vpack.c.b16 %v3645, %v3639
    %v3766 = vpack.c.b16 %v3646, %v3640
    %v3767 = vpack.c.b16 %v3653, %v3647
    %v3768 = vpack.c.b16 %v3654, %v3648
    %v3769 = vpack.c.b16 %v3655, %v3649
    %v3770 = vpack.c.b16 %v3656, %v3650
    %v3771 = vpack.c.b16 %v3657, %v3651
    %v3772 = vpack.c.b16 %v3658, %v3652
    %v3773 = vpack.c.b16 %v3665, %v3659
    %v3774 = vpack.c.b16 %v3666, %v3660
    %v3775 = vpack.c.b16 %v3667, %v3661
    %v3776 = vpack.c.b16 %v3668, %v3662
    %v3777 = vpack.c.b16 %v3669, %v3663
    %v3778 = vpack.c.b16 %v3670, %v3664
    %v3779 = vpack.c.b16 %v3677, %v3671
    %v3780 = vpack.c.b16 %v3678, %v3672
    %v3781 = vpack.c.b16 %v3679, %v3673
    %v3782 = vpack.c.b16 %v3680, %v3674
    %v3783 = vpack.c.b16 %v3681, %v3675
    %v3784 = vpack.c.b16 %v3682, %v3676
    %v3785 = vpack.c.b16 %v3689, %v3683
    %v3786 = vpack.c.b16 %v3690, %v3684
    %v3787 = vpack.c.b16 %v3691, %v3685
    %v3788 = vpack.c.b16 %v3692, %v3686
    %v3789 = vpack.c.b16 %v3693, %v3687
    %v3790 = vpack.c.b16 %v3694, %v3688
    %3887 = vmatprep.subr.bf16.mxu0 %v3696
    %3888 = vmatpush1.bf16.msra.mxu0 %v3695
    %3889 = vmatprep.subr.bf16.mxu0 %v3702
    %3890 = vmatpush1.bf16.msra.mxu0 %v3701
    %3891 = vmatprep.subr.bf16.mxu0 %v3708
    %3892 = vmatpush1.bf16.msra.mxu0 %v3707
    %3893 = vmatprep.subr.bf16.mxu0 %v3714
    %3894 = vmatpush1.bf16.msra.mxu0 %v3713
    %3895 = vmatprep.subr.bf16.mxu0 %v3720
    %3896 = vmatpush1.bf16.msra.mxu0 %v3719
    %3897 = vmatprep.subr.bf16.mxu0 %v3726
    %3898 = vmatpush1.bf16.msra.mxu0 %v3725
    %3899 = vmatprep.subr.bf16.mxu0 %v3732
    %3900 = vmatpush1.bf16.msra.mxu0 %v3731
    %3901 = vmatprep.subr.bf16.mxu0 %v3738
    %3902 = vmatpush1.bf16.msra.mxu0 %v3737
    %3903 = vmatprep.subr.bf16.mxu0 %v3744
    %3904 = vmatpush1.bf16.msra.mxu0 %v3743
    %3905 = vmatprep.subr.bf16.mxu0 %v3750
    %3906 = vmatpush1.bf16.msra.mxu0 %v3749
    %3907 = vmatprep.subr.bf16.mxu0 %v3756
    %3908 = vmatpush1.bf16.msra.mxu0 %v3755
    %3909 = vmatprep.subr.bf16.mxu0 %v3762
    %3910 = vmatpush1.bf16.msra.mxu0 %v3761
    %3911 = vmatprep.subr.bf16.mxu0 %v3768
    %3912 = vmatpush1.bf16.msra.mxu0 %v3767
    %3913 = vmatprep.subr.bf16.mxu0 %v3774
    %3914 = vmatpush1.bf16.msra.mxu0 %v3773
    %3915 = vmatprep.subr.bf16.mxu0 %v3780
    %3916 = vmatpush1.bf16.msra.mxu0 %v3779
    %3917 = vmatprep.subr.bf16.mxu0 %v3786
    %3918 = vmatpush1.bf16.msra.mxu0 %v3785
    %3919 = vmatprep.mubr.bf16.mxu0 %v2608
    %3920 = vmatmul.mubr.bf16.gmra.mrb[0].mxu0 %v2607
    %v3921 = vpop.f32.mrb[0].mxu0
    %v3922 = vadd.f32 %v3319, %v3921
    %v3923 = vpop.f32.mrb[0].mxu0
    %v3924 = vadd.f32 %v3321, %v3923
    %v3925 = vpop.f32.mrb[0].mxu0
    %v3926 = vpop.f32.mrb[0].mxu0
    %3927 = vdwg.mxu0
    %3928 = vmatprep.subr.bf16.mxu0 %v3698
    %3929 = vmatpush1.bf16.msra.mxu0 %v3697
    %3930 = vmatprep.subr.bf16.mxu0 %v3704
    %3931 = vmatpush1.bf16.msra.mxu0 %v3703
    %3932 = vmatprep.subr.bf16.mxu0 %v3710
    %3933 = vmatpush1.bf16.msra.mxu0 %v3709
    %3934 = vmatprep.subr.bf16.mxu0 %v3716
    %3935 = vmatpush1.bf16.msra.mxu0 %v3715
    %3936 = vmatprep.subr.bf16.mxu0 %v3722
    %3937 = vmatpush1.bf16.msra.mxu0 %v3721
    %3938 = vmatprep.subr.bf16.mxu0 %v3728
    %3939 = vmatpush1.bf16.msra.mxu0 %v3727
    %3940 = vmatprep.subr.bf16.mxu0 %v3734
    %3941 = vmatpush1.bf16.msra.mxu0 %v3733
    %3942 = vmatprep.subr.bf16.mxu0 %v3740
    %3943 = vmatpush1.bf16.msra.mxu0 %v3739
    %3944 = vmatprep.subr.bf16.mxu0 %v3746
    %3945 = vmatpush1.bf16.msra.mxu0 %v3745
    %3946 = vmatprep.subr.bf16.mxu0 %v3752
    %3947 = vmatpush1.bf16.msra.mxu0 %v3751
    %3948 = vmatprep.subr.bf16.mxu0 %v3758
    %3949 = vmatpush1.bf16.msra.mxu0 %v3757
    %3950 = vmatprep.subr.bf16.mxu0 %v3764
    %3951 = vmatpush1.bf16.msra.mxu0 %v3763
    %3952 = vmatprep.subr.bf16.mxu0 %v3770
    %3953 = vmatpush1.bf16.msra.mxu0 %v3769
    %3954 = vmatprep.subr.bf16.mxu0 %v3776
    %3955 = vmatpush1.bf16.msra.mxu0 %v3775
    %3956 = vmatprep.subr.bf16.mxu0 %v3782
    %3957 = vmatpush1.bf16.msra.mxu0 %v3781
    %3958 = vmatprep.subr.bf16.mxu0 %v3788
    %3959 = vmatpush1.bf16.msra.mxu0 %v3787
    %3960 = vmatprep.mubr.bf16.mxu0 %v2608
    %3961 = vmatmul.mubr.bf16.gmra.mrb[0].mxu0 %v2607
    %v3962 = vpop.f32.mrb[0].mxu0
    %v3963 = vadd.f32 %v3360, %v3962
    %v3964 = vpop.f32.mrb[0].mxu0
    %v3965 = vadd.f32 %v3362, %v3964
    %v3966 = vpop.f32.mrb[0].mxu0
    %v3967 = vpop.f32.mrb[0].mxu0
    %3968 = vdwg.mxu0
    %3969 = vmatprep.subr.bf16.mxu0 %v3700
    %3970 = vmatpush1.bf16.msra.mxu0 %v3699
    %3971 = vmatprep.subr.bf16.mxu0 %v3706
    %3972 = vmatpush1.bf16.msra.mxu0 %v3705
    %3973 = vmatprep.subr.bf16.mxu0 %v3712
    %3974 = vmatpush1.bf16.msra.mxu0 %v3711
    %3975 = vmatprep.subr.bf16.mxu0 %v3718
    %3976 = vmatpush1.bf16.msra.mxu0 %v3717
    %3977 = vmatprep.subr.bf16.mxu0 %v3724
    %3978 = vmatpush1.bf16.msra.mxu0 %v3723
    %3979 = vmatprep.subr.bf16.mxu0 %v3730
    %3980 = vmatpush1.bf16.msra.mxu0 %v3729
    %3981 = vmatprep.subr.bf16.mxu0 %v3736
    %3982 = vmatpush1.bf16.msra.mxu0 %v3735
    %3983 = vmatprep.subr.bf16.mxu0 %v3742
    %3984 = vmatpush1.bf16.msra.mxu0 %v3741
    %3985 = vmatprep.subr.bf16.mxu0 %v3748
    %3986 = vmatpush1.bf16.msra.mxu0 %v3747
    %3987 = vmatprep.subr.bf16.mxu0 %v3754
    %3988 = vmatpush1.bf16.msra.mxu0 %v3753
    %3989 = vmatprep.subr.bf16.mxu0 %v3760
    %3990 = vmatpush1.bf16.msra.mxu0 %v3759
    %3991 = vmatprep.subr.bf16.mxu0 %v3766
    %3992 = vmatpush1.bf16.msra.mxu0 %v3765
    %3993 = vmatprep.subr.bf16.mxu0 %v3772
    %3994 = vmatpush1.bf16.msra.mxu0 %v3771
    %3995 = vmatprep.subr.bf16.mxu0 %v3778
    %3996 = vmatpush1.bf16.msra.mxu0 %v3777
    %3997 = vmatprep.subr.bf16.mxu0 %v3784
    %3998 = vmatpush1.bf16.msra.mxu0 %v3783
    %3999 = vmatprep.subr.bf16.mxu0 %v3790
    %4000 = vmatpush1.bf16.msra.mxu0 %v3789
    %4001 = vmatprep.mubr.bf16.mxu0 %v2608
    %4002 = vmatmul.mubr.bf16.gmra.mrb[0].mxu0 %v2607
    %v4003 = vpop.f32.mrb[0].mxu0
    %v4004 = vadd.f32 %v3401, %v4003
    %v4005 = vpop.f32.mrb[0].mxu0
    %v4006 = vadd.f32 %v3403, %v4005
    %v4007 = vpop.f32.mrb[0].mxu0
    %v4008 = vpop.f32.mrb[0].mxu0
    %4009 = vdwg.mxu0
    %v4010 = vlaneseq
    %v4011 = vshrl.u32 %v4010, 7
    %v4012 = vsub.s32 0, %v4011
    %v4013 = vrot.slane %v276, %v4012
    %v4014 = vlaneseq
    %v4015 = vshrl.u32 %v4014, 7
    %v4016 = vsub.s32 0, %v4015
    %v4017 = vrot.slane %v277, %v4016
    %v4018 = vlaneseq
    %v4019 = vshrl.u32 %v4018, 7
    %v4020 = vsub.s32 0, %v4019
    %v4021 = vrot.slane %v278, %v4020
    %v4022 = vlaneseq
    %v4023 = vshrl.u32 %v4022, 7
    %v4024 = vsub.s32 0, %v4023
    %v4025 = vrot.slane %v279, %v4024
    %v4026 = vlaneseq
    %v4027 = vshrl.u32 %v4026, 7
    %v4028 = vsub.s32 0, %v4027
    %v4029 = vrot.slane %v280, %v4028
    %v4030 = vlaneseq
    %v4031 = vshrl.u32 %v4030, 7
    %v4032 = vsub.s32 0, %v4031
    %v4033 = vrot.slane %v281, %v4032
    %v4034 = vadd.f32 %v3922, %v4013
    %v4035 = vadd.f32 %v3924, %v4017
    %v4036 = vadd.f32 %v3963, %v4021
    %v4037 = vadd.f32 %v3965, %v4025
    %v4038 = vadd.f32 %v4004, %v4029
    %v4039 = vadd.f32 %v4006, %v4033
    %v4040 = vadd.f32 %v4034, %v918
    %v4041 = vadd.f32 %v4035, %v920
    %v4042 = vxor.u32 %v4040, 2147483648
    %v4043 = vxor.u32 %v4041, 2147483648
    %v4044 = vmul.f32 %v4042, 1.442695
    %v4045 = vpow.pop %v4044
    %v4046 = vmul.f32 %v4043, 1.442695
    %v4047 = vpow.pop %v4046
    %v4048 = vadd.f32 %v4045, 1.0
    %v4049 = vadd.f32 %v4047, 1.0
    %v4050 = vrcp.pop %v4048
    %v4051 = vmul.f32 1.0, %v4050
    %v4052 = vrcp.pop %v4049
    %v4053 = vmul.f32 1.0, %v4052
    %v4054 = vadd.f32 %v4036, %v959
    %v4055 = vadd.f32 %v4037, %v961
    %v4056 = vxor.u32 %v4054, 2147483648
    %v4057 = vxor.u32 %v4055, 2147483648
    %v4058 = vmul.f32 %v4056, 1.442695
    %v4059 = vpow.pop %v4058
    %v4060 = vmul.f32 %v4057, 1.442695
    %v4061 = vpow.pop %v4060
    %v4062 = vadd.f32 %v4059, 1.0
    %v4063 = vadd.f32 %v4061, 1.0
    %v4064 = vrcp.pop %v4062
    %v4065 = vmul.f32 1.0, %v4064
    %v4066 = vrcp.pop %v4063
    %v4067 = vmul.f32 1.0, %v4066
    %v4068 = vmul.f32 %v4051, %v1000
    %v4069 = vmul.f32 %v4053, %v1002
    %v4070 = vadd.f32 %v4038, %v4068
    %v4071 = vadd.f32 %v4039, %v4069
    %v4072 = vtanh.pop %v4070
    %v4073 = vtanh.pop %v4071
    %v4074 = vsub.f32 1.0, %v4065
    %v4075 = vsub.f32 1.0, %v4067
    %v4076 = vmul.f32 %v4074, %v4072
    %v4077 = vmul.f32 %v4075, %v4073
    %v4078 = vmul.f32 %v4065, %v144
    %v4079 = vmul.f32 %v4067, %v145
    %v4080 = vadd.f32 %v4076, %v4078
    %v4081 = vadd.f32 %v4077, %v4079
    %v4082 = vpack.c.bf16 %v4080, %v4080
    %v4083 = vpack.c.bf16 %v4081, %v4081
    %s4084 = scalar_lea.vmem [#allocation11], 2304
    %v4085 = vld [vmem:[%s4084] sm:$0xff]
    %v4086 = vld [vmem:[%s4084 + $0x8] sm:$0xff]
    %v4087 = vld [vmem:[%s4084 + $0x10] sm:$0xff]
    %v4088 = vld [vmem:[%s4084 + $0x18] sm:$0xff]
    %v4089 = vld [vmem:[%s4084 + $0x20] sm:$0xff]
    %v4090 = vld [vmem:[%s4084 + $0x28] sm:$0xff]
    %v4091 = vld [vmem:[%s4084 + $0x30] sm:$0xff]
    %v4092 = vld [vmem:[%s4084 + $0x38] sm:$0xff]
    %v4093 = vld [vmem:[%s4084 + $0x40] sm:$0xff]
    %v4094 = vld [vmem:[%s4084 + $0x48] sm:$0xff]
    %v4095 = vld [vmem:[%s4084 + $0x50] sm:$0xff]
    %v4096 = vld [vmem:[%s4084 + $0x58] sm:$0xff]
    %v4097 = vld [vmem:[%s4084 + $0x60] sm:$0xff]
    %v4098 = vld [vmem:[%s4084 + $0x68] sm:$0xff]
    %v4099 = vld [vmem:[%s4084 + $0x70] sm:$0xff]
    %v4100 = vld [vmem:[%s4084 + $0x78] sm:$0xff]
    %v4101 = vld [vmem:[%s4084 + $0x80] sm:$0xff]
    %v4102 = vld [vmem:[%s4084 + $0x88] sm:$0xff]
    %v4103 = vld [vmem:[%s4084 + $0x90] sm:$0xff]
    %v4104 = vld [vmem:[%s4084 + $0x98] sm:$0xff]
    %v4105 = vld [vmem:[%s4084 + $0xa0] sm:$0xff]
    %v4106 = vld [vmem:[%s4084 + $0xa8] sm:$0xff]
    %v4107 = vld [vmem:[%s4084 + $0xb0] sm:$0xff]
    %v4108 = vld [vmem:[%s4084 + $0xb8] sm:$0xff]
    %v4109 = vld [vmem:[%s4084 + $0xc0] sm:$0xff]
    %v4110 = vld [vmem:[%s4084 + $0xc8] sm:$0xff]
    %v4111 = vld [vmem:[%s4084 + $0xd0] sm:$0xff]
    %v4112 = vld [vmem:[%s4084 + $0xd8] sm:$0xff]
    %v4113 = vld [vmem:[%s4084 + $0xe0] sm:$0xff]
    %v4114 = vld [vmem:[%s4084 + $0xe8] sm:$0xff]
    %v4115 = vld [vmem:[%s4084 + $0xf0] sm:$0xff]
    %v4116 = vld [vmem:[%s4084 + $0xf8] sm:$0xff]
    %v4117 = vld [vmem:[%s4084 + $0x100] sm:$0xff]
    %v4118 = vld [vmem:[%s4084 + $0x108] sm:$0xff]
    %v4119 = vld [vmem:[%s4084 + $0x110] sm:$0xff]
    %v4120 = vld [vmem:[%s4084 + $0x118] sm:$0xff]
    %v4121 = vld [vmem:[%s4084 + $0x120] sm:$0xff]
    %v4122 = vld [vmem:[%s4084 + $0x128] sm:$0xff]
    %v4123 = vld [vmem:[%s4084 + $0x130] sm:$0xff]
    %v4124 = vld [vmem:[%s4084 + $0x138] sm:$0xff]
    %v4125 = vld [vmem:[%s4084 + $0x140] sm:$0xff]
    %v4126 = vld [vmem:[%s4084 + $0x148] sm:$0xff]
    %v4127 = vld [vmem:[%s4084 + $0x150] sm:$0xff]
    %v4128 = vld [vmem:[%s4084 + $0x158] sm:$0xff]
    %v4129 = vld [vmem:[%s4084 + $0x160] sm:$0xff]
    %v4130 = vld [vmem:[%s4084 + $0x168] sm:$0xff]
    %v4131 = vld [vmem:[%s4084 + $0x170] sm:$0xff]
    %v4132 = vld [vmem:[%s4084 + $0x178] sm:$0xff]
    %v4133 = vld [vmem:[%s4084 + $0x180] sm:$0xff]
    %v4134 = vld [vmem:[%s4084 + $0x188] sm:$0xff]
    %v4135 = vld [vmem:[%s4084 + $0x190] sm:$0xff]
    %v4136 = vld [vmem:[%s4084 + $0x198] sm:$0xff]
    %v4137 = vld [vmem:[%s4084 + $0x1a0] sm:$0xff]
    %v4138 = vld [vmem:[%s4084 + $0x1a8] sm:$0xff]
    %v4139 = vld [vmem:[%s4084 + $0x1b0] sm:$0xff]
    %v4140 = vld [vmem:[%s4084 + $0x1b8] sm:$0xff]
    %v4141 = vld [vmem:[%s4084 + $0x1c0] sm:$0xff]
    %v4142 = vld [vmem:[%s4084 + $0x1c8] sm:$0xff]
    %v4143 = vld [vmem:[%s4084 + $0x1d0] sm:$0xff]
    %v4144 = vld [vmem:[%s4084 + $0x1d8] sm:$0xff]
    %v4145 = vld [vmem:[%s4084 + $0x1e0] sm:$0xff]
    %v4146 = vld [vmem:[%s4084 + $0x1e8] sm:$0xff]
    %v4147 = vld [vmem:[%s4084 + $0x1f0] sm:$0xff]
    %v4148 = vld [vmem:[%s4084 + $0x1f8] sm:$0xff]
    %v4149 = vld [vmem:[%s4084 + $0x200] sm:$0xff]
    %v4150 = vld [vmem:[%s4084 + $0x208] sm:$0xff]
    %v4151 = vld [vmem:[%s4084 + $0x210] sm:$0xff]
    %v4152 = vld [vmem:[%s4084 + $0x218] sm:$0xff]
    %v4153 = vld [vmem:[%s4084 + $0x220] sm:$0xff]
    %v4154 = vld [vmem:[%s4084 + $0x228] sm:$0xff]
    %v4155 = vld [vmem:[%s4084 + $0x230] sm:$0xff]
    %v4156 = vld [vmem:[%s4084 + $0x238] sm:$0xff]
    %v4157 = vld [vmem:[%s4084 + $0x240] sm:$0xff]
    %v4158 = vld [vmem:[%s4084 + $0x248] sm:$0xff]
    %v4159 = vld [vmem:[%s4084 + $0x250] sm:$0xff]
    %v4160 = vld [vmem:[%s4084 + $0x258] sm:$0xff]
    %v4161 = vld [vmem:[%s4084 + $0x260] sm:$0xff]
    %v4162 = vld [vmem:[%s4084 + $0x268] sm:$0xff]
    %v4163 = vld [vmem:[%s4084 + $0x270] sm:$0xff]
    %v4164 = vld [vmem:[%s4084 + $0x278] sm:$0xff]
    %v4165 = vld [vmem:[%s4084 + $0x280] sm:$0xff]
    %v4166 = vld [vmem:[%s4084 + $0x288] sm:$0xff]
    %v4167 = vld [vmem:[%s4084 + $0x290] sm:$0xff]
    %v4168 = vld [vmem:[%s4084 + $0x298] sm:$0xff]
    %v4169 = vld [vmem:[%s4084 + $0x2a0] sm:$0xff]
    %v4170 = vld [vmem:[%s4084 + $0x2a8] sm:$0xff]
    %v4171 = vld [vmem:[%s4084 + $0x2b0] sm:$0xff]
    %v4172 = vld [vmem:[%s4084 + $0x2b8] sm:$0xff]
    %v4173 = vld [vmem:[%s4084 + $0x2c0] sm:$0xff]
    %v4174 = vld [vmem:[%s4084 + $0x2c8] sm:$0xff]
    %v4175 = vld [vmem:[%s4084 + $0x2d0] sm:$0xff]
    %v4176 = vld [vmem:[%s4084 + $0x2d8] sm:$0xff]
    %v4177 = vld [vmem:[%s4084 + $0x2e0] sm:$0xff]
    %v4178 = vld [vmem:[%s4084 + $0x2e8] sm:$0xff]
    %v4179 = vld [vmem:[%s4084 + $0x2f0] sm:$0xff]
    %v4180 = vld [vmem:[%s4084 + $0x2f8] sm:$0xff]
    %v4181 = vlaneseq
    %v4182 = vshrl.u32 %v4181, 7
    %v4183 = vsub.s32 2, %v4182
    %v4184 = vrot.slane %v276, %v4183
    %v4185 = vlaneseq
    %v4186 = vshrl.u32 %v4185, 7
    %v4187 = vsub.s32 2, %v4186
    %v4188 = vrot.slane %v277, %v4187
    %v4189 = vlaneseq
    %v4190 = vshrl.u32 %v4189, 7
    %v4191 = vsub.s32 2, %v4190
    %v4192 = vrot.slane %v278, %v4191
    %v4193 = vlaneseq
    %v4194 = vshrl.u32 %v4193, 7
    %v4195 = vsub.s32 2, %v4194
    %v4196 = vrot.slane %v279, %v4195
    %v4197 = vlaneseq
    %v4198 = vshrl.u32 %v4197, 7
    %v4199 = vsub.s32 2, %v4198
    %v4200 = vrot.slane %v280, %v4199
    %v4201 = vlaneseq
    %v4202 = vshrl.u32 %v4201, 7
    %v4203 = vsub.s32 2, %v4202
    %v4204 = vrot.slane %v281, %v4203
    %v4301 = vunpack.c.l.b16 %v4085
    %v4302 = vunpack.c.h.b16 %v4085
    %v4303 = vunpack.c.l.b16 %v4086
    %v4304 = vunpack.c.h.b16 %v4086
    %v4305 = vunpack.c.l.b16 %v4087
    %v4306 = vunpack.c.h.b16 %v4087
    %v4307 = vunpack.c.l.b16 %v4088
    %v4308 = vunpack.c.h.b16 %v4088
    %v4309 = vunpack.c.l.b16 %v4089
    %v4310 = vunpack.c.h.b16 %v4089
    %v4311 = vunpack.c.l.b16 %v4090
    %v4312 = vunpack.c.h.b16 %v4090
    %v4313 = vunpack.c.l.b16 %v4091
    %v4314 = vunpack.c.h.b16 %v4091
    %v4315 = vunpack.c.l.b16 %v4092
    %v4316 = vunpack.c.h.b16 %v4092
    %v4317 = vunpack.c.l.b16 %v4093
    %v4318 = vunpack.c.h.b16 %v4093
    %v4319 = vunpack.c.l.b16 %v4094
    %v4320 = vunpack.c.h.b16 %v4094
    %v4321 = vunpack.c.l.b16 %v4095
    %v4322 = vunpack.c.h.b16 %v4095
    %v4323 = vunpack.c.l.b16 %v4096
    %v4324 = vunpack.c.h.b16 %v4096
    %v4325 = vunpack.c.l.b16 %v4097
    %v4326 = vunpack.c.h.b16 %v4097
    %v4327 = vunpack.c.l.b16 %v4098
    %v4328 = vunpack.c.h.b16 %v4098
    %v4329 = vunpack.c.l.b16 %v4099
    %v4330 = vunpack.c.h.b16 %v4099
    %v4331 = vunpack.c.l.b16 %v4100
    %v4332 = vunpack.c.h.b16 %v4100
    %v4333 = vunpack.c.l.b16 %v4101
    %v4334 = vunpack.c.h.b16 %v4101
    %v4335 = vunpack.c.l.b16 %v4102
    %v4336 = vunpack.c.h.b16 %v4102
    %v4337 = vunpack.c.l.b16 %v4103
    %v4338 = vunpack.c.h.b16 %v4103
    %v4339 = vunpack.c.l.b16 %v4104
    %v4340 = vunpack.c.h.b16 %v4104
    %v4341 = vunpack.c.l.b16 %v4105
    %v4342 = vunpack.c.h.b16 %v4105
    %v4343 = vunpack.c.l.b16 %v4106
    %v4344 = vunpack.c.h.b16 %v4106
    %v4345 = vunpack.c.l.b16 %v4107
    %v4346 = vunpack.c.h.b16 %v4107
    %v4347 = vunpack.c.l.b16 %v4108
    %v4348 = vunpack.c.h.b16 %v4108
    %v4349 = vunpack.c.l.b16 %v4109
    %v4350 = vunpack.c.h.b16 %v4109
    %v4351 = vunpack.c.l.b16 %v4110
    %v4352 = vunpack.c.h.b16 %v4110
    %v4353 = vunpack.c.l.b16 %v4111
    %v4354 = vunpack.c.h.b16 %v4111
    %v4355 = vunpack.c.l.b16 %v4112
    %v4356 = vunpack.c.h.b16 %v4112
    %v4357 = vunpack.c.l.b16 %v4113
    %v4358 = vunpack.c.h.b16 %v4113
    %v4359 = vunpack.c.l.b16 %v4114
    %v4360 = vunpack.c.h.b16 %v4114
    %v4361 = vunpack.c.l.b16 %v4115
    %v4362 = vunpack.c.h.b16 %v4115
    %v4363 = vunpack.c.l.b16 %v4116
    %v4364 = vunpack.c.h.b16 %v4116
    %v4365 = vunpack.c.l.b16 %v4117
    %v4366 = vunpack.c.h.b16 %v4117
    %v4367 = vunpack.c.l.b16 %v4118
    %v4368 = vunpack.c.h.b16 %v4118
    %v4369 = vunpack.c.l.b16 %v4119
    %v4370 = vunpack.c.h.b16 %v4119
    %v4371 = vunpack.c.l.b16 %v4120
    %v4372 = vunpack.c.h.b16 %v4120
    %v4373 = vunpack.c.l.b16 %v4121
    %v4374 = vunpack.c.h.b16 %v4121
    %v4375 = vunpack.c.l.b16 %v4122
    %v4376 = vunpack.c.h.b16 %v4122
    %v4377 = vunpack.c.l.b16 %v4123
    %v4378 = vunpack.c.h.b16 %v4123
    %v4379 = vunpack.c.l.b16 %v4124
    %v4380 = vunpack.c.h.b16 %v4124
    %v4381 = vunpack.c.l.b16 %v4125
    %v4382 = vunpack.c.h.b16 %v4125
    %v4383 = vunpack.c.l.b16 %v4126
    %v4384 = vunpack.c.h.b16 %v4126
    %v4385 = vunpack.c.l.b16 %v4127
    %v4386 = vunpack.c.h.b16 %v4127
    %v4387 = vunpack.c.l.b16 %v4128
    %v4388 = vunpack.c.h.b16 %v4128
    %v4389 = vunpack.c.l.b16 %v4129
    %v4390 = vunpack.c.h.b16 %v4129
    %v4391 = vunpack.c.l.b16 %v4130
    %v4392 = vunpack.c.h.b16 %v4130
    %v4393 = vunpack.c.l.b16 %v4131
    %v4394 = vunpack.c.h.b16 %v4131
    %v4395 = vunpack.c.l.b16 %v4132
    %v4396 = vunpack.c.h.b16 %v4132
    %v4397 = vunpack.c.l.b16 %v4133
    %v4398 = vunpack.c.h.b16 %v4133
    %v4399 = vunpack.c.l.b16 %v4134
    %v4400 = vunpack.c.h.b16 %v4134
    %v4401 = vunpack.c.l.b16 %v4135
    %v4402 = vunpack.c.h.b16 %v4135
    %v4403 = vunpack.c.l.b16 %v4136
    %v4404 = vunpack.c.h.b16 %v4136
    %v4405 = vunpack.c.l.b16 %v4137
    %v4406 = vunpack.c.h.b16 %v4137
    %v4407 = vunpack.c.l.b16 %v4138
    %v4408 = vunpack.c.h.b16 %v4138
    %v4409 = vunpack.c.l.b16 %v4139
    %v4410 = vunpack.c.h.b16 %v4139
    %v4411 = vunpack.c.l.b16 %v4140
    %v4412 = vunpack.c.h.b16 %v4140
    %v4413 = vunpack.c.l.b16 %v4141
    %v4414 = vunpack.c.h.b16 %v4141
    %v4415 = vunpack.c.l.b16 %v4142
    %v4416 = vunpack.c.h.b16 %v4142
    %v4417 = vunpack.c.l.b16 %v4143
    %v4418 = vunpack.c.h.b16 %v4143
    %v4419 = vunpack.c.l.b16 %v4144
    %v4420 = vunpack.c.h.b16 %v4144
    %v4421 = vunpack.c.l.b16 %v4145
    %v4422 = vunpack.c.h.b16 %v4145
    %v4423 = vunpack.c.l.b16 %v4146
    %v4424 = vunpack.c.h.b16 %v4146
    %v4425 = vunpack.c.l.b16 %v4147
    %v4426 = vunpack.c.h.b16 %v4147
    %v4427 = vunpack.c.l.b16 %v4148
    %v4428 = vunpack.c.h.b16 %v4148
    %v4429 = vunpack.c.l.b16 %v4149
    %v4430 = vunpack.c.h.b16 %v4149
    %v4431 = vunpack.c.l.b16 %v4150
    %v4432 = vunpack.c.h.b16 %v4150
    %v4433 = vunpack.c.l.b16 %v4151
    %v4434 = vunpack.c.h.b16 %v4151
    %v4435 = vunpack.c.l.b16 %v4152
    %v4436 = vunpack.c.h.b16 %v4152
    %v4437 = vunpack.c.l.b16 %v4153
    %v4438 = vunpack.c.h.b16 %v4153
    %v4439 = vunpack.c.l.b16 %v4154
    %v4440 = vunpack.c.h.b16 %v4154
    %v4441 = vunpack.c.l.b16 %v4155
    %v4442 = vunpack.c.h.b16 %v4155
    %v4443 = vunpack.c.l.b16 %v4156
    %v4444 = vunpack.c.h.b16 %v4156
    %v4445 = vunpack.c.l.b16 %v4157
    %v4446 = vunpack.c.h.b16 %v4157
    %v4447 = vunpack.c.l.b16 %v4158
    %v4448 = vunpack.c.h.b16 %v4158
    %v4449 = vunpack.c.l.b16 %v4159
    %v4450 = vunpack.c.h.b16 %v4159
    %v4451 = vunpack.c.l.b16 %v4160
    %v4452 = vunpack.c.h.b16 %v4160
    %v4453 = vunpack.c.l.b16 %v4161
    %v4454 = vunpack.c.h.b16 %v4161
    %v4455 = vunpack.c.l.b16 %v4162
    %v4456 = vunpack.c.h.b16 %v4162
    %v4457 = vunpack.c.l.b16 %v4163
    %v4458 = vunpack.c.h.b16 %v4163
    %v4459 = vunpack.c.l.b16 %v4164
    %v4460 = vunpack.c.h.b16 %v4164
    %v4461 = vunpack.c.l.b16 %v4165
    %v4462 = vunpack.c.h.b16 %v4165
    %v4463 = vunpack.c.l.b16 %v4166
    %v4464 = vunpack.c.h.b16 %v4166
    %v4465 = vunpack.c.l.b16 %v4167
    %v4466 = vunpack.c.h.b16 %v4167
    %v4467 = vunpack.c.l.b16 %v4168
    %v4468 = vunpack.c.h.b16 %v4168
    %v4469 = vunpack.c.l.b16 %v4169
    %v4470 = vunpack.c.h.b16 %v4169
    %v4471 = vunpack.c.l.b16 %v4170
    %v4472 = vunpack.c.h.b16 %v4170
    %v4473 = vunpack.c.l.b16 %v4171
    %v4474 = vunpack.c.h.b16 %v4171
    %v4475 = vunpack.c.l.b16 %v4172
    %v4476 = vunpack.c.h.b16 %v4172
    %v4477 = vunpack.c.l.b16 %v4173
    %v4478 = vunpack.c.h.b16 %v4173
    %v4479 = vunpack.c.l.b16 %v4174
    %v4480 = vunpack.c.h.b16 %v4174
    %v4481 = vunpack.c.l.b16 %v4175
    %v4482 = vunpack.c.h.b16 %v4175
    %v4483 = vunpack.c.l.b16 %v4176
    %v4484 = vunpack.c.h.b16 %v4176
    %v4485 = vunpack.c.l.b16 %v4177
    %v4486 = vunpack.c.h.b16 %v4177
    %v4487 = vunpack.c.l.b16 %v4178
    %v4488 = vunpack.c.h.b16 %v4178
    %v4489 = vunpack.c.l.b16 %v4179
    %v4490 = vunpack.c.h.b16 %v4179
    %v4491 = vunpack.c.l.b16 %v4180
    %v4492 = vunpack.c.h.b16 %v4180
    %v4493 = vpack.c.b16 %v4307, %v4301
    %v4494 = vpack.c.b16 %v4308, %v4302
    %v4495 = vpack.c.b16 %v4309, %v4303
    %v4496 = vpack.c.b16 %v4310, %v4304
    %v4497 = vpack.c.b16 %v4311, %v4305
    %v4498 = vpack.c.b16 %v4312, %v4306
    %v4499 = vpack.c.b16 %v4319, %v4313
    %v4500 = vpack.c.b16 %v4320, %v4314
    %v4501 = vpack.c.b16 %v4321, %v4315
    %v4502 = vpack.c.b16 %v4322, %v4316
    %v4503 = vpack.c.b16 %v4323, %v4317
    %v4504 = vpack.c.b16 %v4324, %v4318
    %v4505 = vpack.c.b16 %v4331, %v4325
    %v4506 = vpack.c.b16 %v4332, %v4326
    %v4507 = vpack.c.b16 %v4333, %v4327
    %v4508 = vpack.c.b16 %v4334, %v4328
    %v4509 = vpack.c.b16 %v4335, %v4329
    %v4510 = vpack.c.b16 %v4336, %v4330
    %v4511 = vpack.c.b16 %v4343, %v4337
    %v4512 = vpack.c.b16 %v4344, %v4338
    %v4513 = vpack.c.b16 %v4345, %v4339
    %v4514 = vpack.c.b16 %v4346, %v4340
    %v4515 = vpack.c.b16 %v4347, %v4341
    %v4516 = vpack.c.b16 %v4348, %v4342
    %v4517 = vpack.c.b16 %v4355, %v4349
    %v4518 = vpack.c.b16 %v4356, %v4350
    %v4519 = vpack.c.b16 %v4357, %v4351
    %v4520 = vpack.c.b16 %v4358, %v4352
    %v4521 = vpack.c.b16 %v4359, %v4353
    %v4522 = vpack.c.b16 %v4360, %v4354
    %v4523 = vpack.c.b16 %v4367, %v4361
    %v4524 = vpack.c.b16 %v4368, %v4362
    %v4525 = vpack.c.b16 %v4369, %v4363
    %v4526 = vpack.c.b16 %v4370, %v4364
    %v4527 = vpack.c.b16 %v4371, %v4365
    %v4528 = vpack.c.b16 %v4372, %v4366
    %v4529 = vpack.c.b16 %v4379, %v4373
    %v4530 = vpack.c.b16 %v4380, %v4374
    %v4531 = vpack.c.b16 %v4381, %v4375
    %v4532 = vpack.c.b16 %v4382, %v4376
    %v4533 = vpack.c.b16 %v4383, %v4377
    %v4534 = vpack.c.b16 %v4384, %v4378
    %v4535 = vpack.c.b16 %v4391, %v4385
    %v4536 = vpack.c.b16 %v4392, %v4386
    %v4537 = vpack.c.b16 %v4393, %v4387
    %v4538 = vpack.c.b16 %v4394, %v4388
    %v4539 = vpack.c.b16 %v4395, %v4389
    %v4540 = vpack.c.b16 %v4396, %v4390
    %v4541 = vpack.c.b16 %v4403, %v4397
    %v4542 = vpack.c.b16 %v4404, %v4398
    %v4543 = vpack.c.b16 %v4405, %v4399
    %v4544 = vpack.c.b16 %v4406, %v4400
    %v4545 = vpack.c.b16 %v4407, %v4401
    %v4546 = vpack.c.b16 %v4408, %v4402
    %v4547 = vpack.c.b16 %v4415, %v4409
    %v4548 = vpack.c.b16 %v4416, %v4410
    %v4549 = vpack.c.b16 %v4417, %v4411
    %v4550 = vpack.c.b16 %v4418, %v4412
    %v4551 = vpack.c.b16 %v4419, %v4413
    %v4552 = vpack.c.b16 %v4420, %v4414
    %v4553 = vpack.c.b16 %v4427, %v4421
    %v4554 = vpack.c.b16 %v4428, %v4422
    %v4555 = vpack.c.b16 %v4429, %v4423
    %v4556 = vpack.c.b16 %v4430, %v4424
    %v4557 = vpack.c.b16 %v4431, %v4425
    %v4558 = vpack.c.b16 %v4432, %v4426
    %v4559 = vpack.c.b16 %v4439, %v4433
    %v4560 = vpack.c.b16 %v4440, %v4434
    %v4561 = vpack.c.b16 %v4441, %v4435
    %v4562 = vpack.c.b16 %v4442, %v4436
    %v4563 = vpack.c.b16 %v4443, %v4437
    %v4564 = vpack.c.b16 %v4444, %v4438
    %v4565 = vpack.c.b16 %v4451, %v4445
    %v4566 = vpack.c.b16 %v4452, %v4446
    %v4567 = vpack.c.b16 %v4453, %v4447
    %v4568 = vpack.c.b16 %v4454, %v4448
    %v4569 = vpack.c.b16 %v4455, %v4449
    %v4570 = vpack.c.b16 %v4456, %v4450
    %v4571 = vpack.c.b16 %v4463, %v4457
    %v4572 = vpack.c.b16 %v4464, %v4458
    %v4573 = vpack.c.b16 %v4465, %v4459
    %v4574 = vpack.c.b16 %v4466, %v4460
    %v4575 = vpack.c.b16 %v4467, %v4461
    %v4576 = vpack.c.b16 %v4468, %v4462
    %v4577 = vpack.c.b16 %v4475, %v4469
    %v4578 = vpack.c.b16 %v4476, %v4470
    %v4579 = vpack.c.b16 %v4477, %v4471
    %v4580 = vpack.c.b16 %v4478, %v4472
    %v4581 = vpack.c.b16 %v4479, %v4473
    %v4582 = vpack.c.b16 %v4480, %v4474
    %v4583 = vpack.c.b16 %v4487, %v4481
    %v4584 = vpack.c.b16 %v4488, %v4482
    %v4585 = vpack.c.b16 %v4489, %v4483
    %v4586 = vpack.c.b16 %v4490, %v4484
    %v4587 = vpack.c.b16 %v4491, %v4485
    %v4588 = vpack.c.b16 %v4492, %v4486
    %4685 = vmatprep.subr.bf16.mxu0 %v4494
    %4686 = vmatpush1.bf16.msra.mxu0 %v4493
    %4687 = vmatprep.subr.bf16.mxu0 %v4500
    %4688 = vmatpush1.bf16.msra.mxu0 %v4499
    %4689 = vmatprep.subr.bf16.mxu0 %v4506
    %4690 = vmatpush1.bf16.msra.mxu0 %v4505
    %4691 = vmatprep.subr.bf16.mxu0 %v4512
    %4692 = vmatpush1.bf16.msra.mxu0 %v4511
    %4693 = vmatprep.subr.bf16.mxu0 %v4518
    %4694 = vmatpush1.bf16.msra.mxu0 %v4517
    %4695 = vmatprep.subr.bf16.mxu0 %v4524
    %4696 = vmatpush1.bf16.msra.mxu0 %v4523
    %4697 = vmatprep.subr.bf16.mxu0 %v4530
    %4698 = vmatpush1.bf16.msra.mxu0 %v4529
    %4699 = vmatprep.subr.bf16.mxu0 %v4536
    %4700 = vmatpush1.bf16.msra.mxu0 %v4535
    %4701 = vmatprep.subr.bf16.mxu0 %v4542
    %4702 = vmatpush1.bf16.msra.mxu0 %v4541
    %4703 = vmatprep.subr.bf16.mxu0 %v4548
    %4704 = vmatpush1.bf16.msra.mxu0 %v4547
    %4705 = vmatprep.subr.bf16.mxu0 %v4554
    %4706 = vmatpush1.bf16.msra.mxu0 %v4553
    %4707 = vmatprep.subr.bf16.mxu0 %v4560
    %4708 = vmatpush1.bf16.msra.mxu0 %v4559
    %4709 = vmatprep.subr.bf16.mxu0 %v4566
    %4710 = vmatpush1.bf16.msra.mxu0 %v4565
    %4711 = vmatprep.subr.bf16.mxu0 %v4572
    %4712 = vmatpush1.bf16.msra.mxu0 %v4571
    %4713 = vmatprep.subr.bf16.mxu0 %v4578
    %4714 = vmatpush1.bf16.msra.mxu0 %v4577
    %4715 = vmatprep.subr.bf16.mxu0 %v4584
    %4716 = vmatpush1.bf16.msra.mxu0 %v4583
    %4717 = vmatprep.mubr.bf16.mxu0 %v4083
    %4718 = vmatmul.mubr.bf16.gmra.mrb[0].mxu0 %v4082
    %v4719 = vpop.f32.mrb[0].mxu0
    %v4720 = vadd.f32 %v4184, %v4719
    %v4721 = vpop.f32.mrb[0].mxu0
    %v4722 = vadd.f32 %v4188, %v4721
    %v4723 = vpop.f32.mrb[0].mxu0
    %v4724 = vpop.f32.mrb[0].mxu0
    %4725 = vdwg.mxu0
    %4726 = vmatprep.subr.bf16.mxu0 %v4496
    %4727 = vmatpush1.bf16.msra.mxu0 %v4495
    %4728 = vmatprep.subr.bf16.mxu0 %v4502
    %4729 = vmatpush1.bf16.msra.mxu0 %v4501
    %4730 = vmatprep.subr.bf16.mxu0 %v4508
    %4731 = vmatpush1.bf16.msra.mxu0 %v4507
    %4732 = vmatprep.subr.bf16.mxu0 %v4514
    %4733 = vmatpush1.bf16.msra.mxu0 %v4513
    %4734 = vmatprep.subr.bf16.mxu0 %v4520
    %4735 = vmatpush1.bf16.msra.mxu0 %v4519
    %4736 = vmatprep.subr.bf16.mxu0 %v4526
    %4737 = vmatpush1.bf16.msra.mxu0 %v4525
    %4738 = vmatprep.subr.bf16.mxu0 %v4532
    %4739 = vmatpush1.bf16.msra.mxu0 %v4531
    %4740 = vmatprep.subr.bf16.mxu0 %v4538
    %4741 = vmatpush1.bf16.msra.mxu0 %v4537
    %4742 = vmatprep.subr.bf16.mxu0 %v4544
    %4743 = vmatpush1.bf16.msra.mxu0 %v4543
    %4744 = vmatprep.subr.bf16.mxu0 %v4550
    %4745 = vmatpush1.bf16.msra.mxu0 %v4549
    %4746 = vmatprep.subr.bf16.mxu0 %v4556
    %4747 = vmatpush1.bf16.msra.mxu0 %v4555
    %4748 = vmatprep.subr.bf16.mxu0 %v4562
    %4749 = vmatpush1.bf16.msra.mxu0 %v4561
    %4750 = vmatprep.subr.bf16.mxu0 %v4568
    %4751 = vmatpush1.bf16.msra.mxu0 %v4567
    %4752 = vmatprep.subr.bf16.mxu0 %v4574
    %4753 = vmatpush1.bf16.msra.mxu0 %v4573
    %4754 = vmatprep.subr.bf16.mxu0 %v4580
    %4755 = vmatpush1.bf16.msra.mxu0 %v4579
    %4756 = vmatprep.subr.bf16.mxu0 %v4586
    %4757 = vmatpush1.bf16.msra.mxu0 %v4585
    %4758 = vmatprep.mubr.bf16.mxu0 %v4083
    %4759 = vmatmul.mubr.bf16.gmra.mrb[0].mxu0 %v4082
    %v4760 = vpop.f32.mrb[0].mxu0
    %v4761 = vadd.f32 %v4192, %v4760
    %v4762 = vpop.f32.mrb[0].mxu0
    %v4763 = vadd.f32 %v4196, %v4762
    %v4764 = vpop.f32.mrb[0].mxu0
    %v4765 = vpop.f32.mrb[0].mxu0
    %4766 = vdwg.mxu0
    %4767 = vmatprep.subr.bf16.mxu0 %v4498
    %4768 = vmatpush1.bf16.msra.mxu0 %v4497
    %4769 = vmatprep.subr.bf16.mxu0 %v4504
    %4770 = vmatpush1.bf16.msra.mxu0 %v4503
    %4771 = vmatprep.subr.bf16.mxu0 %v4510
    %4772 = vmatpush1.bf16.msra.mxu0 %v4509
    %4773 = vmatprep.subr.bf16.mxu0 %v4516
    %4774 = vmatpush1.bf16.msra.mxu0 %v4515
    %4775 = vmatprep.subr.bf16.mxu0 %v4522
    %4776 = vmatpush1.bf16.msra.mxu0 %v4521
    %4777 = vmatprep.subr.bf16.mxu0 %v4528
    %4778 = vmatpush1.bf16.msra.mxu0 %v4527
    %4779 = vmatprep.subr.bf16.mxu0 %v4534
    %4780 = vmatpush1.bf16.msra.mxu0 %v4533
    %4781 = vmatprep.subr.bf16.mxu0 %v4540
    %4782 = vmatpush1.bf16.msra.mxu0 %v4539
    %4783 = vmatprep.subr.bf16.mxu0 %v4546
    %4784 = vmatpush1.bf16.msra.mxu0 %v4545
    %4785 = vmatprep.subr.bf16.mxu0 %v4552
    %4786 = vmatpush1.bf16.msra.mxu0 %v4551
    %4787 = vmatprep.subr.bf16.mxu0 %v4558
    %4788 = vmatpush1.bf16.msra.mxu0 %v4557
    %4789 = vmatprep.subr.bf16.mxu0 %v4564
    %4790 = vmatpush1.bf16.msra.mxu0 %v4563
    %4791 = vmatprep.subr.bf16.mxu0 %v4570
    %4792 = vmatpush1.bf16.msra.mxu0 %v4569
    %4793 = vmatprep.subr.bf16.mxu0 %v4576
    %4794 = vmatpush1.bf16.msra.mxu0 %v4575
    %4795 = vmatprep.subr.bf16.mxu0 %v4582
    %4796 = vmatpush1.bf16.msra.mxu0 %v4581
    %4797 = vmatprep.subr.bf16.mxu0 %v4588
    %4798 = vmatpush1.bf16.msra.mxu0 %v4587
    %4799 = vmatprep.mubr.bf16.mxu0 %v4083
    %4800 = vmatmul.mubr.bf16.gmra.mrb[0].mxu0 %v4082
    %v4801 = vpop.f32.mrb[0].mxu0
    %v4802 = vadd.f32 %v4200, %v4801
    %v4803 = vpop.f32.mrb[0].mxu0
    %v4804 = vadd.f32 %v4204, %v4803
    %v4805 = vpop.f32.mrb[0].mxu0
    %v4806 = vpop.f32.mrb[0].mxu0
    %4807 = vdwg.mxu0
    %v4808 = vadd.f32 %v4720, %v1642
    %v4809 = vadd.f32 %v4722, %v1644
    %v4810 = vxor.u32 %v4808, 2147483648
    %v4811 = vxor.u32 %v4809, 2147483648
    %v4812 = vmul.f32 %v4810, 1.442695
    %v4813 = vpow.pop %v4812
    %v4814 = vmul.f32 %v4811, 1.442695
    %v4815 = vpow.pop %v4814
    %v4816 = vadd.f32 %v4813, 1.0
    %v4817 = vadd.f32 %v4815, 1.0
    %v4818 = vrcp.pop %v4816
    %v4819 = vmul.f32 1.0, %v4818
    %v4820 = vrcp.pop %v4817
    %v4821 = vmul.f32 1.0, %v4820
    %v4822 = vadd.f32 %v4761, %v1683
    %v4823 = vadd.f32 %v4763, %v1685
    %v4824 = vxor.u32 %v4822, 2147483648
    %v4825 = vxor.u32 %v4823, 2147483648
    %v4826 = vmul.f32 %v4824, 1.442695
    %v4827 = vpow.pop %v4826
    %v4828 = vmul.f32 %v4825, 1.442695
    %v4829 = vpow.pop %v4828
    %v4830 = vadd.f32 %v4827, 1.0
    %v4831 = vadd.f32 %v4829, 1.0
    %v4832 = vrcp.pop %v4830
    %v4833 = vmul.f32 1.0, %v4832
    %v4834 = vrcp.pop %v4831
    %v4835 = vmul.f32 1.0, %v4834
    %v4836 = vmul.f32 %v4819, %v1724
    %v4837 = vmul.f32 %v4821, %v1726
    %v4838 = vadd.f32 %v4802, %v4836
    %v4839 = vadd.f32 %v4804, %v4837
    %v4840 = vtanh.pop %v4838
    %v4841 = vtanh.pop %v4839
    %v4842 = vsub.f32 1.0, %v4833
    %v4843 = vsub.f32 1.0, %v4835
    %v4844 = vmul.f32 %v4842, %v4840
    %v4845 = vmul.f32 %v4843, %v4841
    %v4846 = vmul.f32 %v4833, %v146
    %v4847 = vmul.f32 %v4835, %v147
    %v4848 = vadd.f32 %v4844, %v4846
    %v4849 = vadd.f32 %v4845, %v4847
    %v4850 = vpack.c.bf16 %v4848, %v4848
    %v4851 = vpack.c.bf16 %v4849, %v4849
    %s4852 = scalar_lea.vmem [#allocation11], 3840
    %v4853 = vld [vmem:[%s4852] sm:$0xff]
    %v4854 = vld [vmem:[%s4852 + $0x8] sm:$0xff]
    %v4855 = vld [vmem:[%s4852 + $0x10] sm:$0xff]
    %v4856 = vld [vmem:[%s4852 + $0x18] sm:$0xff]
    %v4857 = vld [vmem:[%s4852 + $0x20] sm:$0xff]
    %v4858 = vld [vmem:[%s4852 + $0x28] sm:$0xff]
    %v4859 = vld [vmem:[%s4852 + $0x30] sm:$0xff]
    %v4860 = vld [vmem:[%s4852 + $0x38] sm:$0xff]
    %v4861 = vld [vmem:[%s4852 + $0x40] sm:$0xff]
    %v4862 = vld [vmem:[%s4852 + $0x48] sm:$0xff]
    %v4863 = vld [vmem:[%s4852 + $0x50] sm:$0xff]
    %v4864 = vld [vmem:[%s4852 + $0x58] sm:$0xff]
    %v4865 = vld [vmem:[%s4852 + $0x60] sm:$0xff]
    %v4866 = vld [vmem:[%s4852 + $0x68] sm:$0xff]
    %v4867 = vld [vmem:[%s4852 + $0x70] sm:$0xff]
    %v4868 = vld [vmem:[%s4852 + $0x78] sm:$0xff]
    %v4869 = vld [vmem:[%s4852 + $0x80] sm:$0xff]
    %v4870 = vld [vmem:[%s4852 + $0x88] sm:$0xff]
    %v4871 = vld [vmem:[%s4852 + $0x90] sm:$0xff]
    %v4872 = vld [vmem:[%s4852 + $0x98] sm:$0xff]
    %v4873 = vld [vmem:[%s4852 + $0xa0] sm:$0xff]
    %v4874 = vld [vmem:[%s4852 + $0xa8] sm:$0xff]
    %v4875 = vld [vmem:[%s4852 + $0xb0] sm:$0xff]
    %v4876 = vld [vmem:[%s4852 + $0xb8] sm:$0xff]
    %v4877 = vld [vmem:[%s4852 + $0xc0] sm:$0xff]
    %v4878 = vld [vmem:[%s4852 + $0xc8] sm:$0xff]
    %v4879 = vld [vmem:[%s4852 + $0xd0] sm:$0xff]
    %v4880 = vld [vmem:[%s4852 + $0xd8] sm:$0xff]
    %v4881 = vld [vmem:[%s4852 + $0xe0] sm:$0xff]
    %v4882 = vld [vmem:[%s4852 + $0xe8] sm:$0xff]
    %v4883 = vld [vmem:[%s4852 + $0xf0] sm:$0xff]
    %v4884 = vld [vmem:[%s4852 + $0xf8] sm:$0xff]
    %v4885 = vld [vmem:[%s4852 + $0x100] sm:$0xff]
    %v4886 = vld [vmem:[%s4852 + $0x108] sm:$0xff]
    %v4887 = vld [vmem:[%s4852 + $0x110] sm:$0xff]
    %v4888 = vld [vmem:[%s4852 + $0x118] sm:$0xff]
    %v4889 = vld [vmem:[%s4852 + $0x120] sm:$0xff]
    %v4890 = vld [vmem:[%s4852 + $0x128] sm:$0xff]
    %v4891 = vld [vmem:[%s4852 + $0x130] sm:$0xff]
    %v4892 = vld [vmem:[%s4852 + $0x138] sm:$0xff]
    %v4893 = vld [vmem:[%s4852 + $0x140] sm:$0xff]
    %v4894 = vld [vmem:[%s4852 + $0x148] sm:$0xff]
    %v4895 = vld [vmem:[%s4852 + $0x150] sm:$0xff]
    %v4896 = vld [vmem:[%s4852 + $0x158] sm:$0xff]
    %v4897 = vld [vmem:[%s4852 + $0x160] sm:$0xff]
    %v4898 = vld [vmem:[%s4852 + $0x168] sm:$0xff]
    %v4899 = vld [vmem:[%s4852 + $0x170] sm:$0xff]
    %v4900 = vld [vmem:[%s4852 + $0x178] sm:$0xff]
    %v4901 = vld [vmem:[%s4852 + $0x180] sm:$0xff]
    %v4902 = vld [vmem:[%s4852 + $0x188] sm:$0xff]
    %v4903 = vld [vmem:[%s4852 + $0x190] sm:$0xff]
    %v4904 = vld [vmem:[%s4852 + $0x198] sm:$0xff]
    %v4905 = vld [vmem:[%s4852 + $0x1a0] sm:$0xff]
    %v4906 = vld [vmem:[%s4852 + $0x1a8] sm:$0xff]
    %v4907 = vld [vmem:[%s4852 + $0x1b0] sm:$0xff]
    %v4908 = vld [vmem:[%s4852 + $0x1b8] sm:$0xff]
    %v4909 = vld [vmem:[%s4852 + $0x1c0] sm:$0xff]
    %v4910 = vld [vmem:[%s4852 + $0x1c8] sm:$0xff]
    %v4911 = vld [vmem:[%s4852 + $0x1d0] sm:$0xff]
    %v4912 = vld [vmem:[%s4852 + $0x1d8] sm:$0xff]
    %v4913 = vld [vmem:[%s4852 + $0x1e0] sm:$0xff]
    %v4914 = vld [vmem:[%s4852 + $0x1e8] sm:$0xff]
    %v4915 = vld [vmem:[%s4852 + $0x1f0] sm:$0xff]
    %v4916 = vld [vmem:[%s4852 + $0x1f8] sm:$0xff]
    %v4917 = vld [vmem:[%s4852 + $0x200] sm:$0xff]
    %v4918 = vld [vmem:[%s4852 + $0x208] sm:$0xff]
    %v4919 = vld [vmem:[%s4852 + $0x210] sm:$0xff]
    %v4920 = vld [vmem:[%s4852 + $0x218] sm:$0xff]
    %v4921 = vld [vmem:[%s4852 + $0x220] sm:$0xff]
    %v4922 = vld [vmem:[%s4852 + $0x228] sm:$0xff]
    %v4923 = vld [vmem:[%s4852 + $0x230] sm:$0xff]
    %v4924 = vld [vmem:[%s4852 + $0x238] sm:$0xff]
    %v4925 = vld [vmem:[%s4852 + $0x240] sm:$0xff]
    %v4926 = vld [vmem:[%s4852 + $0x248] sm:$0xff]
    %v4927 = vld [vmem:[%s4852 + $0x250] sm:$0xff]
    %v4928 = vld [vmem:[%s4852 + $0x258] sm:$0xff]
    %v4929 = vld [vmem:[%s4852 + $0x260] sm:$0xff]
    %v4930 = vld [vmem:[%s4852 + $0x268] sm:$0xff]
    %v4931 = vld [vmem:[%s4852 + $0x270] sm:$0xff]
    %v4932 = vld [vmem:[%s4852 + $0x278] sm:$0xff]
    %v4933 = vld [vmem:[%s4852 + $0x280] sm:$0xff]
    %v4934 = vld [vmem:[%s4852 + $0x288] sm:$0xff]
    %v4935 = vld [vmem:[%s4852 + $0x290] sm:$0xff]
    %v4936 = vld [vmem:[%s4852 + $0x298] sm:$0xff]
    %v4937 = vld [vmem:[%s4852 + $0x2a0] sm:$0xff]
    %v4938 = vld [vmem:[%s4852 + $0x2a8] sm:$0xff]
    %v4939 = vld [vmem:[%s4852 + $0x2b0] sm:$0xff]
    %v4940 = vld [vmem:[%s4852 + $0x2b8] sm:$0xff]
    %v4941 = vld [vmem:[%s4852 + $0x2c0] sm:$0xff]
    %v4942 = vld [vmem:[%s4852 + $0x2c8] sm:$0xff]
    %v4943 = vld [vmem:[%s4852 + $0x2d0] sm:$0xff]
    %v4944 = vld [vmem:[%s4852 + $0x2d8] sm:$0xff]
    %v4945 = vld [vmem:[%s4852 + $0x2e0] sm:$0xff]
    %v4946 = vld [vmem:[%s4852 + $0x2e8] sm:$0xff]
    %v4947 = vld [vmem:[%s4852 + $0x2f0] sm:$0xff]
    %v4948 = vld [vmem:[%s4852 + $0x2f8] sm:$0xff]
    %v4949 = vlaneseq
    %v4950 = vshrl.u32 %v4949, 7
    %v4951 = vsub.s32 4, %v4950
    %v4952 = vrot.slane %v276, %v4951
    %v4953 = vlaneseq
    %v4954 = vshrl.u32 %v4953, 7
    %v4955 = vsub.s32 4, %v4954
    %v4956 = vrot.slane %v277, %v4955
    %v4957 = vlaneseq
    %v4958 = vshrl.u32 %v4957, 7
    %v4959 = vsub.s32 4, %v4958
    %v4960 = vrot.slane %v278, %v4959
    %v4961 = vlaneseq
    %v4962 = vshrl.u32 %v4961, 7
    %v4963 = vsub.s32 4, %v4962
    %v4964 = vrot.slane %v279, %v4963
    %v4965 = vlaneseq
    %v4966 = vshrl.u32 %v4965, 7
    %v4967 = vsub.s32 4, %v4966
    %v4968 = vrot.slane %v280, %v4967
    %v4969 = vlaneseq
    %v4970 = vshrl.u32 %v4969, 7
    %v4971 = vsub.s32 4, %v4970
    %v4972 = vrot.slane %v281, %v4971
    %v5069 = vunpack.c.l.b16 %v4853
    %v5070 = vunpack.c.h.b16 %v4853
    %v5071 = vunpack.c.l.b16 %v4854
    %v5072 = vunpack.c.h.b16 %v4854
    %v5073 = vunpack.c.l.b16 %v4855
    %v5074 = vunpack.c.h.b16 %v4855
    %v5075 = vunpack.c.l.b16 %v4856
    %v5076 = vunpack.c.h.b16 %v4856
    %v5077 = vunpack.c.l.b16 %v4857
    %v5078 = vunpack.c.h.b16 %v4857
    %v5079 = vunpack.c.l.b16 %v4858
    %v5080 = vunpack.c.h.b16 %v4858
    %v5081 = vunpack.c.l.b16 %v4859
    %v5082 = vunpack.c.h.b16 %v4859
    %v5083 = vunpack.c.l.b16 %v4860
    %v5084 = vunpack.c.h.b16 %v4860
    %v5085 = vunpack.c.l.b16 %v4861
    %v5086 = vunpack.c.h.b16 %v4861
    %v5087 = vunpack.c.l.b16 %v4862
    %v5088 = vunpack.c.h.b16 %v4862
    %v5089 = vunpack.c.l.b16 %v4863
    %v5090 = vunpack.c.h.b16 %v4863
    %v5091 = vunpack.c.l.b16 %v4864
    %v5092 = vunpack.c.h.b16 %v4864
    %v5093 = vunpack.c.l.b16 %v4865
    %v5094 = vunpack.c.h.b16 %v4865
    %v5095 = vunpack.c.l.b16 %v4866
    %v5096 = vunpack.c.h.b16 %v4866
    %v5097 = vunpack.c.l.b16 %v4867
    %v5098 = vunpack.c.h.b16 %v4867
    %v5099 = vunpack.c.l.b16 %v4868
    %v5100 = vunpack.c.h.b16 %v4868
    %v5101 = vunpack.c.l.b16 %v4869
    %v5102 = vunpack.c.h.b16 %v4869
    %v5103 = vunpack.c.l.b16 %v4870
    %v5104 = vunpack.c.h.b16 %v4870
    %v5105 = vunpack.c.l.b16 %v4871
    %v5106 = vunpack.c.h.b16 %v4871
    %v5107 = vunpack.c.l.b16 %v4872
    %v5108 = vunpack.c.h.b16 %v4872
    %v5109 = vunpack.c.l.b16 %v4873
    %v5110 = vunpack.c.h.b16 %v4873
    %v5111 = vunpack.c.l.b16 %v4874
    %v5112 = vunpack.c.h.b16 %v4874
    %v5113 = vunpack.c.l.b16 %v4875
    %v5114 = vunpack.c.h.b16 %v4875
    %v5115 = vunpack.c.l.b16 %v4876
    %v5116 = vunpack.c.h.b16 %v4876
    %v5117 = vunpack.c.l.b16 %v4877
    %v5118 = vunpack.c.h.b16 %v4877
    %v5119 = vunpack.c.l.b16 %v4878
    %v5120 = vunpack.c.h.b16 %v4878
    %v5121 = vunpack.c.l.b16 %v4879
    %v5122 = vunpack.c.h.b16 %v4879
    %v5123 = vunpack.c.l.b16 %v4880
    %v5124 = vunpack.c.h.b16 %v4880
    %v5125 = vunpack.c.l.b16 %v4881
    %v5126 = vunpack.c.h.b16 %v4881
    %v5127 = vunpack.c.l.b16 %v4882
    %v5128 = vunpack.c.h.b16 %v4882
    %v5129 = vunpack.c.l.b16 %v4883
    %v5130 = vunpack.c.h.b16 %v4883
    %v5131 = vunpack.c.l.b16 %v4884
    %v5132 = vunpack.c.h.b16 %v4884
    %v5133 = vunpack.c.l.b16 %v4885
    %v5134 = vunpack.c.h.b16 %v4885
    %v5135 = vunpack.c.l.b16 %v4886
    %v5136 = vunpack.c.h.b16 %v4886
    %v5137 = vunpack.c.l.b16 %v4887
    %v5138 = vunpack.c.h.b16 %v4887
    %v5139 = vunpack.c.l.b16 %v4888
    %v5140 = vunpack.c.h.b16 %v4888
    %v5141 = vunpack.c.l.b16 %v4889
    %v5142 = vunpack.c.h.b16 %v4889
    %v5143 = vunpack.c.l.b16 %v4890
    %v5144 = vunpack.c.h.b16 %v4890
    %v5145 = vunpack.c.l.b16 %v4891
    %v5146 = vunpack.c.h.b16 %v4891
    %v5147 = vunpack.c.l.b16 %v4892
    %v5148 = vunpack.c.h.b16 %v4892
    %v5149 = vunpack.c.l.b16 %v4893
    %v5150 = vunpack.c.h.b16 %v4893
    %v5151 = vunpack.c.l.b16 %v4894
    %v5152 = vunpack.c.h.b16 %v4894
    %v5153 = vunpack.c.l.b16 %v4895
    %v5154 = vunpack.c.h.b16 %v4895
    %v5155 = vunpack.c.l.b16 %v4896
    %v5156 = vunpack.c.h.b16 %v4896
    %v5157 = vunpack.c.l.b16 %v4897
    %v5158 = vunpack.c.h.b16 %v4897
    %v5159 = vunpack.c.l.b16 %v4898
    %v5160 = vunpack.c.h.b16 %v4898
    %v5161 = vunpack.c.l.b16 %v4899
    %v5162 = vunpack.c.h.b16 %v4899
    %v5163 = vunpack.c.l.b16 %v4900
    %v5164 = vunpack.c.h.b16 %v4900
    %v5165 = vunpack.c.l.b16 %v4901
    %v5166 = vunpack.c.h.b16 %v4901
    %v5167 = vunpack.c.l.b16 %v4902
    %v5168 = vunpack.c.h.b16 %v4902
    %v5169 = vunpack.c.l.b16 %v4903
    %v5170 = vunpack.c.h.b16 %v4903
    %v5171 = vunpack.c.l.b16 %v4904
    %v5172 = vunpack.c.h.b16 %v4904
    %v5173 = vunpack.c.l.b16 %v4905
    %v5174 = vunpack.c.h.b16 %v4905
    %v5175 = vunpack.c.l.b16 %v4906
    %v5176 = vunpack.c.h.b16 %v4906
    %v5177 = vunpack.c.l.b16 %v4907
    %v5178 = vunpack.c.h.b16 %v4907
    %v5179 = vunpack.c.l.b16 %v4908
    %v5180 = vunpack.c.h.b16 %v4908
    %v5181 = vunpack.c.l.b16 %v4909
    %v5182 = vunpack.c.h.b16 %v4909
    %v5183 = vunpack.c.l.b16 %v4910
    %v5184 = vunpack.c.h.b16 %v4910
    %v5185 = vunpack.c.l.b16 %v4911
    %v5186 = vunpack.c.h.b16 %v4911
    %v5187 = vunpack.c.l.b16 %v4912
    %v5188 = vunpack.c.h.b16 %v4912
    %v5189 = vunpack.c.l.b16 %v4913
    %v5190 = vunpack.c.h.b16 %v4913
    %v5191 = vunpack.c.l.b16 %v4914
    %v5192 = vunpack.c.h.b16 %v4914
    %v5193 = vunpack.c.l.b16 %v4915
    %v5194 = vunpack.c.h.b16 %v4915
    %v5195 = vunpack.c.l.b16 %v4916
    %v5196 = vunpack.c.h.b16 %v4916
    %v5197 = vunpack.c.l.b16 %v4917
    %v5198 = vunpack.c.h.b16 %v4917
    %v5199 = vunpack.c.l.b16 %v4918
    %v5200 = vunpack.c.h.b16 %v4918
    %v5201 = vunpack.c.l.b16 %v4919
    %v5202 = vunpack.c.h.b16 %v4919
    %v5203 = vunpack.c.l.b16 %v4920
    %v5204 = vunpack.c.h.b16 %v4920
    %v5205 = vunpack.c.l.b16 %v4921
    %v5206 = vunpack.c.h.b16 %v4921
    %v5207 = vunpack.c.l.b16 %v4922
    %v5208 = vunpack.c.h.b16 %v4922
    %v5209 = vunpack.c.l.b16 %v4923
    %v5210 = vunpack.c.h.b16 %v4923
    %v5211 = vunpack.c.l.b16 %v4924
    %v5212 = vunpack.c.h.b16 %v4924
    %v5213 = vunpack.c.l.b16 %v4925
    %v5214 = vunpack.c.h.b16 %v4925
    %v5215 = vunpack.c.l.b16 %v4926
    %v5216 = vunpack.c.h.b16 %v4926
    %v5217 = vunpack.c.l.b16 %v4927
    %v5218 = vunpack.c.h.b16 %v4927
    %v5219 = vunpack.c.l.b16 %v4928
    %v5220 = vunpack.c.h.b16 %v4928
    %v5221 = vunpack.c.l.b16 %v4929
    %v5222 = vunpack.c.h.b16 %v4929
    %v5223 = vunpack.c.l.b16 %v4930
    %v5224 = vunpack.c.h.b16 %v4930
    %v5225 = vunpack.c.l.b16 %v4931
    %v5226 = vunpack.c.h.b16 %v4931
    %v5227 = vunpack.c.l.b16 %v4932
    %v5228 = vunpack.c.h.b16 %v4932
    %v5229 = vunpack.c.l.b16 %v4933
    %v5230 = vunpack.c.h.b16 %v4933
    %v5231 = vunpack.c.l.b16 %v4934
    %v5232 = vunpack.c.h.b16 %v4934
    %v5233 = vunpack.c.l.b16 %v4935
    %v5234 = vunpack.c.h.b16 %v4935
    %v5235 = vunpack.c.l.b16 %v4936
    %v5236 = vunpack.c.h.b16 %v4936
    %v5237 = vunpack.c.l.b16 %v4937
    %v5238 = vunpack.c.h.b16 %v4937
    %v5239 = vunpack.c.l.b16 %v4938
    %v5240 = vunpack.c.h.b16 %v4938
    %v5241 = vunpack.c.l.b16 %v4939
    %v5242 = vunpack.c.h.b16 %v4939
    %v5243 = vunpack.c.l.b16 %v4940
    %v5244 = vunpack.c.h.b16 %v4940
    %v5245 = vunpack.c.l.b16 %v4941
    %v5246 = vunpack.c.h.b16 %v4941
    %v5247 = vunpack.c.l.b16 %v4942
    %v5248 = vunpack.c.h.b16 %v4942
    %v5249 = vunpack.c.l.b16 %v4943
    %v5250 = vunpack.c.h.b16 %v4943
    %v5251 = vunpack.c.l.b16 %v4944
    %v5252 = vunpack.c.h.b16 %v4944
    %v5253 = vunpack.c.l.b16 %v4945
    %v5254 = vunpack.c.h.b16 %v4945
    %v5255 = vunpack.c.l.b16 %v4946
    %v5256 = vunpack.c.h.b16 %v4946
    %v5257 = vunpack.c.l.b16 %v4947
    %v5258 = vunpack.c.h.b16 %v4947
    %v5259 = vunpack.c.l.b16 %v4948
    %v5260 = vunpack.c.h.b16 %v4948
    %v5261 = vpack.c.b16 %v5075, %v5069
    %v5262 = vpack.c.b16 %v5076, %v5070
    %v5263 = vpack.c.b16 %v5077, %v5071
    %v5264 = vpack.c.b16 %v5078, %v5072
    %v5265 = vpack.c.b16 %v5079, %v5073
    %v5266 = vpack.c.b16 %v5080, %v5074
    %v5267 = vpack.c.b16 %v5087, %v5081
    %v5268 = vpack.c.b16 %v5088, %v5082
    %v5269 = vpack.c.b16 %v5089, %v5083
    %v5270 = vpack.c.b16 %v5090, %v5084
    %v5271 = vpack.c.b16 %v5091, %v5085
    %v5272 = vpack.c.b16 %v5092, %v5086
    %v5273 = vpack.c.b16 %v5099, %v5093
    %v5274 = vpack.c.b16 %v5100, %v5094
    %v5275 = vpack.c.b16 %v5101, %v5095
    %v5276 = vpack.c.b16 %v5102, %v5096
    %v5277 = vpack.c.b16 %v5103, %v5097
    %v5278 = vpack.c.b16 %v5104, %v5098
    %v5279 = vpack.c.b16 %v5111, %v5105
    %v5280 = vpack.c.b16 %v5112, %v5106
    %v5281 = vpack.c.b16 %v5113, %v5107
    %v5282 = vpack.c.b16 %v5114, %v5108
    %v5283 = vpack.c.b16 %v5115, %v5109
    %v5284 = vpack.c.b16 %v5116, %v5110
    %v5285 = vpack.c.b16 %v5123, %v5117
    %v5286 = vpack.c.b16 %v5124, %v5118
    %v5287 = vpack.c.b16 %v5125, %v5119
    %v5288 = vpack.c.b16 %v5126, %v5120
    %v5289 = vpack.c.b16 %v5127, %v5121
    %v5290 = vpack.c.b16 %v5128, %v5122
    %v5291 = vpack.c.b16 %v5135, %v5129
    %v5292 = vpack.c.b16 %v5136, %v5130
    %v5293 = vpack.c.b16 %v5137, %v5131
    %v5294 = vpack.c.b16 %v5138, %v5132
    %v5295 = vpack.c.b16 %v5139, %v5133
    %v5296 = vpack.c.b16 %v5140, %v5134
    %v5297 = vpack.c.b16 %v5147, %v5141
    %v5298 = vpack.c.b16 %v5148, %v5142
    %v5299 = vpack.c.b16 %v5149, %v5143
    %v5300 = vpack.c.b16 %v5150, %v5144
    %v5301 = vpack.c.b16 %v5151, %v5145
    %v5302 = vpack.c.b16 %v5152, %v5146
    %v5303 = vpack.c.b16 %v5159, %v5153
    %v5304 = vpack.c.b16 %v5160, %v5154
    %v5305 = vpack.c.b16 %v5161, %v5155
    %v5306 = vpack.c.b16 %v5162, %v5156
    %v5307 = vpack.c.b16 %v5163, %v5157
    %v5308 = vpack.c.b16 %v5164, %v5158
    %v5309 = vpack.c.b16 %v5171, %v5165
    %v5310 = vpack.c.b16 %v5172, %v5166
    %v5311 = vpack.c.b16 %v5173, %v5167
    %v5312 = vpack.c.b16 %v5174, %v5168
    %v5313 = vpack.c.b16 %v5175, %v5169
    %v5314 = vpack.c.b16 %v5176, %v5170
    %v5315 = vpack.c.b16 %v5183, %v5177
    %v5316 = vpack.c.b16 %v5184, %v5178
    %v5317 = vpack.c.b16 %v5185, %v5179
    %v5318 = vpack.c.b16 %v5186, %v5180
    %v5319 = vpack.c.b16 %v5187, %v5181
    %v5320 = vpack.c.b16 %v5188, %v5182
    %v5321 = vpack.c.b16 %v5195, %v5189
    %v5322 = vpack.c.b16 %v5196, %v5190
    %v5323 = vpack.c.b16 %v5197, %v5191
    %v5324 = vpack.c.b16 %v5198, %v5192
    %v5325 = vpack.c.b16 %v5199, %v5193
    %v5326 = vpack.c.b16 %v5200, %v5194
    %v5327 = vpack.c.b16 %v5207, %v5201
    %v5328 = vpack.c.b16 %v5208, %v5202
    %v5329 = vpack.c.b16 %v5209, %v5203
    %v5330 = vpack.c.b16 %v5210, %v5204
    %v5331 = vpack.c.b16 %v5211, %v5205
    %v5332 = vpack.c.b16 %v5212, %v5206
    %v5333 = vpack.c.b16 %v5219, %v5213
    %v5334 = vpack.c.b16 %v5220, %v5214
    %v5335 = vpack.c.b16 %v5221, %v5215
    %v5336 = vpack.c.b16 %v5222, %v5216
    %v5337 = vpack.c.b16 %v5223, %v5217
    %v5338 = vpack.c.b16 %v5224, %v5218
    %v5339 = vpack.c.b16 %v5231, %v5225
    %v5340 = vpack.c.b16 %v5232, %v5226
    %v5341 = vpack.c.b16 %v5233, %v5227
    %v5342 = vpack.c.b16 %v5234, %v5228
    %v5343 = vpack.c.b16 %v5235, %v5229
    %v5344 = vpack.c.b16 %v5236, %v5230
    %v5345 = vpack.c.b16 %v5243, %v5237
    %v5346 = vpack.c.b16 %v5244, %v5238
    %v5347 = vpack.c.b16 %v5245, %v5239
    %v5348 = vpack.c.b16 %v5246, %v5240
    %v5349 = vpack.c.b16 %v5247, %v5241
    %v5350 = vpack.c.b16 %v5248, %v5242
    %v5351 = vpack.c.b16 %v5255, %v5249
    %v5352 = vpack.c.b16 %v5256, %v5250
    %v5353 = vpack.c.b16 %v5257, %v5251
    %v5354 = vpack.c.b16 %v5258, %v5252
    %v5355 = vpack.c.b16 %v5259, %v5253
    %v5356 = vpack.c.b16 %v5260, %v5254
    %5453 = vmatprep.subr.bf16.mxu0 %v5262
    %5454 = vmatpush1.bf16.msra.mxu0 %v5261
    %5455 = vmatprep.subr.bf16.mxu0 %v5268
    %5456 = vmatpush1.bf16.msra.mxu0 %v5267
    %5457 = vmatprep.subr.bf16.mxu0 %v5274
    %5458 = vmatpush1.bf16.msra.mxu0 %v5273
    %5459 = vmatprep.subr.bf16.mxu0 %v5280
    %5460 = vmatpush1.bf16.msra.mxu0 %v5279
    %5461 = vmatprep.subr.bf16.mxu0 %v5286
    %5462 = vmatpush1.bf16.msra.mxu0 %v5285
    %5463 = vmatprep.subr.bf16.mxu0 %v5292
    %5464 = vmatpush1.bf16.msra.mxu0 %v5291
    %5465 = vmatprep.subr.bf16.mxu0 %v5298
    %5466 = vmatpush1.bf16.msra.mxu0 %v5297
    %5467 = vmatprep.subr.bf16.mxu0 %v5304
    %5468 = vmatpush1.bf16.msra.mxu0 %v5303
    %5469 = vmatprep.subr.bf16.mxu0 %v5310
    %5470 = vmatpush1.bf16.msra.mxu0 %v5309
    %5471 = vmatprep.subr.bf16.mxu0 %v5316
    %5472 = vmatpush1.bf16.msra.mxu0 %v5315
    %5473 = vmatprep.subr.bf16.mxu0 %v5322
    %5474 = vmatpush1.bf16.msra.mxu0 %v5321
    %5475 = vmatprep.subr.bf16.mxu0 %v5328
    %5476 = vmatpush1.bf16.msra.mxu0 %v5327
    %5477 = vmatprep.subr.bf16.mxu0 %v5334
    %5478 = vmatpush1.bf16.msra.mxu0 %v5333
    %5479 = vmatprep.subr.bf16.mxu0 %v5340
    %5480 = vmatpush1.bf16.msra.mxu0 %v5339
    %5481 = vmatprep.subr.bf16.mxu0 %v5346
    %5482 = vmatpush1.bf16.msra.mxu0 %v5345
    %5483 = vmatprep.subr.bf16.mxu0 %v5352
    %5484 = vmatpush1.bf16.msra.mxu0 %v5351
    %5485 = vmatprep.mubr.bf16.mxu0 %v4851
    %5486 = vmatmul.mubr.bf16.gmra.mrb[0].mxu0 %v4850
    %v5487 = vpop.f32.mrb[0].mxu0
    %v5488 = vadd.f32 %v4952, %v5487
    %v5489 = vpop.f32.mrb[0].mxu0
    %v5490 = vadd.f32 %v4956, %v5489
    %v5491 = vpop.f32.mrb[0].mxu0
    %v5492 = vpop.f32.mrb[0].mxu0
    %5493 = vdwg.mxu0
    %5494 = vmatprep.subr.bf16.mxu0 %v5264
    %5495 = vmatpush1.bf16.msra.mxu0 %v5263
    %5496 = vmatprep.subr.bf16.mxu0 %v5270
    %5497 = vmatpush1.bf16.msra.mxu0 %v5269
    %5498 = vmatprep.subr.bf16.mxu0 %v5276
    %5499 = vmatpush1.bf16.msra.mxu0 %v5275
    %5500 = vmatprep.subr.bf16.mxu0 %v5282
    %5501 = vmatpush1.bf16.msra.mxu0 %v5281
    %5502 = vmatprep.subr.bf16.mxu0 %v5288
    %5503 = vmatpush1.bf16.msra.mxu0 %v5287
    %5504 = vmatprep.subr.bf16.mxu0 %v5294
    %5505 = vmatpush1.bf16.msra.mxu0 %v5293
    %5506 = vmatprep.subr.bf16.mxu0 %v5300
    %5507 = vmatpush1.bf16.msra.mxu0 %v5299
    %5508 = vmatprep.subr.bf16.mxu0 %v5306
    %5509 = vmatpush1.bf16.msra.mxu0 %v5305
    %5510 = vmatprep.subr.bf16.mxu0 %v5312
    %5511 = vmatpush1.bf16.msra.mxu0 %v5311
    %5512 = vmatprep.subr.bf16.mxu0 %v5318
    %5513 = vmatpush1.bf16.msra.mxu0 %v5317
    %5514 = vmatprep.subr.bf16.mxu0 %v5324
    %5515 = vmatpush1.bf16.msra.mxu0 %v5323
    %5516 = vmatprep.subr.bf16.mxu0 %v5330
    %5517 = vmatpush1.bf16.msra.mxu0 %v5329
    %5518 = vmatprep.subr.bf16.mxu0 %v5336
    %5519 = vmatpush1.bf16.msra.mxu0 %v5335
    %5520 = vmatprep.subr.bf16.mxu0 %v5342
    %5521 = vmatpush1.bf16.msra.mxu0 %v5341
    %5522 = vmatprep.subr.bf16.mxu0 %v5348
    %5523 = vmatpush1.bf16.msra.mxu0 %v5347
    %5524 = vmatprep.subr.bf16.mxu0 %v5354
    %5525 = vmatpush1.bf16.msra.mxu0 %v5353
    %5526 = vmatprep.mubr.bf16.mxu0 %v4851
    %5527 = vmatmul.mubr.bf16.gmra.mrb[0].mxu0 %v4850
    %v5528 = vpop.f32.mrb[0].mxu0
    %v5529 = vadd.f32 %v4960, %v5528
    %v5530 = vpop.f32.mrb[0].mxu0
    %v5531 = vadd.f32 %v4964, %v5530
    %v5532 = vpop.f32.mrb[0].mxu0
    %v5533 = vpop.f32.mrb[0].mxu0
    %5534 = vdwg.mxu0
    %5535 = vmatprep.subr.bf16.mxu0 %v5266
    %5536 = vmatpush1.bf16.msra.mxu0 %v5265
    %5537 = vmatprep.subr.bf16.mxu0 %v5272
    %5538 = vmatpush1.bf16.msra.mxu0 %v5271
    %5539 = vmatprep.subr.bf16.mxu0 %v5278
    %5540 = vmatpush1.bf16.msra.mxu0 %v5277
    %5541 = vmatprep.subr.bf16.mxu0 %v5284
    %5542 = vmatpush1.bf16.msra.mxu0 %v5283
    %5543 = vmatprep.subr.bf16.mxu0 %v5290
    %5544 = vmatpush1.bf16.msra.mxu0 %v5289
    %5545 = vmatprep.subr.bf16.mxu0 %v5296
    %5546 = vmatpush1.bf16.msra.mxu0 %v5295
    %5547 = vmatprep.subr.bf16.mxu0 %v5302
    %5548 = vmatpush1.bf16.msra.mxu0 %v5301
    %5549 = vmatprep.subr.bf16.mxu0 %v5308
    %5550 = vmatpush1.bf16.msra.mxu0 %v5307
    %5551 = vmatprep.subr.bf16.mxu0 %v5314
    %5552 = vmatpush1.bf16.msra.mxu0 %v5313
    %5553 = vmatprep.subr.bf16.mxu0 %v5320
    %5554 = vmatpush1.bf16.msra.mxu0 %v5319
    %5555 = vmatprep.subr.bf16.mxu0 %v5326
    %5556 = vmatpush1.bf16.msra.mxu0 %v5325
    %5557 = vmatprep.subr.bf16.mxu0 %v5332
    %5558 = vmatpush1.bf16.msra.mxu0 %v5331
    %5559 = vmatprep.subr.bf16.mxu0 %v5338
    %5560 = vmatpush1.bf16.msra.mxu0 %v5337
    %5561 = vmatprep.subr.bf16.mxu0 %v5344
    %5562 = vmatpush1.bf16.msra.mxu0 %v5343
    %5563 = vmatprep.subr.bf16.mxu0 %v5350
    %5564 = vmatpush1.bf16.msra.mxu0 %v5349
    %5565 = vmatprep.subr.bf16.mxu0 %v5356
    %5566 = vmatpush1.bf16.msra.mxu0 %v5355
    %5567 = vmatprep.mubr.bf16.mxu0 %v4851
    %5568 = vmatmul.mubr.bf16.gmra.mrb[0].mxu0 %v4850
    %v5569 = vpop.f32.mrb[0].mxu0
    %v5570 = vadd.f32 %v4968, %v5569
    %v5571 = vpop.f32.mrb[0].mxu0
    %v5572 = vadd.f32 %v4972, %v5571
    %v5573 = vpop.f32.mrb[0].mxu0
    %v5574 = vpop.f32.mrb[0].mxu0
    %5575 = vdwg.mxu0
    %v5576 = vadd.f32 %v5488, %v2366
    %v5577 = vadd.f32 %v5490, %v2368
    %v5578 = vxor.u32 %v5576, 2147483648
    %v5579 = vxor.u32 %v5577, 2147483648
    %v5580 = vmul.f32 %v5578, 1.442695
    %v5581 = vpow.pop %v5580
    %v5582 = vmul.f32 %v5579, 1.442695
    %v5583 = vpow.pop %v5582
    %v5584 = vadd.f32 %v5581, 1.0
    %v5585 = vadd.f32 %v5583, 1.0
    %v5586 = vrcp.pop %v5584
    %v5587 = vmul.f32 1.0, %v5586
    %v5588 = vrcp.pop %v5585
    %v5589 = vmul.f32 1.0, %v5588
    %v5590 = vadd.f32 %v5529, %v2407
    %v5591 = vadd.f32 %v5531, %v2409
    %v5592 = vxor.u32 %v5590, 2147483648
    %v5593 = vxor.u32 %v5591, 2147483648
    %v5594 = vmul.f32 %v5592, 1.442695
    %v5595 = vpow.pop %v5594
    %v5596 = vmul.f32 %v5593, 1.442695
    %v5597 = vpow.pop %v5596
    %v5598 = vadd.f32 %v5595, 1.0
    %v5599 = vadd.f32 %v5597, 1.0
    %v5600 = vrcp.pop %v5598
    %v5601 = vmul.f32 1.0, %v5600
    %v5602 = vrcp.pop %v5599
    %v5603 = vmul.f32 1.0, %v5602
    %v5604 = vmul.f32 %v5587, %v2448
    %v5605 = vmul.f32 %v5589, %v2450
    %v5606 = vadd.f32 %v5570, %v5604
    %v5607 = vadd.f32 %v5572, %v5605
    %v5608 = vtanh.pop %v5606
    %v5609 = vtanh.pop %v5607
    %v5610 = vsub.f32 1.0, %v5601
    %v5611 = vsub.f32 1.0, %v5603
    %v5612 = vmul.f32 %v5610, %v5608
    %v5613 = vmul.f32 %v5611, %v5609
    %v5614 = vmul.f32 %v5601, %v148
    %v5615 = vmul.f32 %v5603, %v149
    %v5616 = vadd.f32 %v5612, %v5614
    %v5617 = vadd.f32 %v5613, %v5615
    %5618 = vst [vmem:[#allocation17] sm:$0xff] %v4080
    %5619 = vst [vmem:[#allocation17 + $0x8] sm:$0xff] %v4081
    %s5620 = scalar_lea.vmem [#allocation17], 16
    %5621 = vst [vmem:[%s5620] sm:$0xff] %v4848
    %5622 = vst [vmem:[%s5620 + $0x8] sm:$0xff] %v4849
    %s5623 = scalar_lea.vmem [#allocation17], 32
    %5624 = vst [vmem:[%s5623] sm:$0xff] %v5616
    %5625 = vst [vmem:[%s5623 + $0x8] sm:$0xff] %v5617
    %v5626 = vpack.c.bf16 %v5616, %v5616
    %v5627 = vpack.c.bf16 %v5617, %v5617
    %v5628 = vld [vmem:[#allocation14] sm:$0xf]
    %v5629 = vld [vmem:[#allocation14 + $0x4] sm:$0xf]
    %v5630 = vld [vmem:[#allocation14 + $0x8] sm:$0xf]
    %v5631 = vld [vmem:[#allocation14 + $0xc] sm:$0xf]
    %v5632 = vld [vmem:[#allocation14 + $0x10] sm:$0xf]
    %v5633 = vld [vmem:[#allocation14 + $0x14] sm:$0xf]
    %v5634 = vld [vmem:[#allocation14 + $0x18] sm:$0xf]
    %v5635 = vld [vmem:[#allocation14 + $0x1c] sm:$0xf]
    %v5636 = vld [vmem:[#allocation14 + $0x20] sm:$0xf]
    %v5637 = vld [vmem:[#allocation14 + $0x24] sm:$0xf]
    %v5638 = vld [vmem:[#allocation14 + $0x28] sm:$0xf]
    %v5639 = vld [vmem:[#allocation14 + $0x2c] sm:$0xf]
    %v5640 = vld [vmem:[#allocation14 + $0x30] sm:$0xf]
    %v5641 = vld [vmem:[#allocation14 + $0x34] sm:$0xf]
    %v5642 = vld [vmem:[#allocation14 + $0x38] sm:$0xf]
    %v5643 = vld [vmem:[#allocation14 + $0x3c] sm:$0xf]
    %v5644 = vld [vmem:[#allocation14 + $0x40] sm:$0xf]
    %v5645 = vld [vmem:[#allocation14 + $0x44] sm:$0xf]
    %v5646 = vld [vmem:[#allocation14 + $0x48] sm:$0xf]
    %v5647 = vld [vmem:[#allocation14 + $0x4c] sm:$0xf]
    %v5648 = vld [vmem:[#allocation14 + $0x50] sm:$0xf]
    %v5649 = vld [vmem:[#allocation14 + $0x54] sm:$0xf]
    %v5650 = vld [vmem:[#allocation14 + $0x58] sm:$0xf]
    %v5651 = vld [vmem:[#allocation14 + $0x5c] sm:$0xf]
    %v5652 = vld [vmem:[#allocation14 + $0x60] sm:$0xf]
    %v5653 = vld [vmem:[#allocation14 + $0x64] sm:$0xf]
    %v5654 = vld [vmem:[#allocation14 + $0x68] sm:$0xf]
    %v5655 = vld [vmem:[#allocation14 + $0x6c] sm:$0xf]
    %v5656 = vld [vmem:[#allocation14 + $0x70] sm:$0xf]
    %v5657 = vld [vmem:[#allocation14 + $0x74] sm:$0xf]
    %v5658 = vld [vmem:[#allocation14 + $0x78] sm:$0xf]
    %v5659 = vld [vmem:[#allocation14 + $0x7c] sm:$0xf]
    %v5660 = vld [vmem:[#allocation15] sm:$0x1]
    %v5662 = vlaneseq
    %v5663 = vshrl.u32 %v5662, 7
    %v5664 = vsub.s32 0, %v5663
    %v5665 = vrot.slane %v5660, %v5664
    %v5699 = vunpack.c.l.b16 %v5628
    %v5700 = vunpack.c.l.b16 %v5629
    %v5701 = vunpack.c.l.b16 %v5630
    %v5702 = vunpack.c.l.b16 %v5631
    %v5703 = vunpack.c.l.b16 %v5632
    %v5704 = vunpack.c.l.b16 %v5633
    %v5705 = vunpack.c.l.b16 %v5634
    %v5706 = vunpack.c.l.b16 %v5635
    %v5707 = vunpack.c.l.b16 %v5636
    %v5708 = vunpack.c.l.b16 %v5637
    %v5709 = vunpack.c.l.b16 %v5638
    %v5710 = vunpack.c.l.b16 %v5639
    %v5711 = vunpack.c.l.b16 %v5640
    %v5712 = vunpack.c.l.b16 %v5641
    %v5713 = vunpack.c.l.b16 %v5642
    %v5714 = vunpack.c.l.b16 %v5643
    %v5715 = vunpack.c.l.b16 %v5644
    %v5716 = vunpack.c.l.b16 %v5645
    %v5717 = vunpack.c.l.b16 %v5646
    %v5718 = vunpack.c.l.b16 %v5647
    %v5719 = vunpack.c.l.b16 %v5648
    %v5720 = vunpack.c.l.b16 %v5649
    %v5721 = vunpack.c.l.b16 %v5650
    %v5722 = vunpack.c.l.b16 %v5651
    %v5723 = vunpack.c.l.b16 %v5652
    %v5724 = vunpack.c.l.b16 %v5653
    %v5725 = vunpack.c.l.b16 %v5654
    %v5726 = vunpack.c.l.b16 %v5655
    %v5727 = vunpack.c.l.b16 %v5656
    %v5728 = vunpack.c.l.b16 %v5657
    %v5729 = vunpack.c.l.b16 %v5658
    %v5730 = vunpack.c.l.b16 %v5659
    %v5731 = vpack.c.b16 %v5700, %v5699
    %v5732 = vpack.c.b16 %v5702, %v5701
    %v5733 = vpack.c.b16 %v5704, %v5703
    %v5734 = vpack.c.b16 %v5706, %v5705
    %v5735 = vpack.c.b16 %v5708, %v5707
    %v5736 = vpack.c.b16 %v5710, %v5709
    %v5737 = vpack.c.b16 %v5712, %v5711
    %v5738 = vpack.c.b16 %v5714, %v5713
    %v5739 = vpack.c.b16 %v5716, %v5715
    %v5740 = vpack.c.b16 %v5718, %v5717
    %v5741 = vpack.c.b16 %v5720, %v5719
    %v5742 = vpack.c.b16 %v5722, %v5721
    %v5743 = vpack.c.b16 %v5724, %v5723
    %v5744 = vpack.c.b16 %v5726, %v5725
    %v5745 = vpack.c.b16 %v5728, %v5727
    %v5746 = vpack.c.b16 %v5730, %v5729
    %5763 = vmatprep.subr.bf16.mxu0 0
    %5764 = vmatpush1.bf16.msra.mxu0 %v5731
    %5765 = vmatprep.subr.bf16.mxu0 0
    %5766 = vmatpush1.bf16.msra.mxu0 %v5732
    %5767 = vmatprep.subr.bf16.mxu0 0
    %5768 = vmatpush1.bf16.msra.mxu0 %v5733
    %5769 = vmatprep.subr.bf16.mxu0 0
    %5770 = vmatpush1.bf16.msra.mxu0 %v5734
    %5771 = vmatprep.subr.bf16.mxu0 0
    %5772 = vmatpush1.bf16.msra.mxu0 %v5735
    %5773 = vmatprep.subr.bf16.mxu0 0
    %5774 = vmatpush1.bf16.msra.mxu0 %v5736
    %5775 = vmatprep.subr.bf16.mxu0 0
    %5776 = vmatpush1.bf16.msra.mxu0 %v5737
    %5777 = vmatprep.subr.bf16.mxu0 0
    %5778 = vmatpush1.bf16.msra.mxu0 %v5738
    %5779 = vmatprep.subr.bf16.mxu0 0
    %5780 = vmatpush1.bf16.msra.mxu0 %v5739
    %5781 = vmatprep.subr.bf16.mxu0 0
    %5782 = vmatpush1.bf16.msra.mxu0 %v5740
    %5783 = vmatprep.subr.bf16.mxu0 0
    %5784 = vmatpush1.bf16.msra.mxu0 %v5741
    %5785 = vmatprep.subr.bf16.mxu0 0
    %5786 = vmatpush1.bf16.msra.mxu0 %v5742
    %5787 = vmatprep.subr.bf16.mxu0 0
    %5788 = vmatpush1.bf16.msra.mxu0 %v5743
    %5789 = vmatprep.subr.bf16.mxu0 0
    %5790 = vmatpush1.bf16.msra.mxu0 %v5744
    %5791 = vmatprep.subr.bf16.mxu0 0
    %5792 = vmatpush1.bf16.msra.mxu0 %v5745
    %5793 = vmatprep.subr.bf16.mxu0 0
    %5794 = vmatpush1.bf16.msra.mxu0 %v5746
    %5795 = vmatprep.mubr.bf16.mxu0 %v5627
    %5796 = vmatmul.mubr.bf16.gmra.mrb[0].mxu0 %v5626
    %v5797 = vpop.f32.mrb[0].mxu0
    %v5798 = vadd.f32 %v5665, %v5797
    %v5799 = vpop.f32.mrb[0].mxu0
    %v5800 = vpop.f32.mrb[0].mxu0
    %v5801 = vpop.f32.mrb[0].mxu0
    %5802 = vdwg.mxu0
    %5803 = vst [vmem:[#allocation18] sm:$0xff] %v5798
    // Predicated region
    $region74: #{tpu_custom_call.1} parent=1 // pred_check
      _
    $region75: #{tpu_custom_call.1} parent=1 // pred_check_branch
      %5805 = sbr.rel (0) target = $region77
    $region76: #{tpu_custom_call.1} parent=1 // pred_region
      %s5807 = ssub.s32 768, 768
      %5808 = vsyncadd [#allocation5], %s5807
      %s5809 = sshll.u32 [#allocation17], 4
      %s5810 = int_to_ptr.vmem [resolvable:$true] %s5809
      %5815 = dma.vmem_to_hbm [thread:$0]  %s5810, 768, %s10, [#allocation5], 256, 256, 16
    $region77: #{tpu_custom_call.1} parent=1 // pred_fallthru
      _
    // Predicated region
    $region78: #{tpu_custom_call.1} parent=1 // pred_check
      _
    $region79: #{tpu_custom_call.1} parent=1 // pred_check_branch
      %5817 = sbr.rel (0) target = $region81
    $region80: #{tpu_custom_call.1} parent=1 // pred_region
      %s5819 = ssub.s32 128, 128
      %5820 = vsyncadd [#allocation19], %s5819
      %s5822 = sshll.u32 [#allocation18], 4
      %s5823 = int_to_ptr.vmem [resolvable:$true] %s5822
      %5825 = dma.vmem_to_hbm [thread:$0]  %s5823, 128, %s11, [#allocation19]
    $region81: #{tpu_custom_call.1} parent=1 // pred_fallthru
      _
    // Predicated region
    $region82: #{tpu_custom_call.1} parent=1 // pred_check
      _
    $region83: #{tpu_custom_call.1} parent=1 // pred_check_branch
      %5827 = sbr.rel (0) target = $region85
    $region84: #{tpu_custom_call.1} parent=1 // pred_region
      %5828 = dma.done [#allocation5], 768
    $region85: #{tpu_custom_call.1} parent=1 // pred_fallthru
      _
    // Predicated region
    $region86: #{tpu_custom_call.1} parent=1 // pred_check
      _
    $region87: #{tpu_custom_call.1} parent=1 // pred_check_branch
      %5830 = sbr.rel (0) target = $region89
    $region88: #{tpu_custom_call.1} parent=1 // pred_region
      %5831 = dma.done [#allocation19], 128
    $region89: #{tpu_custom_call.1} parent=1 // pred_fallthru
      _
    %5832 = vsyncpa [#allocation4], 1
    %5833 = vsyncpa [#allocation7], 1
    %5834 = vsyncpa [#allocation10], 1
    %5835 = vsyncpa [#allocation13], 1
    %5836 = vsyncpa [#allocation16], 1
    %5837 = vsyncpa [#allocation5], 1
    %5838 = vsyncpa [#allocation19], 1

</llo_original>
